<compile_context>
chip_gen: v6e
topology: v6e:2x2x1
jax: 0.10.0
libtpu: 0.0.40
codegen_flags: <defaults>
</compile_context>

<pallas_src>
from functools import lru_cache

import numpy as np
import jax
import jax.numpy as jnp
from jax.experimental import pallas as pl
from jax.experimental.pallas import tpu as pltpu

BN_EPS = 1e-5


# ---------------------------------------------------------------------------
# Host-side constants: per-sample, per-tap gather matrices (vectorized + cached)
# ---------------------------------------------------------------------------
@lru_cache(maxsize=None)
def _gather_consts(lin, dtype_name):
    """Per-tap gather matrices St (3, Lout, Lin), St[k, t, i] = [i == 2t+k-1].

    (St[k] @ h) with h laid out (Lin, C) picks h[2t+k-1, :] and bakes in the
    conv zero padding (rows with no match are all zero).  Exactly 0/1, so they
    are exact in bf16.
    """
    lout = (lin - 1) // 2 + 1
    t = np.arange(lout)[:, None]
    i = np.arange(lin)[None, :]
    st = np.stack([(i == (2 * t + k - 1)) for k in range(3)], axis=0)
    return jnp.asarray(st, dtype=jnp.dtype(dtype_name)), lout


# ---------------------------------------------------------------------------
# Fused kernel
# ---------------------------------------------------------------------------
def _build_kernel(num_hidden, batch, mxu_dtype):
    def conv_block(hm, s_ref, w_ref):
        """Conv1d(k=3, s=2, p=1) for one sample.

        hm    : (Lin, Cin) activations in mxu_dtype (length on sublanes,
                channels on lanes)
        s_ref : (3, Lout, Lin) per-tap 0/1 gather matrices (ref, sliced per tap)
        w_ref : (3, Cin, Cout) per-tap weights (ref, sliced per tap)
        returns (Lout, Cout) float32 (f32 accumulation on the MXU)
        """
        y = None
        for k in range(3):
            # Gather tap k: exact 0/1 selection of (bf16) activations.
            tap = jnp.dot(s_ref[k], hm, preferred_element_type=mxu_dtype)
            # Weight matmul for tap k, accumulated in f32.
            yk = jnp.dot(tap, w_ref[k], preferred_element_type=jnp.float32)
            y = yk if y is None else y + yk
        return y

    def kernel(*refs):
        x_ref = refs[0]                                   # (B, L0, Cin) f32
        o_ref = refs[-1]                                  # (B, out_ch) f32
        layer_refs = refs[1:1 + 4 * num_hidden]
        sf_ref, wf_ref, bias_ref = refs[1 + 4 * num_hidden:-1]

        # Per-sample activations, (L, C) layout, kept in f32 between layers.
        hs = [x_ref[b] for b in range(batch)]

        for l in range(num_hidden):
            s_ref, w_ref, g_ref, b_ref = layer_refs[4 * l:4 * l + 4]
            ys, s1, s2 = [], None, None
            for b in range(batch):
                y = conv_block(hs[b].astype(mxu_dtype), s_ref, w_ref)
                ys.append(y)
                # One-pass BN statistics: sum and sum-of-squares per channel.
                p1 = jnp.sum(y, axis=0, keepdims=True)
                p2 = jnp.sum(y * y, axis=0, keepdims=True)
                s1 = p1 if s1 is None else s1 + p1
                s2 = p2 if s2 is None else s2 + p2
            inv_n = 1.0 / float(batch * ys[0].shape[0])
            mean = s1 * inv_n                             # (1, Cout) f32
            var = s2 * inv_n - mean * mean                # biased batch*length var
            scale = g_ref[...] * jax.lax.rsqrt(var + BN_EPS)
            shift = b_ref[...] - mean * scale
            hs = [jnp.maximum(y * scale + shift, 0.0) for y in ys]

        # Final conv (with bias) + global average pool over the full length.
        bias = bias_ref[...]                              # (1, out_ch) f32
        for b in range(batch):
            y = conv_block(hs[b].astype(mxu_dtype), sf_ref, wf_ref)  # (Lf, out_ch)
            row = jnp.mean(y, axis=0, keepdims=True) + bias          # (1, out_ch)
            o_ref[pl.ds(b, 1), :] = row                   # lane-dense output row

    return kernel


# ---------------------------------------------------------------------------
# Wrapper
# ---------------------------------------------------------------------------
def voice_embed_net(x, params, mxu_dtype=jnp.bfloat16):
    """x: (B, input_channel, L) float32 -> (B, output_channel, 1, 1) float32."""
    B, _, L = x.shape
    num_hidden = len(params["hidden"])
    mxu_name = jnp.dtype(mxu_dtype).name

    # Lane-dense per-sample layout: (B, L, C) with channels on lanes.
    xT = jnp.transpose(x, (0, 2, 1)).astype(jnp.float32)

    args = [xT]
    lcur = L
    for (w, gamma, beta) in params["hidden"]:
        st, lcur = _gather_consts(lcur, mxu_name)         # (3, Lout, Lin)
        wt = jnp.transpose(w, (2, 1, 0)).astype(mxu_dtype)  # (3, Cin, Cout)
        args += [st, wt,
                 gamma.reshape(1, -1).astype(jnp.float32),
                 beta.reshape(1, -1).astype(jnp.float32)]
    wf, bf = params["final"]
    stf, _ = _gather_consts(lcur, mxu_name)
    args += [stf,
             jnp.transpose(wf, (2, 1, 0)).astype(mxu_dtype),
             bf.reshape(1, -1).astype(jnp.float32)]
    out_ch = wf.shape[0]

    kernel = _build_kernel(num_hidden, B, mxu_dtype)

    # Everything is VMEM-resident (no grid / pipelining): size the scoped VMEM
    # limit from the real resident set, never below the platform defaults.
    resident = sum(int(np.prod(a.shape)) * a.dtype.itemsize for a in args)
    resident += B * out_ch * 4
    vmem_limit = int(min(64 << 20, max(32 << 20, 4 * resident + (4 << 20))))

    vmem = pl.BlockSpec(memory_space=pltpu.MemorySpace.VMEM)
    out = pl.pallas_call(
        kernel,
        out_shape=jax.ShapeDtypeStruct((B, out_ch), jnp.float32),
        in_specs=[vmem] * len(args),
        out_specs=vmem,
        compiler_params=pltpu.CompilerParams(vmem_limit_bytes=vmem_limit),
    )(*args)                                              # (B, out_ch), lane-dense

    return out.reshape(B, -1, 1, 1)


# ---------------------------------------------------------------------------
# Deterministic parameter init (shapes as in VoiceEmbedNet.__init__)
# ---------------------------------------------------------------------------
def init_params(key, input_channel, channels, output_channel):
    dims = [input_channel] + list(channels)
    params = {"hidden": [], "final": None}
    for i in range(len(channels)):
        key, kw, kg, kb = jax.random.split(key, 4)
        cin, cout = dims[i], dims[i + 1]
        w = jax.random.normal(kw, (cout, cin, 3), jnp.float32) / jnp.sqrt(3.0 * cin)
        gamma = 1.0 + 0.1 * jax.random.normal(kg, (cout,), jnp.float32)
        beta = 0.1 * jax.random.normal(kb, (cout,), jnp.float32)
        params["hidden"].append((w, gamma, beta))
    key, kw, kb = jax.random.split(key, 3)
    w = jax.random.normal(kw, (output_channel, dims[-1], 3), jnp.float32) / jnp.sqrt(
        3.0 * dims[-1])
    b = 0.1 * jax.random.normal(kb, (output_channel,), jnp.float32)
    params["final"] = (w, b)
    return params


# ---------------------------------------------------------------------------
# Pure-JAX reference (mxu_dtype controls the conv operand precision so both the
# exact f32 path and the bf16-operand path can be checked tightly).
# ---------------------------------------------------------------------------
def ref_forward(x, params, mxu_dtype=jnp.float32):
    def conv(h, w):
        return jax.lax.conv_general_dilated(
            h.astype(mxu_dtype), w.astype(mxu_dtype), window_strides=(2,),
            padding=((1, 1),), dimension_numbers=("NCH", "OIH", "NCH"),
            preferred_element_type=jnp.float32)

    h = x
    for (w, g, b) in params["hidden"]:
        h = conv(h, w)
        mean = jnp.mean(h, axis=(0, 2), keepdims=True)
        var = jnp.mean((h - mean) ** 2, axis=(0, 2), keepdims=True)
        h = g.reshape(1, -1, 1) * (h - mean) * jax.lax.rsqrt(var + BN_EPS) \
            + b.reshape(1, -1, 1)
        h = jnp.maximum(h, 0.0)
    w, b = params["final"]
    h = conv(h, w) + b.reshape(1, -1, 1)
    h = jnp.mean(h, axis=2)                               # avg_pool over full length
    return h.reshape(h.shape[0], -1, 1, 1)


# ---------------------------------------------------------------------------
if __name__ == "__main__":
    key = jax.random.PRNGKey(0)
    B, input_channel, L = 2, 4, 64
    channels = [8, 16, 16, 32]
    output_channel = 32

    key, kx, kp = jax.random.split(key, 3)
    x = jax.random.normal(kx, (B, input_channel, L), jnp.float32)
    params = init_params(kp, input_channel, channels, output_channel)

    # Exact path: f32 MXU operands vs the f32 reference.
    y32 = jax.block_until_ready(voice_embed_net(x, params, mxu_dtype=jnp.float32))
    assert y32.shape == (B, output_channel, 1, 1), y32.shape
    r32 = jax.block_until_ready(ref_forward(x, params, mxu_dtype=jnp.float32))
    assert jnp.allclose(y32, r32, atol=5e-4, rtol=5e-4), \
        f"f32 max abs err {jnp.max(jnp.abs(y32 - r32))}"

    # Default fast path: bf16 MXU operands / f32 accumulation + BN, checked
    # against a mixed-precision-aware reference (same bf16 conv operands).
    ybf = jax.block_until_ready(voice_embed_net(x, params, mxu_dtype=jnp.bfloat16))
    assert ybf.shape == (B, output_channel, 1, 1), ybf.shape
    rbf = jax.block_until_ready(ref_forward(x, params, mxu_dtype=jnp.bfloat16))
    assert jnp.allclose(ybf, rbf, atol=1e-2, rtol=1e-2), \
        f"bf16 max abs err {jnp.max(jnp.abs(ybf - rbf))}"

    print("KERNEL_OK")
</pallas_src>

<mosaic_0001>
module attributes {stable_mosaic.version = 11 : i64} {
  func.func @kernel(%arg0: memref<2x64x4xf32, #tpu.memory_space<vmem>>, %arg1: memref<3x32x64xf32, #tpu.memory_space<vmem>>, %arg2: memref<3x4x8xf32, #tpu.memory_space<vmem>>, %arg3: memref<1x8xf32, #tpu.memory_space<vmem>>, %arg4: memref<1x8xf32, #tpu.memory_space<vmem>>, %arg5: memref<3x16x32xf32, #tpu.memory_space<vmem>>, %arg6: memref<3x8x16xf32, #tpu.memory_space<vmem>>, %arg7: memref<1x16xf32, #tpu.memory_space<vmem>>, %arg8: memref<1x16xf32, #tpu.memory_space<vmem>>, %arg9: memref<3x8x16xf32, #tpu.memory_space<vmem>>, %arg10: memref<3x16x16xf32, #tpu.memory_space<vmem>>, %arg11: memref<1x16xf32, #tpu.memory_space<vmem>>, %arg12: memref<1x16xf32, #tpu.memory_space<vmem>>, %arg13: memref<3x4x8xf32, #tpu.memory_space<vmem>>, %arg14: memref<3x16x32xf32, #tpu.memory_space<vmem>>, %arg15: memref<1x32xf32, #tpu.memory_space<vmem>>, %arg16: memref<1x32xf32, #tpu.memory_space<vmem>>, %arg17: memref<3x2x4xf32, #tpu.memory_space<vmem>>, %arg18: memref<3x32x32xf32, #tpu.memory_space<vmem>>, %arg19: memref<1x32xf32, #tpu.memory_space<vmem>>, %arg20: memref<2x32xf32, #tpu.memory_space<vmem>>) attributes {dimension_semantics = [], scalar_prefetch = 0 : i64, scratch_operands = 0 : i64, tpu.core_type = #tpu.core_type<tc>} {
    %c0 = arith.constant 0 : index
    %c0_0 = arith.constant 0 : index
    %c0_1 = arith.constant 0 : index
    %0 = vector.load %arg0[%c0, %c0_0, %c0_1] : memref<2x64x4xf32, #tpu.memory_space<vmem>>, vector<1x64x4xf32>
    %1 = vector.shape_cast %0 : vector<1x64x4xf32> to vector<64x4xf32>
    %c1 = arith.constant 1 : index
    %c0_2 = arith.constant 0 : index
    %c0_3 = arith.constant 0 : index
    %2 = vector.load %arg0[%c1, %c0_2, %c0_3] : memref<2x64x4xf32, #tpu.memory_space<vmem>>, vector<1x64x4xf32>
    %3 = vector.shape_cast %2 : vector<1x64x4xf32> to vector<64x4xf32>
    %c0_4 = arith.constant 0 : index
    %c0_5 = arith.constant 0 : index
    %c0_6 = arith.constant 0 : index
    %4 = vector.load %arg1[%c0_4, %c0_5, %c0_6] : memref<3x32x64xf32, #tpu.memory_space<vmem>>, vector<1x32x64xf32>
    %5 = vector.shape_cast %4 : vector<1x32x64xf32> to vector<32x64xf32>
    %cst = arith.constant dense<0.000000e+00> : vector<32x4xf32>
    %6 = tpu.matmul %5, %1, %cst {dimension_numbers = #tpu.dot_dimension_numbers<[1], [0], [0], [1], [0, 0, 1, 1], [], []>} : vector<32x64xf32>, vector<64x4xf32>, vector<32x4xf32> -> vector<32x4xf32>
    %c0_7 = arith.constant 0 : index
    %c0_8 = arith.constant 0 : index
    %c0_9 = arith.constant 0 : index
    %7 = vector.load %arg2[%c0_7, %c0_8, %c0_9] : memref<3x4x8xf32, #tpu.memory_space<vmem>>, vector<1x4x8xf32>
    %8 = vector.shape_cast %7 : vector<1x4x8xf32> to vector<4x8xf32>
    %cst_10 = arith.constant dense<0.000000e+00> : vector<32x8xf32>
    %9 = tpu.matmul %6, %8, %cst_10 {dimension_numbers = #tpu.dot_dimension_numbers<[1], [0], [0], [1], [0, 0, 1, 1], [], []>} : vector<32x4xf32>, vector<4x8xf32>, vector<32x8xf32> -> vector<32x8xf32>
    %c1_11 = arith.constant 1 : index
    %c0_12 = arith.constant 0 : index
    %c0_13 = arith.constant 0 : index
    %10 = vector.load %arg1[%c1_11, %c0_12, %c0_13] : memref<3x32x64xf32, #tpu.memory_space<vmem>>, vector<1x32x64xf32>
    %11 = vector.shape_cast %10 : vector<1x32x64xf32> to vector<32x64xf32>
    %cst_14 = arith.constant dense<0.000000e+00> : vector<32x4xf32>
    %12 = tpu.matmul %11, %1, %cst_14 {dimension_numbers = #tpu.dot_dimension_numbers<[1], [0], [0], [1], [0, 0, 1, 1], [], []>} : vector<32x64xf32>, vector<64x4xf32>, vector<32x4xf32> -> vector<32x4xf32>
    %c1_15 = arith.constant 1 : index
    %c0_16 = arith.constant 0 : index
    %c0_17 = arith.constant 0 : index
    %13 = vector.load %arg2[%c1_15, %c0_16, %c0_17] : memref<3x4x8xf32, #tpu.memory_space<vmem>>, vector<1x4x8xf32>
    %14 = vector.shape_cast %13 : vector<1x4x8xf32> to vector<4x8xf32>
    %cst_18 = arith.constant dense<0.000000e+00> : vector<32x8xf32>
    %15 = tpu.matmul %12, %14, %cst_18 {dimension_numbers = #tpu.dot_dimension_numbers<[1], [0], [0], [1], [0, 0, 1, 1], [], []>} : vector<32x4xf32>, vector<4x8xf32>, vector<32x8xf32> -> vector<32x8xf32>
    %16 = arith.addf %9, %15 : vector<32x8xf32>
    %c2 = arith.constant 2 : index
    %c0_19 = arith.constant 0 : index
    %c0_20 = arith.constant 0 : index
    %17 = vector.load %arg1[%c2, %c0_19, %c0_20] : memref<3x32x64xf32, #tpu.memory_space<vmem>>, vector<1x32x64xf32>
    %18 = vector.shape_cast %17 : vector<1x32x64xf32> to vector<32x64xf32>
    %cst_21 = arith.constant dense<0.000000e+00> : vector<32x4xf32>
    %19 = tpu.matmul %18, %1, %cst_21 {dimension_numbers = #tpu.dot_dimension_numbers<[1], [0], [0], [1], [0, 0, 1, 1], [], []>} : vector<32x64xf32>, vector<64x4xf32>, vector<32x4xf32> -> vector<32x4xf32>
    %c2_22 = arith.constant 2 : index
    %c0_23 = arith.constant 0 : index
    %c0_24 = arith.constant 0 : index
    %20 = vector.load %arg2[%c2_22, %c0_23, %c0_24] : memref<3x4x8xf32, #tpu.memory_space<vmem>>, vector<1x4x8xf32>
    %21 = vector.shape_cast %20 : vector<1x4x8xf32> to vector<4x8xf32>
    %cst_25 = arith.constant dense<0.000000e+00> : vector<32x8xf32>
    %22 = tpu.matmul %19, %21, %cst_25 {dimension_numbers = #tpu.dot_dimension_numbers<[1], [0], [0], [1], [0, 0, 1, 1], [], []>} : vector<32x4xf32>, vector<4x8xf32>, vector<32x8xf32> -> vector<32x8xf32>
    %23 = arith.addf %16, %22 : vector<32x8xf32>
    %cst_26 = arith.constant dense<0.000000e+00> : vector<8xf32>
    %24 = vector.multi_reduction <add>, %23, %cst_26 [0] : vector<32x8xf32> to vector<8xf32>
    %25 = vector.shape_cast %24 : vector<8xf32> to vector<1x8xf32>
    %26 = arith.mulf %23, %23 : vector<32x8xf32>
    %cst_27 = arith.constant dense<0.000000e+00> : vector<8xf32>
    %27 = vector.multi_reduction <add>, %26, %cst_27 [0] : vector<32x8xf32> to vector<8xf32>
    %28 = vector.shape_cast %27 : vector<8xf32> to vector<1x8xf32>
    %c0_28 = arith.constant 0 : index
    %c0_29 = arith.constant 0 : index
    %c0_30 = arith.constant 0 : index
    %29 = vector.load %arg1[%c0_28, %c0_29, %c0_30] : memref<3x32x64xf32, #tpu.memory_space<vmem>>, vector<1x32x64xf32>
    %30 = vector.shape_cast %29 : vector<1x32x64xf32> to vector<32x64xf32>
    %cst_31 = arith.constant dense<0.000000e+00> : vector<32x4xf32>
    %31 = tpu.matmul %30, %3, %cst_31 {dimension_numbers = #tpu.dot_dimension_numbers<[1], [0], [0], [1], [0, 0, 1, 1], [], []>} : vector<32x64xf32>, vector<64x4xf32>, vector<32x4xf32> -> vector<32x4xf32>
    %c0_32 = arith.constant 0 : index
    %c0_33 = arith.constant 0 : index
    %c0_34 = arith.constant 0 : index
    %32 = vector.load %arg2[%c0_32, %c0_33, %c0_34] : memref<3x4x8xf32, #tpu.memory_space<vmem>>, vector<1x4x8xf32>
    %33 = vector.shape_cast %32 : vector<1x4x8xf32> to vector<4x8xf32>
    %cst_35 = arith.constant dense<0.000000e+00> : vector<32x8xf32>
    %34 = tpu.matmul %31, %33, %cst_35 {dimension_numbers = #tpu.dot_dimension_numbers<[1], [0], [0], [1], [0, 0, 1, 1], [], []>} : vector<32x4xf32>, vector<4x8xf32>, vector<32x8xf32> -> vector<32x8xf32>
    %c1_36 = arith.constant 1 : index
    %c0_37 = arith.constant 0 : index
    %c0_38 = arith.constant 0 : index
    %35 = vector.load %arg1[%c1_36, %c0_37, %c0_38] : memref<3x32x64xf32, #tpu.memory_space<vmem>>, vector<1x32x64xf32>
    %36 = vector.shape_cast %35 : vector<1x32x64xf32> to vector<32x64xf32>
    %cst_39 = arith.constant dense<0.000000e+00> : vector<32x4xf32>
    %37 = tpu.matmul %36, %3, %cst_39 {dimension_numbers = #tpu.dot_dimension_numbers<[1], [0], [0], [1], [0, 0, 1, 1], [], []>} : vector<32x64xf32>, vector<64x4xf32>, vector<32x4xf32> -> vector<32x4xf32>
    %c1_40 = arith.constant 1 : index
    %c0_41 = arith.constant 0 : index
    %c0_42 = arith.constant 0 : index
    %38 = vector.load %arg2[%c1_40, %c0_41, %c0_42] : memref<3x4x8xf32, #tpu.memory_space<vmem>>, vector<1x4x8xf32>
    %39 = vector.shape_cast %38 : vector<1x4x8xf32> to vector<4x8xf32>
    %cst_43 = arith.constant dense<0.000000e+00> : vector<32x8xf32>
    %40 = tpu.matmul %37, %39, %cst_43 {dimension_numbers = #tpu.dot_dimension_numbers<[1], [0], [0], [1], [0, 0, 1, 1], [], []>} : vector<32x4xf32>, vector<4x8xf32>, vector<32x8xf32> -> vector<32x8xf32>
    %41 = arith.addf %34, %40 : vector<32x8xf32>
    %c2_44 = arith.constant 2 : index
    %c0_45 = arith.constant 0 : index
    %c0_46 = arith.constant 0 : index
    %42 = vector.load %arg1[%c2_44, %c0_45, %c0_46] : memref<3x32x64xf32, #tpu.memory_space<vmem>>, vector<1x32x64xf32>
    %43 = vector.shape_cast %42 : vector<1x32x64xf32> to vector<32x64xf32>
    %cst_47 = arith.constant dense<0.000000e+00> : vector<32x4xf32>
    %44 = tpu.matmul %43, %3, %cst_47 {dimension_numbers = #tpu.dot_dimension_numbers<[1], [0], [0], [1], [0, 0, 1, 1], [], []>} : vector<32x64xf32>, vector<64x4xf32>, vector<32x4xf32> -> vector<32x4xf32>
    %c2_48 = arith.constant 2 : index
    %c0_49 = arith.constant 0 : index
    %c0_50 = arith.constant 0 : index
    %45 = vector.load %arg2[%c2_48, %c0_49, %c0_50] : memref<3x4x8xf32, #tpu.memory_space<vmem>>, vector<1x4x8xf32>
    %46 = vector.shape_cast %45 : vector<1x4x8xf32> to vector<4x8xf32>
    %cst_51 = arith.constant dense<0.000000e+00> : vector<32x8xf32>
    %47 = tpu.matmul %44, %46, %cst_51 {dimension_numbers = #tpu.dot_dimension_numbers<[1], [0], [0], [1], [0, 0, 1, 1], [], []>} : vector<32x4xf32>, vector<4x8xf32>, vector<32x8xf32> -> vector<32x8xf32>
    %48 = arith.addf %41, %47 : vector<32x8xf32>
    %cst_52 = arith.constant dense<0.000000e+00> : vector<8xf32>
    %49 = vector.multi_reduction <add>, %48, %cst_52 [0] : vector<32x8xf32> to vector<8xf32>
    %50 = vector.shape_cast %49 : vector<8xf32> to vector<1x8xf32>
    %51 = arith.mulf %48, %48 : vector<32x8xf32>
    %cst_53 = arith.constant dense<0.000000e+00> : vector<8xf32>
    %52 = vector.multi_reduction <add>, %51, %cst_53 [0] : vector<32x8xf32> to vector<8xf32>
    %53 = vector.shape_cast %52 : vector<8xf32> to vector<1x8xf32>
    %54 = arith.addf %25, %50 : vector<1x8xf32>
    %55 = arith.addf %28, %53 : vector<1x8xf32>
    %cst_54 = arith.constant 1.562500e-02 : f32
    %56 = vector.broadcast %cst_54 : f32 to vector<1x8xf32>
    %57 = arith.mulf %54, %56 : vector<1x8xf32>
    %cst_55 = arith.constant 1.562500e-02 : f32
    %58 = vector.broadcast %cst_55 : f32 to vector<1x8xf32>
    %59 = arith.mulf %55, %58 : vector<1x8xf32>
    %60 = arith.mulf %57, %57 : vector<1x8xf32>
    %61 = arith.subf %59, %60 : vector<1x8xf32>
    %c0_56 = arith.constant 0 : index
    %c0_57 = arith.constant 0 : index
    %62 = vector.load %arg3[%c0_56, %c0_57] : memref<1x8xf32, #tpu.memory_space<vmem>>, vector<1x8xf32>
    %cst_58 = arith.constant 9.99999974E-6 : f32
    %63 = vector.broadcast %cst_58 : f32 to vector<1x8xf32>
    %64 = arith.addf %61, %63 : vector<1x8xf32>
    %65 = math.rsqrt %64 : vector<1x8xf32>
    %66 = arith.mulf %62, %65 : vector<1x8xf32>
    %c0_59 = arith.constant 0 : index
    %c0_60 = arith.constant 0 : index
    %67 = vector.load %arg4[%c0_59, %c0_60] : memref<1x8xf32, #tpu.memory_space<vmem>>, vector<1x8xf32>
    %68 = arith.mulf %57, %66 : vector<1x8xf32>
    %69 = arith.subf %67, %68 : vector<1x8xf32>
    %70 = vector.broadcast %66 : vector<1x8xf32> to vector<32x8xf32>
    %71 = arith.mulf %23, %70 : vector<32x8xf32>
    %72 = vector.broadcast %69 : vector<1x8xf32> to vector<32x8xf32>
    %73 = arith.addf %71, %72 : vector<32x8xf32>
    %cst_61 = arith.constant 0.000000e+00 : f32
    %74 = vector.broadcast %cst_61 : f32 to vector<32x8xf32>
    %75 = arith.maximumf %73, %74 : vector<32x8xf32>
    %76 = vector.broadcast %66 : vector<1x8xf32> to vector<32x8xf32>
    %77 = arith.mulf %48, %76 : vector<32x8xf32>
    %78 = vector.broadcast %69 : vector<1x8xf32> to vector<32x8xf32>
    %79 = arith.addf %77, %78 : vector<32x8xf32>
    %cst_62 = arith.constant 0.000000e+00 : f32
    %80 = vector.broadcast %cst_62 : f32 to vector<32x8xf32>
    %81 = arith.maximumf %79, %80 : vector<32x8xf32>
    %c0_63 = arith.constant 0 : index
    %c0_64 = arith.constant 0 : index
    %c0_65 = arith.constant 0 : index
    %82 = vector.load %arg5[%c0_63, %c0_64, %c0_65] : memref<3x16x32xf32, #tpu.memory_space<vmem>>, vector<1x16x32xf32>
    %83 = vector.shape_cast %82 : vector<1x16x32xf32> to vector<16x32xf32>
    %cst_66 = arith.constant dense<0.000000e+00> : vector<16x8xf32>
    %84 = tpu.matmul %83, %75, %cst_66 {dimension_numbers = #tpu.dot_dimension_numbers<[1], [0], [0], [1], [0, 0, 1, 1], [], []>} : vector<16x32xf32>, vector<32x8xf32>, vector<16x8xf32> -> vector<16x8xf32>
    %c0_67 = arith.constant 0 : index
    %c0_68 = arith.constant 0 : index
    %c0_69 = arith.constant 0 : index
    %85 = vector.load %arg6[%c0_67, %c0_68, %c0_69] : memref<3x8x16xf32, #tpu.memory_space<vmem>>, vector<1x8x16xf32>
    %86 = vector.shape_cast %85 : vector<1x8x16xf32> to vector<8x16xf32>
    %cst_70 = arith.constant dense<0.000000e+00> : vector<16x16xf32>
    %87 = tpu.matmul %84, %86, %cst_70 {dimension_numbers = #tpu.dot_dimension_numbers<[1], [0], [0], [1], [0, 0, 1, 1], [], []>} : vector<16x8xf32>, vector<8x16xf32>, vector<16x16xf32> -> vector<16x16xf32>
    %c1_71 = arith.constant 1 : index
    %c0_72 = arith.constant 0 : index
    %c0_73 = arith.constant 0 : index
    %88 = vector.load %arg5[%c1_71, %c0_72, %c0_73] : memref<3x16x32xf32, #tpu.memory_space<vmem>>, vector<1x16x32xf32>
    %89 = vector.shape_cast %88 : vector<1x16x32xf32> to vector<16x32xf32>
    %cst_74 = arith.constant dense<0.000000e+00> : vector<16x8xf32>
    %90 = tpu.matmul %89, %75, %cst_74 {dimension_numbers = #tpu.dot_dimension_numbers<[1], [0], [0], [1], [0, 0, 1, 1], [], []>} : vector<16x32xf32>, vector<32x8xf32>, vector<16x8xf32> -> vector<16x8xf32>
    %c1_75 = arith.constant 1 : index
    %c0_76 = arith.constant 0 : index
    %c0_77 = arith.constant 0 : index
    %91 = vector.load %arg6[%c1_75, %c0_76, %c0_77] : memref<3x8x16xf32, #tpu.memory_space<vmem>>, vector<1x8x16xf32>
    %92 = vector.shape_cast %91 : vector<1x8x16xf32> to vector<8x16xf32>
    %cst_78 = arith.constant dense<0.000000e+00> : vector<16x16xf32>
    %93 = tpu.matmul %90, %92, %cst_78 {dimension_numbers = #tpu.dot_dimension_numbers<[1], [0], [0], [1], [0, 0, 1, 1], [], []>} : vector<16x8xf32>, vector<8x16xf32>, vector<16x16xf32> -> vector<16x16xf32>
    %94 = arith.addf %87, %93 : vector<16x16xf32>
    %c2_79 = arith.constant 2 : index
    %c0_80 = arith.constant 0 : index
    %c0_81 = arith.constant 0 : index
    %95 = vector.load %arg5[%c2_79, %c0_80, %c0_81] : memref<3x16x32xf32, #tpu.memory_space<vmem>>, vector<1x16x32xf32>
    %96 = vector.shape_cast %95 : vector<1x16x32xf32> to vector<16x32xf32>
    %cst_82 = arith.constant dense<0.000000e+00> : vector<16x8xf32>
    %97 = tpu.matmul %96, %75, %cst_82 {dimension_numbers = #tpu.dot_dimension_numbers<[1], [0], [0], [1], [0, 0, 1, 1], [], []>} : vector<16x32xf32>, vector<32x8xf32>, vector<16x8xf32> -> vector<16x8xf32>
    %c2_83 = arith.constant 2 : index
    %c0_84 = arith.constant 0 : index
    %c0_85 = arith.constant 0 : index
    %98 = vector.load %arg6[%c2_83, %c0_84, %c0_85] : memref<3x8x16xf32, #tpu.memory_space<vmem>>, vector<1x8x16xf32>
    %99 = vector.shape_cast %98 : vector<1x8x16xf32> to vector<8x16xf32>
    %cst_86 = arith.constant dense<0.000000e+00> : vector<16x16xf32>
    %100 = tpu.matmul %97, %99, %cst_86 {dimension_numbers = #tpu.dot_dimension_numbers<[1], [0], [0], [1], [0, 0, 1, 1], [], []>} : vector<16x8xf32>, vector<8x16xf32>, vector<16x16xf32> -> vector<16x16xf32>
    %101 = arith.addf %94, %100 : vector<16x16xf32>
    %cst_87 = arith.constant dense<0.000000e+00> : vector<16xf32>
    %102 = vector.multi_reduction <add>, %101, %cst_87 [0] : vector<16x16xf32> to vector<16xf32>
    %103 = vector.shape_cast %102 : vector<16xf32> to vector<1x16xf32>
    %104 = arith.mulf %101, %101 : vector<16x16xf32>
    %cst_88 = arith.constant dense<0.000000e+00> : vector<16xf32>
    %105 = vector.multi_reduction <add>, %104, %cst_88 [0] : vector<16x16xf32> to vector<16xf32>
    %106 = vector.shape_cast %105 : vector<16xf32> to vector<1x16xf32>
    %c0_89 = arith.constant 0 : index
    %c0_90 = arith.constant 0 : index
    %c0_91 = arith.constant 0 : index
    %107 = vector.load %arg5[%c0_89, %c0_90, %c0_91] : memref<3x16x32xf32, #tpu.memory_space<vmem>>, vector<1x16x32xf32>
    %108 = vector.shape_cast %107 : vector<1x16x32xf32> to vector<16x32xf32>
    %cst_92 = arith.constant dense<0.000000e+00> : vector<16x8xf32>
    %109 = tpu.matmul %108, %81, %cst_92 {dimension_numbers = #tpu.dot_dimension_numbers<[1], [0], [0], [1], [0, 0, 1, 1], [], []>} : vector<16x32xf32>, vector<32x8xf32>, vector<16x8xf32> -> vector<16x8xf32>
    %c0_93 = arith.constant 0 : index
    %c0_94 = arith.constant 0 : index
    %c0_95 = arith.constant 0 : index
    %110 = vector.load %arg6[%c0_93, %c0_94, %c0_95] : memref<3x8x16xf32, #tpu.memory_space<vmem>>, vector<1x8x16xf32>
    %111 = vector.shape_cast %110 : vector<1x8x16xf32> to vector<8x16xf32>
    %cst_96 = arith.constant dense<0.000000e+00> : vector<16x16xf32>
    %112 = tpu.matmul %109, %111, %cst_96 {dimension_numbers = #tpu.dot_dimension_numbers<[1], [0], [0], [1], [0, 0, 1, 1], [], []>} : vector<16x8xf32>, vector<8x16xf32>, vector<16x16xf32> -> vector<16x16xf32>
    %c1_97 = arith.constant 1 : index
    %c0_98 = arith.constant 0 : index
    %c0_99 = arith.constant 0 : index
    %113 = vector.load %arg5[%c1_97, %c0_98, %c0_99] : memref<3x16x32xf32, #tpu.memory_space<vmem>>, vector<1x16x32xf32>
    %114 = vector.shape_cast %113 : vector<1x16x32xf32> to vector<16x32xf32>
    %cst_100 = arith.constant dense<0.000000e+00> : vector<16x8xf32>
    %115 = tpu.matmul %114, %81, %cst_100 {dimension_numbers = #tpu.dot_dimension_numbers<[1], [0], [0], [1], [0, 0, 1, 1], [], []>} : vector<16x32xf32>, vector<32x8xf32>, vector<16x8xf32> -> vector<16x8xf32>
    %c1_101 = arith.constant 1 : index
    %c0_102 = arith.constant 0 : index
    %c0_103 = arith.constant 0 : index
    %116 = vector.load %arg6[%c1_101, %c0_102, %c0_103] : memref<3x8x16xf32, #tpu.memory_space<vmem>>, vector<1x8x16xf32>
    %117 = vector.shape_cast %116 : vector<1x8x16xf32> to vector<8x16xf32>
    %cst_104 = arith.constant dense<0.000000e+00> : vector<16x16xf32>
    %118 = tpu.matmul %115, %117, %cst_104 {dimension_numbers = #tpu.dot_dimension_numbers<[1], [0], [0], [1], [0, 0, 1, 1], [], []>} : vector<16x8xf32>, vector<8x16xf32>, vector<16x16xf32> -> vector<16x16xf32>
    %119 = arith.addf %112, %118 : vector<16x16xf32>
    %c2_105 = arith.constant 2 : index
    %c0_106 = arith.constant 0 : index
    %c0_107 = arith.constant 0 : index
    %120 = vector.load %arg5[%c2_105, %c0_106, %c0_107] : memref<3x16x32xf32, #tpu.memory_space<vmem>>, vector<1x16x32xf32>
    %121 = vector.shape_cast %120 : vector<1x16x32xf32> to vector<16x32xf32>
    %cst_108 = arith.constant dense<0.000000e+00> : vector<16x8xf32>
    %122 = tpu.matmul %121, %81, %cst_108 {dimension_numbers = #tpu.dot_dimension_numbers<[1], [0], [0], [1], [0, 0, 1, 1], [], []>} : vector<16x32xf32>, vector<32x8xf32>, vector<16x8xf32> -> vector<16x8xf32>
    %c2_109 = arith.constant 2 : index
    %c0_110 = arith.constant 0 : index
    %c0_111 = arith.constant 0 : index
    %123 = vector.load %arg6[%c2_109, %c0_110, %c0_111] : memref<3x8x16xf32, #tpu.memory_space<vmem>>, vector<1x8x16xf32>
    %124 = vector.shape_cast %123 : vector<1x8x16xf32> to vector<8x16xf32>
    %cst_112 = arith.constant dense<0.000000e+00> : vector<16x16xf32>
    %125 = tpu.matmul %122, %124, %cst_112 {dimension_numbers = #tpu.dot_dimension_numbers<[1], [0], [0], [1], [0, 0, 1, 1], [], []>} : vector<16x8xf32>, vector<8x16xf32>, vector<16x16xf32> -> vector<16x16xf32>
    %126 = arith.addf %119, %125 : vector<16x16xf32>
    %cst_113 = arith.constant dense<0.000000e+00> : vector<16xf32>
    %127 = vector.multi_reduction <add>, %126, %cst_113 [0] : vector<16x16xf32> to vector<16xf32>
    %128 = vector.shape_cast %127 : vector<16xf32> to vector<1x16xf32>
    %129 = arith.mulf %126, %126 : vector<16x16xf32>
    %cst_114 = arith.constant dense<0.000000e+00> : vector<16xf32>
    %130 = vector.multi_reduction <add>, %129, %cst_114 [0] : vector<16x16xf32> to vector<16xf32>
    %131 = vector.shape_cast %130 : vector<16xf32> to vector<1x16xf32>
    %132 = arith.addf %103, %128 : vector<1x16xf32>
    %133 = arith.addf %106, %131 : vector<1x16xf32>
    %cst_115 = arith.constant 3.125000e-02 : f32
    %134 = vector.broadcast %cst_115 : f32 to vector<1x16xf32>
    %135 = arith.mulf %132, %134 : vector<1x16xf32>
    %cst_116 = arith.constant 3.125000e-02 : f32
    %136 = vector.broadcast %cst_116 : f32 to vector<1x16xf32>
    %137 = arith.mulf %133, %136 : vector<1x16xf32>
    %138 = arith.mulf %135, %135 : vector<1x16xf32>
    %139 = arith.subf %137, %138 : vector<1x16xf32>
    %c0_117 = arith.constant 0 : index
    %c0_118 = arith.constant 0 : index
    %140 = vector.load %arg7[%c0_117, %c0_118] : memref<1x16xf32, #tpu.memory_space<vmem>>, vector<1x16xf32>
    %cst_119 = arith.constant 9.99999974E-6 : f32
    %141 = vector.broadcast %cst_119 : f32 to vector<1x16xf32>
    %142 = arith.addf %139, %141 : vector<1x16xf32>
    %143 = math.rsqrt %142 : vector<1x16xf32>
    %144 = arith.mulf %140, %143 : vector<1x16xf32>
    %c0_120 = arith.constant 0 : index
    %c0_121 = arith.constant 0 : index
    %145 = vector.load %arg8[%c0_120, %c0_121] : memref<1x16xf32, #tpu.memory_space<vmem>>, vector<1x16xf32>
    %146 = arith.mulf %135, %144 : vector<1x16xf32>
    %147 = arith.subf %145, %146 : vector<1x16xf32>
    %148 = vector.broadcast %144 : vector<1x16xf32> to vector<16x16xf32>
    %149 = arith.mulf %101, %148 : vector<16x16xf32>
    %150 = vector.broadcast %147 : vector<1x16xf32> to vector<16x16xf32>
    %151 = arith.addf %149, %150 : vector<16x16xf32>
    %cst_122 = arith.constant 0.000000e+00 : f32
    %152 = vector.broadcast %cst_122 : f32 to vector<16x16xf32>
    %153 = arith.maximumf %151, %152 : vector<16x16xf32>
    %154 = vector.broadcast %144 : vector<1x16xf32> to vector<16x16xf32>
    %155 = arith.mulf %126, %154 : vector<16x16xf32>
    %156 = vector.broadcast %147 : vector<1x16xf32> to vector<16x16xf32>
    %157 = arith.addf %155, %156 : vector<16x16xf32>
    %cst_123 = arith.constant 0.000000e+00 : f32
    %158 = vector.broadcast %cst_123 : f32 to vector<16x16xf32>
    %159 = arith.maximumf %157, %158 : vector<16x16xf32>
    %c0_124 = arith.constant 0 : index
    %c0_125 = arith.constant 0 : index
    %c0_126 = arith.constant 0 : index
    %160 = vector.load %arg9[%c0_124, %c0_125, %c0_126] : memref<3x8x16xf32, #tpu.memory_space<vmem>>, vector<1x8x16xf32>
    %161 = vector.shape_cast %160 : vector<1x8x16xf32> to vector<8x16xf32>
    %cst_127 = arith.constant dense<0.000000e+00> : vector<8x16xf32>
    %162 = tpu.matmul %161, %153, %cst_127 {dimension_numbers = #tpu.dot_dimension_numbers<[1], [0], [0], [1], [0, 0, 1, 1], [], []>} : vector<8x16xf32>, vector<16x16xf32>, vector<8x16xf32> -> vector<8x16xf32>
    %c0_128 = arith.constant 0 : index
    %c0_129 = arith.constant 0 : index
    %c0_130 = arith.constant 0 : index
    %163 = vector.load %arg10[%c0_128, %c0_129, %c0_130] : memref<3x16x16xf32, #tpu.memory_space<vmem>>, vector<1x16x16xf32>
    %164 = vector.shape_cast %163 : vector<1x16x16xf32> to vector<16x16xf32>
    %cst_131 = arith.constant dense<0.000000e+00> : vector<8x16xf32>
    %165 = tpu.matmul %162, %164, %cst_131 {dimension_numbers = #tpu.dot_dimension_numbers<[1], [0], [0], [1], [0, 0, 1, 1], [], []>} : vector<8x16xf32>, vector<16x16xf32>, vector<8x16xf32> -> vector<8x16xf32>
    %c1_132 = arith.constant 1 : index
    %c0_133 = arith.constant 0 : index
    %c0_134 = arith.constant 0 : index
    %166 = vector.load %arg9[%c1_132, %c0_133, %c0_134] : memref<3x8x16xf32, #tpu.memory_space<vmem>>, vector<1x8x16xf32>
    %167 = vector.shape_cast %166 : vector<1x8x16xf32> to vector<8x16xf32>
    %cst_135 = arith.constant dense<0.000000e+00> : vector<8x16xf32>
    %168 = tpu.matmul %167, %153, %cst_135 {dimension_numbers = #tpu.dot_dimension_numbers<[1], [0], [0], [1], [0, 0, 1, 1], [], []>} : vector<8x16xf32>, vector<16x16xf32>, vector<8x16xf32> -> vector<8x16xf32>
    %c1_136 = arith.constant 1 : index
    %c0_137 = arith.constant 0 : index
    %c0_138 = arith.constant 0 : index
    %169 = vector.load %arg10[%c1_136, %c0_137, %c0_138] : memref<3x16x16xf32, #tpu.memory_space<vmem>>, vector<1x16x16xf32>
    %170 = vector.shape_cast %169 : vector<1x16x16xf32> to vector<16x16xf32>
    %cst_139 = arith.constant dense<0.000000e+00> : vector<8x16xf32>
    %171 = tpu.matmul %168, %170, %cst_139 {dimension_numbers = #tpu.dot_dimension_numbers<[1], [0], [0], [1], [0, 0, 1, 1], [], []>} : vector<8x16xf32>, vector<16x16xf32>, vector<8x16xf32> -> vector<8x16xf32>
    %172 = arith.addf %165, %171 : vector<8x16xf32>
    %c2_140 = arith.constant 2 : index
    %c0_141 = arith.constant 0 : index
    %c0_142 = arith.constant 0 : index
    %173 = vector.load %arg9[%c2_140, %c0_141, %c0_142] : memref<3x8x16xf32, #tpu.memory_space<vmem>>, vector<1x8x16xf32>
    %174 = vector.shape_cast %173 : vector<1x8x16xf32> to vector<8x16xf32>
    %cst_143 = arith.constant dense<0.000000e+00> : vector<8x16xf32>
    %175 = tpu.matmul %174, %153, %cst_143 {dimension_numbers = #tpu.dot_dimension_numbers<[1], [0], [0], [1], [0, 0, 1, 1], [], []>} : vector<8x16xf32>, vector<16x16xf32>, vector<8x16xf32> -> vector<8x16xf32>
    %c2_144 = arith.constant 2 : index
    %c0_145 = arith.constant 0 : index
    %c0_146 = arith.constant 0 : index
    %176 = vector.load %arg10[%c2_144, %c0_145, %c0_146] : memref<3x16x16xf32, #tpu.memory_space<vmem>>, vector<1x16x16xf32>
    %177 = vector.shape_cast %176 : vector<1x16x16xf32> to vector<16x16xf32>
    %cst_147 = arith.constant dense<0.000000e+00> : vector<8x16xf32>
    %178 = tpu.matmul %175, %177, %cst_147 {dimension_numbers = #tpu.dot_dimension_numbers<[1], [0], [0], [1], [0, 0, 1, 1], [], []>} : vector<8x16xf32>, vector<16x16xf32>, vector<8x16xf32> -> vector<8x16xf32>
    %179 = arith.addf %172, %178 : vector<8x16xf32>
    %cst_148 = arith.constant dense<0.000000e+00> : vector<16xf32>
    %180 = vector.multi_reduction <add>, %179, %cst_148 [0] : vector<8x16xf32> to vector<16xf32>
    %181 = vector.shape_cast %180 : vector<16xf32> to vector<1x16xf32>
    %182 = arith.mulf %179, %179 : vector<8x16xf32>
    %cst_149 = arith.constant dense<0.000000e+00> : vector<16xf32>
    %183 = vector.multi_reduction <add>, %182, %cst_149 [0] : vector<8x16xf32> to vector<16xf32>
    %184 = vector.shape_cast %183 : vector<16xf32> to vector<1x16xf32>
    %c0_150 = arith.constant 0 : index
    %c0_151 = arith.constant 0 : index
    %c0_152 = arith.constant 0 : index
    %185 = vector.load %arg9[%c0_150, %c0_151, %c0_152] : memref<3x8x16xf32, #tpu.memory_space<vmem>>, vector<1x8x16xf32>
    %186 = vector.shape_cast %185 : vector<1x8x16xf32> to vector<8x16xf32>
    %cst_153 = arith.constant dense<0.000000e+00> : vector<8x16xf32>
    %187 = tpu.matmul %186, %159, %cst_153 {dimension_numbers = #tpu.dot_dimension_numbers<[1], [0], [0], [1], [0, 0, 1, 1], [], []>} : vector<8x16xf32>, vector<16x16xf32>, vector<8x16xf32> -> vector<8x16xf32>
    %c0_154 = arith.constant 0 : index
    %c0_155 = arith.constant 0 : index
    %c0_156 = arith.constant 0 : index
    %188 = vector.load %arg10[%c0_154, %c0_155, %c0_156] : memref<3x16x16xf32, #tpu.memory_space<vmem>>, vector<1x16x16xf32>
    %189 = vector.shape_cast %188 : vector<1x16x16xf32> to vector<16x16xf32>
    %cst_157 = arith.constant dense<0.000000e+00> : vector<8x16xf32>
    %190 = tpu.matmul %187, %189, %cst_157 {dimension_numbers = #tpu.dot_dimension_numbers<[1], [0], [0], [1], [0, 0, 1, 1], [], []>} : vector<8x16xf32>, vector<16x16xf32>, vector<8x16xf32> -> vector<8x16xf32>
    %c1_158 = arith.constant 1 : index
    %c0_159 = arith.constant 0 : index
    %c0_160 = arith.constant 0 : index
    %191 = vector.load %arg9[%c1_158, %c0_159, %c0_160] : memref<3x8x16xf32, #tpu.memory_space<vmem>>, vector<1x8x16xf32>
    %192 = vector.shape_cast %191 : vector<1x8x16xf32> to vector<8x16xf32>
    %cst_161 = arith.constant dense<0.000000e+00> : vector<8x16xf32>
    %193 = tpu.matmul %192, %159, %cst_161 {dimension_numbers = #tpu.dot_dimension_numbers<[1], [0], [0], [1], [0, 0, 1, 1], [], []>} : vector<8x16xf32>, vector<16x16xf32>, vector<8x16xf32> -> vector<8x16xf32>
    %c1_162 = arith.constant 1 : index
    %c0_163 = arith.constant 0 : index
    %c0_164 = arith.constant 0 : index
    %194 = vector.load %arg10[%c1_162, %c0_163, %c0_164] : memref<3x16x16xf32, #tpu.memory_space<vmem>>, vector<1x16x16xf32>
    %195 = vector.shape_cast %194 : vector<1x16x16xf32> to vector<16x16xf32>
    %cst_165 = arith.constant dense<0.000000e+00> : vector<8x16xf32>
    %196 = tpu.matmul %193, %195, %cst_165 {dimension_numbers = #tpu.dot_dimension_numbers<[1], [0], [0], [1], [0, 0, 1, 1], [], []>} : vector<8x16xf32>, vector<16x16xf32>, vector<8x16xf32> -> vector<8x16xf32>
    %197 = arith.addf %190, %196 : vector<8x16xf32>
    %c2_166 = arith.constant 2 : index
    %c0_167 = arith.constant 0 : index
    %c0_168 = arith.constant 0 : index
    %198 = vector.load %arg9[%c2_166, %c0_167, %c0_168] : memref<3x8x16xf32, #tpu.memory_space<vmem>>, vector<1x8x16xf32>
    %199 = vector.shape_cast %198 : vector<1x8x16xf32> to vector<8x16xf32>
    %cst_169 = arith.constant dense<0.000000e+00> : vector<8x16xf32>
    %200 = tpu.matmul %199, %159, %cst_169 {dimension_numbers = #tpu.dot_dimension_numbers<[1], [0], [0], [1], [0, 0, 1, 1], [], []>} : vector<8x16xf32>, vector<16x16xf32>, vector<8x16xf32> -> vector<8x16xf32>
    %c2_170 = arith.constant 2 : index
    %c0_171 = arith.constant 0 : index
    %c0_172 = arith.constant 0 : index
    %201 = vector.load %arg10[%c2_170, %c0_171, %c0_172] : memref<3x16x16xf32, #tpu.memory_space<vmem>>, vector<1x16x16xf32>
    %202 = vector.shape_cast %201 : vector<1x16x16xf32> to vector<16x16xf32>
    %cst_173 = arith.constant dense<0.000000e+00> : vector<8x16xf32>
    %203 = tpu.matmul %200, %202, %cst_173 {dimension_numbers = #tpu.dot_dimension_numbers<[1], [0], [0], [1], [0, 0, 1, 1], [], []>} : vector<8x16xf32>, vector<16x16xf32>, vector<8x16xf32> -> vector<8x16xf32>
    %204 = arith.addf %197, %203 : vector<8x16xf32>
    %cst_174 = arith.constant dense<0.000000e+00> : vector<16xf32>
    %205 = vector.multi_reduction <add>, %204, %cst_174 [0] : vector<8x16xf32> to vector<16xf32>
    %206 = vector.shape_cast %205 : vector<16xf32> to vector<1x16xf32>
    %207 = arith.mulf %204, %204 : vector<8x16xf32>
    %cst_175 = arith.constant dense<0.000000e+00> : vector<16xf32>
    %208 = vector.multi_reduction <add>, %207, %cst_175 [0] : vector<8x16xf32> to vector<16xf32>
    %209 = vector.shape_cast %208 : vector<16xf32> to vector<1x16xf32>
    %210 = arith.addf %181, %206 : vector<1x16xf32>
    %211 = arith.addf %184, %209 : vector<1x16xf32>
    %cst_176 = arith.constant 6.250000e-02 : f32
    %212 = vector.broadcast %cst_176 : f32 to vector<1x16xf32>
    %213 = arith.mulf %210, %212 : vector<1x16xf32>
    %cst_177 = arith.constant 6.250000e-02 : f32
    %214 = vector.broadcast %cst_177 : f32 to vector<1x16xf32>
    %215 = arith.mulf %211, %214 : vector<1x16xf32>
    %216 = arith.mulf %213, %213 : vector<1x16xf32>
    %217 = arith.subf %215, %216 : vector<1x16xf32>
    %c0_178 = arith.constant 0 : index
    %c0_179 = arith.constant 0 : index
    %218 = vector.load %arg11[%c0_178, %c0_179] : memref<1x16xf32, #tpu.memory_space<vmem>>, vector<1x16xf32>
    %cst_180 = arith.constant 9.99999974E-6 : f32
    %219 = vector.broadcast %cst_180 : f32 to vector<1x16xf32>
    %220 = arith.addf %217, %219 : vector<1x16xf32>
    %221 = math.rsqrt %220 : vector<1x16xf32>
    %222 = arith.mulf %218, %221 : vector<1x16xf32>
    %c0_181 = arith.constant 0 : index
    %c0_182 = arith.constant 0 : index
    %223 = vector.load %arg12[%c0_181, %c0_182] : memref<1x16xf32, #tpu.memory_space<vmem>>, vector<1x16xf32>
    %224 = arith.mulf %213, %222 : vector<1x16xf32>
    %225 = arith.subf %223, %224 : vector<1x16xf32>
    %226 = vector.broadcast %222 : vector<1x16xf32> to vector<8x16xf32>
    %227 = arith.mulf %179, %226 : vector<8x16xf32>
    %228 = vector.broadcast %225 : vector<1x16xf32> to vector<8x16xf32>
    %229 = arith.addf %227, %228 : vector<8x16xf32>
    %cst_183 = arith.constant 0.000000e+00 : f32
    %230 = vector.broadcast %cst_183 : f32 to vector<8x16xf32>
    %231 = arith.maximumf %229, %230 : vector<8x16xf32>
    %232 = vector.broadcast %222 : vector<1x16xf32> to vector<8x16xf32>
    %233 = arith.mulf %204, %232 : vector<8x16xf32>
    %234 = vector.broadcast %225 : vector<1x16xf32> to vector<8x16xf32>
    %235 = arith.addf %233, %234 : vector<8x16xf32>
    %cst_184 = arith.constant 0.000000e+00 : f32
    %236 = vector.broadcast %cst_184 : f32 to vector<8x16xf32>
    %237 = arith.maximumf %235, %236 : vector<8x16xf32>
    %c0_185 = arith.constant 0 : index
    %c0_186 = arith.constant 0 : index
    %c0_187 = arith.constant 0 : index
    %238 = vector.load %arg13[%c0_185, %c0_186, %c0_187] : memref<3x4x8xf32, #tpu.memory_space<vmem>>, vector<1x4x8xf32>
    %239 = vector.shape_cast %238 : vector<1x4x8xf32> to vector<4x8xf32>
    %cst_188 = arith.constant dense<0.000000e+00> : vector<4x16xf32>
    %240 = tpu.matmul %239, %231, %cst_188 {dimension_numbers = #tpu.dot_dimension_numbers<[1], [0], [0], [1], [0, 0, 1, 1], [], []>} : vector<4x8xf32>, vector<8x16xf32>, vector<4x16xf32> -> vector<4x16xf32>
    %c0_189 = arith.constant 0 : index
    %c0_190 = arith.constant 0 : index
    %c0_191 = arith.constant 0 : index
    %241 = vector.load %arg14[%c0_189, %c0_190, %c0_191] : memref<3x16x32xf32, #tpu.memory_space<vmem>>, vector<1x16x32xf32>
    %242 = vector.shape_cast %241 : vector<1x16x32xf32> to vector<16x32xf32>
    %cst_192 = arith.constant dense<0.000000e+00> : vector<4x32xf32>
    %243 = tpu.matmul %240, %242, %cst_192 {dimension_numbers = #tpu.dot_dimension_numbers<[1], [0], [0], [1], [0, 0, 1, 1], [], []>} : vector<4x16xf32>, vector<16x32xf32>, vector<4x32xf32> -> vector<4x32xf32>
    %c1_193 = arith.constant 1 : index
    %c0_194 = arith.constant 0 : index
    %c0_195 = arith.constant 0 : index
    %244 = vector.load %arg13[%c1_193, %c0_194, %c0_195] : memref<3x4x8xf32, #tpu.memory_space<vmem>>, vector<1x4x8xf32>
    %245 = vector.shape_cast %244 : vector<1x4x8xf32> to vector<4x8xf32>
    %cst_196 = arith.constant dense<0.000000e+00> : vector<4x16xf32>
    %246 = tpu.matmul %245, %231, %cst_196 {dimension_numbers = #tpu.dot_dimension_numbers<[1], [0], [0], [1], [0, 0, 1, 1], [], []>} : vector<4x8xf32>, vector<8x16xf32>, vector<4x16xf32> -> vector<4x16xf32>
    %c1_197 = arith.constant 1 : index
    %c0_198 = arith.constant 0 : index
    %c0_199 = arith.constant 0 : index
    %247 = vector.load %arg14[%c1_197, %c0_198, %c0_199] : memref<3x16x32xf32, #tpu.memory_space<vmem>>, vector<1x16x32xf32>
    %248 = vector.shape_cast %247 : vector<1x16x32xf32> to vector<16x32xf32>
    %cst_200 = arith.constant dense<0.000000e+00> : vector<4x32xf32>
    %249 = tpu.matmul %246, %248, %cst_200 {dimension_numbers = #tpu.dot_dimension_numbers<[1], [0], [0], [1], [0, 0, 1, 1], [], []>} : vector<4x16xf32>, vector<16x32xf32>, vector<4x32xf32> -> vector<4x32xf32>
    %250 = arith.addf %243, %249 : vector<4x32xf32>
    %c2_201 = arith.constant 2 : index
    %c0_202 = arith.constant 0 : index
    %c0_203 = arith.constant 0 : index
    %251 = vector.load %arg13[%c2_201, %c0_202, %c0_203] : memref<3x4x8xf32, #tpu.memory_space<vmem>>, vector<1x4x8xf32>
    %252 = vector.shape_cast %251 : vector<1x4x8xf32> to vector<4x8xf32>
    %cst_204 = arith.constant dense<0.000000e+00> : vector<4x16xf32>
    %253 = tpu.matmul %252, %231, %cst_204 {dimension_numbers = #tpu.dot_dimension_numbers<[1], [0], [0], [1], [0, 0, 1, 1], [], []>} : vector<4x8xf32>, vector<8x16xf32>, vector<4x16xf32> -> vector<4x16xf32>
    %c2_205 = arith.constant 2 : index
    %c0_206 = arith.constant 0 : index
    %c0_207 = arith.constant 0 : index
    %254 = vector.load %arg14[%c2_205, %c0_206, %c0_207] : memref<3x16x32xf32, #tpu.memory_space<vmem>>, vector<1x16x32xf32>
    %255 = vector.shape_cast %254 : vector<1x16x32xf32> to vector<16x32xf32>
    %cst_208 = arith.constant dense<0.000000e+00> : vector<4x32xf32>
    %256 = tpu.matmul %253, %255, %cst_208 {dimension_numbers = #tpu.dot_dimension_numbers<[1], [0], [0], [1], [0, 0, 1, 1], [], []>} : vector<4x16xf32>, vector<16x32xf32>, vector<4x32xf32> -> vector<4x32xf32>
    %257 = arith.addf %250, %256 : vector<4x32xf32>
    %cst_209 = arith.constant dense<0.000000e+00> : vector<32xf32>
    %258 = vector.multi_reduction <add>, %257, %cst_209 [0] : vector<4x32xf32> to vector<32xf32>
    %259 = vector.shape_cast %258 : vector<32xf32> to vector<1x32xf32>
    %260 = arith.mulf %257, %257 : vector<4x32xf32>
    %cst_210 = arith.constant dense<0.000000e+00> : vector<32xf32>
    %261 = vector.multi_reduction <add>, %260, %cst_210 [0] : vector<4x32xf32> to vector<32xf32>
    %262 = vector.shape_cast %261 : vector<32xf32> to vector<1x32xf32>
    %c0_211 = arith.constant 0 : index
    %c0_212 = arith.constant 0 : index
    %c0_213 = arith.constant 0 : index
    %263 = vector.load %arg13[%c0_211, %c0_212, %c0_213] : memref<3x4x8xf32, #tpu.memory_space<vmem>>, vector<1x4x8xf32>
    %264 = vector.shape_cast %263 : vector<1x4x8xf32> to vector<4x8xf32>
    %cst_214 = arith.constant dense<0.000000e+00> : vector<4x16xf32>
    %265 = tpu.matmul %264, %237, %cst_214 {dimension_numbers = #tpu.dot_dimension_numbers<[1], [0], [0], [1], [0, 0, 1, 1], [], []>} : vector<4x8xf32>, vector<8x16xf32>, vector<4x16xf32> -> vector<4x16xf32>
    %c0_215 = arith.constant 0 : index
    %c0_216 = arith.constant 0 : index
    %c0_217 = arith.constant 0 : index
    %266 = vector.load %arg14[%c0_215, %c0_216, %c0_217] : memref<3x16x32xf32, #tpu.memory_space<vmem>>, vector<1x16x32xf32>
    %267 = vector.shape_cast %266 : vector<1x16x32xf32> to vector<16x32xf32>
    %cst_218 = arith.constant dense<0.000000e+00> : vector<4x32xf32>
    %268 = tpu.matmul %265, %267, %cst_218 {dimension_numbers = #tpu.dot_dimension_numbers<[1], [0], [0], [1], [0, 0, 1, 1], [], []>} : vector<4x16xf32>, vector<16x32xf32>, vector<4x32xf32> -> vector<4x32xf32>
    %c1_219 = arith.constant 1 : index
    %c0_220 = arith.constant 0 : index
    %c0_221 = arith.constant 0 : index
    %269 = vector.load %arg13[%c1_219, %c0_220, %c0_221] : memref<3x4x8xf32, #tpu.memory_space<vmem>>, vector<1x4x8xf32>
    %270 = vector.shape_cast %269 : vector<1x4x8xf32> to vector<4x8xf32>
    %cst_222 = arith.constant dense<0.000000e+00> : vector<4x16xf32>
    %271 = tpu.matmul %270, %237, %cst_222 {dimension_numbers = #tpu.dot_dimension_numbers<[1], [0], [0], [1], [0, 0, 1, 1], [], []>} : vector<4x8xf32>, vector<8x16xf32>, vector<4x16xf32> -> vector<4x16xf32>
    %c1_223 = arith.constant 1 : index
    %c0_224 = arith.constant 0 : index
    %c0_225 = arith.constant 0 : index
    %272 = vector.load %arg14[%c1_223, %c0_224, %c0_225] : memref<3x16x32xf32, #tpu.memory_space<vmem>>, vector<1x16x32xf32>
    %273 = vector.shape_cast %272 : vector<1x16x32xf32> to vector<16x32xf32>
    %cst_226 = arith.constant dense<0.000000e+00> : vector<4x32xf32>
    %274 = tpu.matmul %271, %273, %cst_226 {dimension_numbers = #tpu.dot_dimension_numbers<[1], [0], [0], [1], [0, 0, 1, 1], [], []>} : vector<4x16xf32>, vector<16x32xf32>, vector<4x32xf32> -> vector<4x32xf32>
    %275 = arith.addf %268, %274 : vector<4x32xf32>
    %c2_227 = arith.constant 2 : index
    %c0_228 = arith.constant 0 : index
    %c0_229 = arith.constant 0 : index
    %276 = vector.load %arg13[%c2_227, %c0_228, %c0_229] : memref<3x4x8xf32, #tpu.memory_space<vmem>>, vector<1x4x8xf32>
    %277 = vector.shape_cast %276 : vector<1x4x8xf32> to vector<4x8xf32>
    %cst_230 = arith.constant dense<0.000000e+00> : vector<4x16xf32>
    %278 = tpu.matmul %277, %237, %cst_230 {dimension_numbers = #tpu.dot_dimension_numbers<[1], [0], [0], [1], [0, 0, 1, 1], [], []>} : vector<4x8xf32>, vector<8x16xf32>, vector<4x16xf32> -> vector<4x16xf32>
    %c2_231 = arith.constant 2 : index
    %c0_232 = arith.constant 0 : index
    %c0_233 = arith.constant 0 : index
    %279 = vector.load %arg14[%c2_231, %c0_232, %c0_233] : memref<3x16x32xf32, #tpu.memory_space<vmem>>, vector<1x16x32xf32>
    %280 = vector.shape_cast %279 : vector<1x16x32xf32> to vector<16x32xf32>
    %cst_234 = arith.constant dense<0.000000e+00> : vector<4x32xf32>
    %281 = tpu.matmul %278, %280, %cst_234 {dimension_numbers = #tpu.dot_dimension_numbers<[1], [0], [0], [1], [0, 0, 1, 1], [], []>} : vector<4x16xf32>, vector<16x32xf32>, vector<4x32xf32> -> vector<4x32xf32>
    %282 = arith.addf %275, %281 : vector<4x32xf32>
    %cst_235 = arith.constant dense<0.000000e+00> : vector<32xf32>
    %283 = vector.multi_reduction <add>, %282, %cst_235 [0] : vector<4x32xf32> to vector<32xf32>
    %284 = vector.shape_cast %283 : vector<32xf32> to vector<1x32xf32>
    %285 = arith.mulf %282, %282 : vector<4x32xf32>
    %cst_236 = arith.constant dense<0.000000e+00> : vector<32xf32>
    %286 = vector.multi_reduction <add>, %285, %cst_236 [0] : vector<4x32xf32> to vector<32xf32>
    %287 = vector.shape_cast %286 : vector<32xf32> to vector<1x32xf32>
    %288 = arith.addf %259, %284 : vector<1x32xf32>
    %289 = arith.addf %262, %287 : vector<1x32xf32>
    %cst_237 = arith.constant 1.250000e-01 : f32
    %290 = vector.broadcast %cst_237 : f32 to vector<1x32xf32>
    %291 = arith.mulf %288, %290 : vector<1x32xf32>
    %cst_238 = arith.constant 1.250000e-01 : f32
    %292 = vector.broadcast %cst_238 : f32 to vector<1x32xf32>
    %293 = arith.mulf %289, %292 : vector<1x32xf32>
    %294 = arith.mulf %291, %291 : vector<1x32xf32>
    %295 = arith.subf %293, %294 : vector<1x32xf32>
    %c0_239 = arith.constant 0 : index
    %c0_240 = arith.constant 0 : index
    %296 = vector.load %arg15[%c0_239, %c0_240] : memref<1x32xf32, #tpu.memory_space<vmem>>, vector<1x32xf32>
    %cst_241 = arith.constant 9.99999974E-6 : f32
    %297 = vector.broadcast %cst_241 : f32 to vector<1x32xf32>
    %298 = arith.addf %295, %297 : vector<1x32xf32>
    %299 = math.rsqrt %298 : vector<1x32xf32>
    %300 = arith.mulf %296, %299 : vector<1x32xf32>
    %c0_242 = arith.constant 0 : index
    %c0_243 = arith.constant 0 : index
    %301 = vector.load %arg16[%c0_242, %c0_243] : memref<1x32xf32, #tpu.memory_space<vmem>>, vector<1x32xf32>
    %302 = arith.mulf %291, %300 : vector<1x32xf32>
    %303 = arith.subf %301, %302 : vector<1x32xf32>
    %304 = vector.broadcast %300 : vector<1x32xf32> to vector<4x32xf32>
    %305 = arith.mulf %257, %304 : vector<4x32xf32>
    %306 = vector.broadcast %303 : vector<1x32xf32> to vector<4x32xf32>
    %307 = arith.addf %305, %306 : vector<4x32xf32>
    %cst_244 = arith.constant 0.000000e+00 : f32
    %308 = vector.broadcast %cst_244 : f32 to vector<4x32xf32>
    %309 = arith.maximumf %307, %308 : vector<4x32xf32>
    %310 = vector.broadcast %300 : vector<1x32xf32> to vector<4x32xf32>
    %311 = arith.mulf %282, %310 : vector<4x32xf32>
    %312 = vector.broadcast %303 : vector<1x32xf32> to vector<4x32xf32>
    %313 = arith.addf %311, %312 : vector<4x32xf32>
    %cst_245 = arith.constant 0.000000e+00 : f32
    %314 = vector.broadcast %cst_245 : f32 to vector<4x32xf32>
    %315 = arith.maximumf %313, %314 : vector<4x32xf32>
    %c0_246 = arith.constant 0 : index
    %c0_247 = arith.constant 0 : index
    %316 = vector.load %arg19[%c0_246, %c0_247] : memref<1x32xf32, #tpu.memory_space<vmem>>, vector<1x32xf32>
    %c0_248 = arith.constant 0 : index
    %c0_249 = arith.constant 0 : index
    %c0_250 = arith.constant 0 : index
    %317 = vector.load %arg17[%c0_248, %c0_249, %c0_250] : memref<3x2x4xf32, #tpu.memory_space<vmem>>, vector<1x2x4xf32>
    %318 = vector.shape_cast %317 : vector<1x2x4xf32> to vector<2x4xf32>
    %cst_251 = arith.constant dense<0.000000e+00> : vector<2x32xf32>
    %319 = tpu.matmul %318, %309, %cst_251 {dimension_numbers = #tpu.dot_dimension_numbers<[1], [0], [0], [1], [0, 0, 1, 1], [], []>} : vector<2x4xf32>, vector<4x32xf32>, vector<2x32xf32> -> vector<2x32xf32>
    %c0_252 = arith.constant 0 : index
    %c0_253 = arith.constant 0 : index
    %c0_254 = arith.constant 0 : index
    %320 = vector.load %arg18[%c0_252, %c0_253, %c0_254] : memref<3x32x32xf32, #tpu.memory_space<vmem>>, vector<1x32x32xf32>
    %321 = vector.shape_cast %320 : vector<1x32x32xf32> to vector<32x32xf32>
    %cst_255 = arith.constant dense<0.000000e+00> : vector<2x32xf32>
    %322 = tpu.matmul %319, %321, %cst_255 {dimension_numbers = #tpu.dot_dimension_numbers<[1], [0], [0], [1], [0, 0, 1, 1], [], []>} : vector<2x32xf32>, vector<32x32xf32>, vector<2x32xf32> -> vector<2x32xf32>
    %c1_256 = arith.constant 1 : index
    %c0_257 = arith.constant 0 : index
    %c0_258 = arith.constant 0 : index
    %323 = vector.load %arg17[%c1_256, %c0_257, %c0_258] : memref<3x2x4xf32, #tpu.memory_space<vmem>>, vector<1x2x4xf32>
    %324 = vector.shape_cast %323 : vector<1x2x4xf32> to vector<2x4xf32>
    %cst_259 = arith.constant dense<0.000000e+00> : vector<2x32xf32>
    %325 = tpu.matmul %324, %309, %cst_259 {dimension_numbers = #tpu.dot_dimension_numbers<[1], [0], [0], [1], [0, 0, 1, 1], [], []>} : vector<2x4xf32>, vector<4x32xf32>, vector<2x32xf32> -> vector<2x32xf32>
    %c1_260 = arith.constant 1 : index
    %c0_261 = arith.constant 0 : index
    %c0_262 = arith.constant 0 : index
    %326 = vector.load %arg18[%c1_260, %c0_261, %c0_262] : memref<3x32x32xf32, #tpu.memory_space<vmem>>, vector<1x32x32xf32>
    %327 = vector.shape_cast %326 : vector<1x32x32xf32> to vector<32x32xf32>
    %cst_263 = arith.constant dense<0.000000e+00> : vector<2x32xf32>
    %328 = tpu.matmul %325, %327, %cst_263 {dimension_numbers = #tpu.dot_dimension_numbers<[1], [0], [0], [1], [0, 0, 1, 1], [], []>} : vector<2x32xf32>, vector<32x32xf32>, vector<2x32xf32> -> vector<2x32xf32>
    %329 = arith.addf %322, %328 : vector<2x32xf32>
    %c2_264 = arith.constant 2 : index
    %c0_265 = arith.constant 0 : index
    %c0_266 = arith.constant 0 : index
    %330 = vector.load %arg17[%c2_264, %c0_265, %c0_266] : memref<3x2x4xf32, #tpu.memory_space<vmem>>, vector<1x2x4xf32>
    %331 = vector.shape_cast %330 : vector<1x2x4xf32> to vector<2x4xf32>
    %cst_267 = arith.constant dense<0.000000e+00> : vector<2x32xf32>
    %332 = tpu.matmul %331, %309, %cst_267 {dimension_numbers = #tpu.dot_dimension_numbers<[1], [0], [0], [1], [0, 0, 1, 1], [], []>} : vector<2x4xf32>, vector<4x32xf32>, vector<2x32xf32> -> vector<2x32xf32>
    %c2_268 = arith.constant 2 : index
    %c0_269 = arith.constant 0 : index
    %c0_270 = arith.constant 0 : index
    %333 = vector.load %arg18[%c2_268, %c0_269, %c0_270] : memref<3x32x32xf32, #tpu.memory_space<vmem>>, vector<1x32x32xf32>
    %334 = vector.shape_cast %333 : vector<1x32x32xf32> to vector<32x32xf32>
    %cst_271 = arith.constant dense<0.000000e+00> : vector<2x32xf32>
    %335 = tpu.matmul %332, %334, %cst_271 {dimension_numbers = #tpu.dot_dimension_numbers<[1], [0], [0], [1], [0, 0, 1, 1], [], []>} : vector<2x32xf32>, vector<32x32xf32>, vector<2x32xf32> -> vector<2x32xf32>
    %336 = arith.addf %329, %335 : vector<2x32xf32>
    %cst_272 = arith.constant dense<0.000000e+00> : vector<32xf32>
    %337 = vector.multi_reduction <add>, %336, %cst_272 [0] : vector<2x32xf32> to vector<32xf32>
    %338 = vector.shape_cast %337 : vector<32xf32> to vector<1x32xf32>
    %cst_273 = arith.constant 2.000000e+00 : f32
    %339 = vector.broadcast %cst_273 : f32 to vector<1x32xf32>
    %340 = arith.divf %338, %339 : vector<1x32xf32>
    %341 = arith.addf %340, %316 : vector<1x32xf32>
    %c0_274 = arith.constant 0 : index
    %c0_275 = arith.constant 0 : index
    %342 = vector.load %arg20[%c0_274, %c0_275] : memref<2x32xf32, #tpu.memory_space<vmem>>, vector<1x32xf32>
    tpu.vector_store %arg20[%c0_274, %c0_275], %341 {strides = array<i32>} : memref<2x32xf32, #tpu.memory_space<vmem>>, vector<1x32xf32>,
    %c0_276 = arith.constant 0 : index
    %c0_277 = arith.constant 0 : index
    %c0_278 = arith.constant 0 : index
    %343 = vector.load %arg17[%c0_276, %c0_277, %c0_278] : memref<3x2x4xf32, #tpu.memory_space<vmem>>, vector<1x2x4xf32>
    %344 = vector.shape_cast %343 : vector<1x2x4xf32> to vector<2x4xf32>
    %cst_279 = arith.constant dense<0.000000e+00> : vector<2x32xf32>
    %345 = tpu.matmul %344, %315, %cst_279 {dimension_numbers = #tpu.dot_dimension_numbers<[1], [0], [0], [1], [0, 0, 1, 1], [], []>} : vector<2x4xf32>, vector<4x32xf32>, vector<2x32xf32> -> vector<2x32xf32>
    %c0_280 = arith.constant 0 : index
    %c0_281 = arith.constant 0 : index
    %c0_282 = arith.constant 0 : index
    %346 = vector.load %arg18[%c0_280, %c0_281, %c0_282] : memref<3x32x32xf32, #tpu.memory_space<vmem>>, vector<1x32x32xf32>
    %347 = vector.shape_cast %346 : vector<1x32x32xf32> to vector<32x32xf32>
    %cst_283 = arith.constant dense<0.000000e+00> : vector<2x32xf32>
    %348 = tpu.matmul %345, %347, %cst_283 {dimension_numbers = #tpu.dot_dimension_numbers<[1], [0], [0], [1], [0, 0, 1, 1], [], []>} : vector<2x32xf32>, vector<32x32xf32>, vector<2x32xf32> -> vector<2x32xf32>
    %c1_284 = arith.constant 1 : index
    %c0_285 = arith.constant 0 : index
    %c0_286 = arith.constant 0 : index
    %349 = vector.load %arg17[%c1_284, %c0_285, %c0_286] : memref<3x2x4xf32, #tpu.memory_space<vmem>>, vector<1x2x4xf32>
    %350 = vector.shape_cast %349 : vector<1x2x4xf32> to vector<2x4xf32>
    %cst_287 = arith.constant dense<0.000000e+00> : vector<2x32xf32>
    %351 = tpu.matmul %350, %315, %cst_287 {dimension_numbers = #tpu.dot_dimension_numbers<[1], [0], [0], [1], [0, 0, 1, 1], [], []>} : vector<2x4xf32>, vector<4x32xf32>, vector<2x32xf32> -> vector<2x32xf32>
    %c1_288 = arith.constant 1 : index
    %c0_289 = arith.constant 0 : index
    %c0_290 = arith.constant 0 : index
    %352 = vector.load %arg18[%c1_288, %c0_289, %c0_290] : memref<3x32x32xf32, #tpu.memory_space<vmem>>, vector<1x32x32xf32>
    %353 = vector.shape_cast %352 : vector<1x32x32xf32> to vector<32x32xf32>
    %cst_291 = arith.constant dense<0.000000e+00> : vector<2x32xf32>
    %354 = tpu.matmul %351, %353, %cst_291 {dimension_numbers = #tpu.dot_dimension_numbers<[1], [0], [0], [1], [0, 0, 1, 1], [], []>} : vector<2x32xf32>, vector<32x32xf32>, vector<2x32xf32> -> vector<2x32xf32>
    %355 = arith.addf %348, %354 : vector<2x32xf32>
    %c2_292 = arith.constant 2 : index
    %c0_293 = arith.constant 0 : index
    %c0_294 = arith.constant 0 : index
    %356 = vector.load %arg17[%c2_292, %c0_293, %c0_294] : memref<3x2x4xf32, #tpu.memory_space<vmem>>, vector<1x2x4xf32>
    %357 = vector.shape_cast %356 : vector<1x2x4xf32> to vector<2x4xf32>
    %cst_295 = arith.constant dense<0.000000e+00> : vector<2x32xf32>
    %358 = tpu.matmul %357, %315, %cst_295 {dimension_numbers = #tpu.dot_dimension_numbers<[1], [0], [0], [1], [0, 0, 1, 1], [], []>} : vector<2x4xf32>, vector<4x32xf32>, vector<2x32xf32> -> vector<2x32xf32>
    %c2_296 = arith.constant 2 : index
    %c0_297 = arith.constant 0 : index
    %c0_298 = arith.constant 0 : index
    %359 = vector.load %arg18[%c2_296, %c0_297, %c0_298] : memref<3x32x32xf32, #tpu.memory_space<vmem>>, vector<1x32x32xf32>
    %360 = vector.shape_cast %359 : vector<1x32x32xf32> to vector<32x32xf32>
    %cst_299 = arith.constant dense<0.000000e+00> : vector<2x32xf32>
    %361 = tpu.matmul %358, %360, %cst_299 {dimension_numbers = #tpu.dot_dimension_numbers<[1], [0], [0], [1], [0, 0, 1, 1], [], []>} : vector<2x32xf32>, vector<32x32xf32>, vector<2x32xf32> -> vector<2x32xf32>
    %362 = arith.addf %355, %361 : vector<2x32xf32>
    %cst_300 = arith.constant dense<0.000000e+00> : vector<32xf32>
    %363 = vector.multi_reduction <add>, %362, %cst_300 [0] : vector<2x32xf32> to vector<32xf32>
    %364 = vector.shape_cast %363 : vector<32xf32> to vector<1x32xf32>
    %cst_301 = arith.constant 2.000000e+00 : f32
    %365 = vector.broadcast %cst_301 : f32 to vector<1x32xf32>
    %366 = arith.divf %364, %365 : vector<1x32xf32>
    %367 = arith.addf %366, %316 : vector<1x32xf32>
    %c1_302 = arith.constant 1 : index
    %c0_303 = arith.constant 0 : index
    %368 = vector.load %arg20[%c1_302, %c0_303] : memref<2x32xf32, #tpu.memory_space<vmem>>, vector<1x32xf32>
    tpu.vector_store %arg20[%c1_302, %c0_303], %367 {strides = array<i32>} : memref<2x32xf32, #tpu.memory_space<vmem>>, vector<1x32xf32>,
    return
  }
}

</mosaic_0001>

<llo_original>
// kernel: tpu_custom_call.1
$region0: #{tpu_custom_call.1}
  #allocation0 [shape = 'u32[]', space=smem, size = 0x4, offset = 0x4, fixed_abs, tag = 'smem constant byte address 0x4 - core index']
  #allocation1 [shape = 'u32[144,128]{1,0:T(1,128)}', space=vmem, size = 0x12000, scoped, tag = 'internal scratch']
  %s0 = inlined_call_operand.vmem [shape: f32[2,64,4], index: 0, kind: input, shape index: {}]
  %s1 = inlined_call_operand.vmem [shape: f32[3,32,64], index: 1, kind: input, shape index: {}]
  %s2 = inlined_call_operand.hbm [shape: f32[3,4,8], index: 2, kind: input, shape index: {}]
  %s3 = inlined_call_operand.hbm [shape: f32[1,8], index: 3, kind: input, shape index: {}]
  %s4 = inlined_call_operand.hbm [shape: f32[1,8], index: 4, kind: input, shape index: {}]
  %s5 = inlined_call_operand.vmem [shape: f32[3,16,32], index: 5, kind: input, shape index: {}]
  %s6 = inlined_call_operand.hbm [shape: f32[3,8,16], index: 6, kind: input, shape index: {}]
  %s7 = inlined_call_operand.hbm [shape: f32[1,16], index: 7, kind: input, shape index: {}]
  %s8 = inlined_call_operand.hbm [shape: f32[1,16], index: 8, kind: input, shape index: {}]
  %s9 = inlined_call_operand.hbm [shape: f32[3,8,16], index: 9, kind: input, shape index: {}]
  %s10 = inlined_call_operand.hbm [shape: f32[3,16,16], index: 10, kind: input, shape index: {}]
  %s11 = inlined_call_operand.hbm [shape: f32[1,16], index: 11, kind: input, shape index: {}]
  %s12 = inlined_call_operand.vmem [shape: f32[1,16], index: 12, kind: input, shape index: {}]
  %s13 = inlined_call_operand.vmem [shape: f32[3,4,8], index: 13, kind: input, shape index: {}]
  %s14 = inlined_call_operand.hbm [shape: f32[3,16,32], index: 14, kind: input, shape index: {}]
  %s15 = inlined_call_operand.hbm [shape: f32[1,32], index: 15, kind: input, shape index: {}]
  %s16 = inlined_call_operand.vmem [shape: f32[1,32], index: 16, kind: input, shape index: {}]
  %s17 = inlined_call_operand.vmem [shape: f32[3,2,4], index: 17, kind: input, shape index: {}]
  %s18 = inlined_call_operand.hbm [shape: f32[3,32,32], index: 18, kind: input, shape index: {}]
  %s19 = inlined_call_operand.vmem [shape: f32[1,32], index: 19, kind: input, shape index: {}]
  %s20 = inlined_call_operand.hbm [shape: f32[2,32], index: 20, kind: output, shape index: {}]
  %s21 = sld [smem:[#allocation0]]
  $region138: #{tpu_custom_call.1} parent=0
    _
  %s23 = ssub.s32 1, %s21
  %s24 = scalar_select 0, %s23, %s21
  $region1: #{tpu_custom_call.1} parent=0
    #allocation2 [shape = 'u8[6144]{0}', space=vmem, size = 0x1800, scoped, tag = 'input window, operand 2, single buffered']
    #allocation3 [shape = 's32[1]{0}', space=sflag, size = 0x4, scoped, tag = 'scoped memory for tpu_custom_call.1']
    #allocation4 [shape = 's32[1]{0}', space=sflag, size = 0x4, scoped, tag = 'scoped memory for tpu_custom_call.1']
    #allocation5 [shape = 'u8[512]{0}', space=vmem, size = 0x400, scoped, tag = 'input window, operand 3, single buffered']
    #allocation6 [shape = 's32[1]{0}', space=sflag, size = 0x4, scoped, tag = 'scoped memory for tpu_custom_call.1']
    #allocation7 [shape = 'u8[512]{0}', space=vmem, size = 0x400, scoped, tag = 'input window, operand 4, single buffered']
    #allocation8 [shape = 'u8[12288]{0}', space=vmem, size = 0x3000, scoped, tag = 'input window, operand 6, single buffered']
    #allocation9 [shape = 's32[1]{0}', space=sflag, size = 0x4, scoped, tag = 'scoped memory for tpu_custom_call.1']
    #allocation10 [shape = 'u8[512]{0}', space=vmem, size = 0x400, scoped, tag = 'input window, operand 7, single buffered']
    #allocation11 [shape = 'u8[512]{0}', space=vmem, size = 0x400, scoped, tag = 'input window, operand 8, single buffered']
    #allocation12 [shape = 's32[1]{0}', space=sflag, size = 0x4, scoped, tag = 'scoped memory for tpu_custom_call.1']
    #allocation13 [shape = 'u8[12288]{0}', space=vmem, size = 0x3000, scoped, tag = 'input window, operand 9, single buffered']
    #allocation14 [shape = 'u8[24576]{0}', space=vmem, size = 0x6000, scoped, tag = 'input window, operand 10, single buffered']
    #allocation15 [shape = 's32[1]{0}', space=sflag, size = 0x4, scoped, tag = 'scoped memory for tpu_custom_call.1']
    #allocation16 [shape = 'u8[512]{0}', space=vmem, size = 0x400, scoped, tag = 'input window, operand 11, single buffered']
    #allocation17 [shape = 'u8[24576]{0}', space=vmem, size = 0x6000, scoped, tag = 'input window, operand 14, single buffered']
    #allocation18 [shape = 's32[1]{0}', space=sflag, size = 0x4, scoped, tag = 'scoped memory for tpu_custom_call.1']
    #allocation19 [shape = 'u8[512]{0}', space=vmem, size = 0x400, scoped, tag = 'input window, operand 15, single buffered']
    #allocation20 [shape = 'u8[49152]{0}', space=vmem, size = 0xc000, scoped, tag = 'input window, operand 18, single buffered']
    #allocation21 [shape = 's32[1]{0}', space=sflag, size = 0x4, scoped, tag = 'scoped memory for tpu_custom_call.1']
    #allocation22 [shape = 'u8[1024]{0}', space=vmem, size = 0x400, scoped, tag = 'output window, operand 0, single buffered']
    %25 = vsyncpa [#allocation3], 0
    %26 = vsyncpa [#allocation6], 0
    %27 = vsyncpa [#allocation9], 0
    %28 = vsyncpa [#allocation12], 0
    %29 = vsyncpa [#allocation15], 0
    %30 = vsyncpa [#allocation18], 0
    %31 = vsyncpa [#allocation21], 0
    %32 = vsyncpa [#allocation4], 0
    // Predicated region
    $region2: #{tpu_custom_call.1} parent=1 // pred_check
      _
    $region3: #{tpu_custom_call.1} parent=1 // pred_check_branch
      %34 = sbr.rel (0) target = $region5
    $region4: #{tpu_custom_call.1} parent=1 // pred_region
      _
    $region5: #{tpu_custom_call.1} parent=1 // pred_fallthru
      _
    // Predicated region
    $region6: #{tpu_custom_call.1} parent=1 // pred_check
      _
    $region7: #{tpu_custom_call.1} parent=1 // pred_check_branch
      %36 = sbr.rel (0) target = $region9
    $region8: #{tpu_custom_call.1} parent=1 // pred_region
      _
    $region9: #{tpu_custom_call.1} parent=1 // pred_fallthru
      _
    // Predicated region
    $region10: #{tpu_custom_call.1} parent=1 // pred_check
      _
    $region11: #{tpu_custom_call.1} parent=1 // pred_check_branch
      %38 = sbr.rel (0) target = $region13
    $region12: #{tpu_custom_call.1} parent=1 // pred_region
      %s40 = ssub.s32 192, 192
      %41 = vsyncadd [#allocation3], %s40
      %s42 = sshll.u32 [#allocation2], 4
      %s43 = int_to_ptr.vmem [resolvable:$true] %s42
      %48 = dma.hbm_to_vmem [thread:$0]  %s2, 192, %s43, [#allocation3], 64, 64, 4
    $region13: #{tpu_custom_call.1} parent=1 // pred_fallthru
      _
    // Predicated region
    $region14: #{tpu_custom_call.1} parent=1 // pred_check
      _
    $region15: #{tpu_custom_call.1} parent=1 // pred_check_branch
      %50 = sbr.rel (0) target = $region17
    $region16: #{tpu_custom_call.1} parent=1 // pred_region
      %s52 = ssub.s32 16, 16
      %53 = vsyncadd [#allocation6], %s52
      %s55 = sshll.u32 [#allocation5], 4
      %s56 = int_to_ptr.vmem [resolvable:$true] %s55
      %58 = dma.hbm_to_vmem [thread:$0]  %s3, 16, %s56, [#allocation6]
    $region17: #{tpu_custom_call.1} parent=1 // pred_fallthru
      _
    // Predicated region
    $region18: #{tpu_custom_call.1} parent=1 // pred_check
      _
    $region19: #{tpu_custom_call.1} parent=1 // pred_check_branch
      %60 = sbr.rel (0) target = $region21
    $region20: #{tpu_custom_call.1} parent=1 // pred_region
      %s62 = ssub.s32 16, 16
      %63 = vsyncadd [#allocation6], %s62
      %s65 = sshll.u32 [#allocation7], 4
      %s66 = int_to_ptr.vmem [resolvable:$true] %s65
      %68 = dma.hbm_to_vmem [thread:$0]  %s4, 16, %s66, [#allocation6]
    $region21: #{tpu_custom_call.1} parent=1 // pred_fallthru
      _
    // Predicated region
    $region22: #{tpu_custom_call.1} parent=1 // pred_check
      _
    $region23: #{tpu_custom_call.1} parent=1 // pred_check_branch
      %70 = sbr.rel (0) target = $region25
    $region24: #{tpu_custom_call.1} parent=1 // pred_region
      _
    $region25: #{tpu_custom_call.1} parent=1 // pred_fallthru
      _
    // Predicated region
    $region26: #{tpu_custom_call.1} parent=1 // pred_check
      _
    $region27: #{tpu_custom_call.1} parent=1 // pred_check_branch
      %72 = sbr.rel (0) target = $region29
    $region28: #{tpu_custom_call.1} parent=1 // pred_region
      %s74 = ssub.s32 384, 384
      %75 = vsyncadd [#allocation9], %s74
      %s76 = sshll.u32 [#allocation8], 4
      %s77 = int_to_ptr.vmem [resolvable:$true] %s76
      %82 = dma.hbm_to_vmem [thread:$0]  %s6, 384, %s77, [#allocation9], 128, 128, 8
    $region29: #{tpu_custom_call.1} parent=1 // pred_fallthru
      _
    // Predicated region
    $region30: #{tpu_custom_call.1} parent=1 // pred_check
      _
    $region31: #{tpu_custom_call.1} parent=1 // pred_check_branch
      %84 = sbr.rel (0) target = $region33
    $region32: #{tpu_custom_call.1} parent=1 // pred_region
      %s86 = ssub.s32 16, 16
      %87 = vsyncadd [#allocation9], %s86
      %s89 = sshll.u32 [#allocation10], 4
      %s90 = int_to_ptr.vmem [resolvable:$true] %s89
      %92 = dma.hbm_to_vmem [thread:$0]  %s7, 16, %s90, [#allocation9]
    $region33: #{tpu_custom_call.1} parent=1 // pred_fallthru
      _
    // Predicated region
    $region34: #{tpu_custom_call.1} parent=1 // pred_check
      _
    $region35: #{tpu_custom_call.1} parent=1 // pred_check_branch
      %94 = sbr.rel (0) target = $region37
    $region36: #{tpu_custom_call.1} parent=1 // pred_region
      %s96 = ssub.s32 16, 16
      %97 = vsyncadd [#allocation12], %s96
      %s99 = sshll.u32 [#allocation11], 4
      %s100 = int_to_ptr.vmem [resolvable:$true] %s99
      %102 = dma.hbm_to_vmem [thread:$0]  %s8, 16, %s100, [#allocation12]
    $region37: #{tpu_custom_call.1} parent=1 // pred_fallthru
      _
    // Predicated region
    $region38: #{tpu_custom_call.1} parent=1 // pred_check
      _
    $region39: #{tpu_custom_call.1} parent=1 // pred_check_branch
      %104 = sbr.rel (0) target = $region41
    $region40: #{tpu_custom_call.1} parent=1 // pred_region
      %s106 = ssub.s32 384, 384
      %107 = vsyncadd [#allocation12], %s106
      %s108 = sshll.u32 [#allocation13], 4
      %s109 = int_to_ptr.vmem [resolvable:$true] %s108
      %114 = dma.hbm_to_vmem [thread:$0]  %s9, 384, %s109, [#allocation12], 128, 128, 8
    $region41: #{tpu_custom_call.1} parent=1 // pred_fallthru
      _
    // Predicated region
    $region42: #{tpu_custom_call.1} parent=1 // pred_check
      _
    $region43: #{tpu_custom_call.1} parent=1 // pred_check_branch
      %116 = sbr.rel (0) target = $region45
    $region44: #{tpu_custom_call.1} parent=1 // pred_region
      %s118 = ssub.s32 768, 768
      %119 = vsyncadd [#allocation15], %s118
      %s120 = sshll.u32 [#allocation14], 4
      %s121 = int_to_ptr.vmem [resolvable:$true] %s120
      %126 = dma.hbm_to_vmem [thread:$0]  %s10, 768, %s121, [#allocation15], 128, 128, 8
    $region45: #{tpu_custom_call.1} parent=1 // pred_fallthru
      _
    // Predicated region
    $region46: #{tpu_custom_call.1} parent=1 // pred_check
      _
    $region47: #{tpu_custom_call.1} parent=1 // pred_check_branch
      %128 = sbr.rel (0) target = $region49
    $region48: #{tpu_custom_call.1} parent=1 // pred_region
      %s130 = ssub.s32 16, 16
      %131 = vsyncadd [#allocation15], %s130
      %s133 = sshll.u32 [#allocation16], 4
      %s134 = int_to_ptr.vmem [resolvable:$true] %s133
      %136 = dma.hbm_to_vmem [thread:$0]  %s11, 16, %s134, [#allocation15]
    $region49: #{tpu_custom_call.1} parent=1 // pred_fallthru
      _
    // Predicated region
    $region50: #{tpu_custom_call.1} parent=1 // pred_check
      _
    $region51: #{tpu_custom_call.1} parent=1 // pred_check_branch
      %138 = sbr.rel (0) target = $region53
    $region52: #{tpu_custom_call.1} parent=1 // pred_region
      _
    $region53: #{tpu_custom_call.1} parent=1 // pred_fallthru
      _
    // Predicated region
    $region54: #{tpu_custom_call.1} parent=1 // pred_check
      _
    $region55: #{tpu_custom_call.1} parent=1 // pred_check_branch
      %140 = sbr.rel (0) target = $region57
    $region56: #{tpu_custom_call.1} parent=1 // pred_region
      _
    $region57: #{tpu_custom_call.1} parent=1 // pred_fallthru
      _
    // Predicated region
    $region58: #{tpu_custom_call.1} parent=1 // pred_check
      _
    $region59: #{tpu_custom_call.1} parent=1 // pred_check_branch
      %142 = sbr.rel (0) target = $region61
    $region60: #{tpu_custom_call.1} parent=1 // pred_region
      %s144 = ssub.s32 768, 768
      %145 = vsyncadd [#allocation18], %s144
      %s146 = sshll.u32 [#allocation17], 4
      %s147 = int_to_ptr.vmem [resolvable:$true] %s146
      %152 = dma.hbm_to_vmem [thread:$0]  %s14, 768, %s147, [#allocation18], 128, 128, 8
    $region61: #{tpu_custom_call.1} parent=1 // pred_fallthru
      _
    // Predicated region
    $region62: #{tpu_custom_call.1} parent=1 // pred_check
      _
    $region63: #{tpu_custom_call.1} parent=1 // pred_check_branch
      %154 = sbr.rel (0) target = $region65
    $region64: #{tpu_custom_call.1} parent=1 // pred_region
      %s156 = ssub.s32 16, 16
      %157 = vsyncadd [#allocation18], %s156
      %s159 = sshll.u32 [#allocation19], 4
      %s160 = int_to_ptr.vmem [resolvable:$true] %s159
      %162 = dma.hbm_to_vmem [thread:$0]  %s15, 16, %s160, [#allocation18]
    $region65: #{tpu_custom_call.1} parent=1 // pred_fallthru
      _
    // Predicated region
    $region66: #{tpu_custom_call.1} parent=1 // pred_check
      _
    $region67: #{tpu_custom_call.1} parent=1 // pred_check_branch
      %164 = sbr.rel (0) target = $region69
    $region68: #{tpu_custom_call.1} parent=1 // pred_region
      _
    $region69: #{tpu_custom_call.1} parent=1 // pred_fallthru
      _
    // Predicated region
    $region70: #{tpu_custom_call.1} parent=1 // pred_check
      _
    $region71: #{tpu_custom_call.1} parent=1 // pred_check_branch
      %166 = sbr.rel (0) target = $region73
    $region72: #{tpu_custom_call.1} parent=1 // pred_region
      _
    $region73: #{tpu_custom_call.1} parent=1 // pred_fallthru
      _
    // Predicated region
    $region74: #{tpu_custom_call.1} parent=1 // pred_check
      _
    $region75: #{tpu_custom_call.1} parent=1 // pred_check_branch
      %168 = sbr.rel (0) target = $region77
    $region76: #{tpu_custom_call.1} parent=1 // pred_region
      %s170 = ssub.s32 1536, 1536
      %171 = vsyncadd [#allocation21], %s170
      %s172 = sshll.u32 [#allocation20], 4
      %s173 = int_to_ptr.vmem [resolvable:$true] %s172
      %178 = dma.hbm_to_vmem [thread:$0]  %s18, 1536, %s173, [#allocation21], 128, 128, 8
    $region77: #{tpu_custom_call.1} parent=1 // pred_fallthru
      _
    // Predicated region
    $region78: #{tpu_custom_call.1} parent=1 // pred_check
      _
    $region79: #{tpu_custom_call.1} parent=1 // pred_check_branch
      %180 = sbr.rel (0) target = $region81
    $region80: #{tpu_custom_call.1} parent=1 // pred_region
      _
    $region81: #{tpu_custom_call.1} parent=1 // pred_fallthru
      _
    // Predicated region
    $region82: #{tpu_custom_call.1} parent=1 // pred_check
      _
    $region83: #{tpu_custom_call.1} parent=1 // pred_check_branch
      %182 = sbr.rel (0) target = $region85
    $region84: #{tpu_custom_call.1} parent=1 // pred_region
      %183 = dma.done [#allocation3], 192
    $region85: #{tpu_custom_call.1} parent=1 // pred_fallthru
      _
    // Predicated region
    $region86: #{tpu_custom_call.1} parent=1 // pred_check
      _
    $region87: #{tpu_custom_call.1} parent=1 // pred_check_branch
      %185 = sbr.rel (0) target = $region89
    $region88: #{tpu_custom_call.1} parent=1 // pred_region
      %186 = dma.done [#allocation6], 16
    $region89: #{tpu_custom_call.1} parent=1 // pred_fallthru
      _
    // Predicated region
    $region90: #{tpu_custom_call.1} parent=1 // pred_check
      _
    $region91: #{tpu_custom_call.1} parent=1 // pred_check_branch
      %188 = sbr.rel (0) target = $region93
    $region92: #{tpu_custom_call.1} parent=1 // pred_region
      %189 = dma.done [#allocation6], 16
    $region93: #{tpu_custom_call.1} parent=1 // pred_fallthru
      _
    // Predicated region
    $region94: #{tpu_custom_call.1} parent=1 // pred_check
      _
    $region95: #{tpu_custom_call.1} parent=1 // pred_check_branch
      %191 = sbr.rel (0) target = $region97
    $region96: #{tpu_custom_call.1} parent=1 // pred_region
      %192 = dma.done [#allocation9], 384
    $region97: #{tpu_custom_call.1} parent=1 // pred_fallthru
      _
    // Predicated region
    $region98: #{tpu_custom_call.1} parent=1 // pred_check
      _
    $region99: #{tpu_custom_call.1} parent=1 // pred_check_branch
      %194 = sbr.rel (0) target = $region101
    $region100: #{tpu_custom_call.1} parent=1 // pred_region
      %195 = dma.done [#allocation9], 16
    $region101: #{tpu_custom_call.1} parent=1 // pred_fallthru
      _
    // Predicated region
    $region102: #{tpu_custom_call.1} parent=1 // pred_check
      _
    $region103: #{tpu_custom_call.1} parent=1 // pred_check_branch
      %197 = sbr.rel (0) target = $region105
    $region104: #{tpu_custom_call.1} parent=1 // pred_region
      %198 = dma.done [#allocation12], 16
    $region105: #{tpu_custom_call.1} parent=1 // pred_fallthru
      _
    // Predicated region
    $region106: #{tpu_custom_call.1} parent=1 // pred_check
      _
    $region107: #{tpu_custom_call.1} parent=1 // pred_check_branch
      %200 = sbr.rel (0) target = $region109
    $region108: #{tpu_custom_call.1} parent=1 // pred_region
      %201 = dma.done [#allocation12], 384
    $region109: #{tpu_custom_call.1} parent=1 // pred_fallthru
      _
    // Predicated region
    $region110: #{tpu_custom_call.1} parent=1 // pred_check
      _
    $region111: #{tpu_custom_call.1} parent=1 // pred_check_branch
      %203 = sbr.rel (0) target = $region113
    $region112: #{tpu_custom_call.1} parent=1 // pred_region
      %204 = dma.done [#allocation15], 768
    $region113: #{tpu_custom_call.1} parent=1 // pred_fallthru
      _
    // Predicated region
    $region114: #{tpu_custom_call.1} parent=1 // pred_check
      _
    $region115: #{tpu_custom_call.1} parent=1 // pred_check_branch
      %206 = sbr.rel (0) target = $region117
    $region116: #{tpu_custom_call.1} parent=1 // pred_region
      %207 = dma.done [#allocation15], 16
    $region117: #{tpu_custom_call.1} parent=1 // pred_fallthru
      _
    // Predicated region
    $region118: #{tpu_custom_call.1} parent=1 // pred_check
      _
    $region119: #{tpu_custom_call.1} parent=1 // pred_check_branch
      %209 = sbr.rel (0) target = $region121
    $region120: #{tpu_custom_call.1} parent=1 // pred_region
      %210 = dma.done [#allocation18], 768
    $region121: #{tpu_custom_call.1} parent=1 // pred_fallthru
      _
    // Predicated region
    $region122: #{tpu_custom_call.1} parent=1 // pred_check
      _
    $region123: #{tpu_custom_call.1} parent=1 // pred_check_branch
      %212 = sbr.rel (0) target = $region125
    $region124: #{tpu_custom_call.1} parent=1 // pred_region
      %213 = dma.done [#allocation18], 16
    $region125: #{tpu_custom_call.1} parent=1 // pred_fallthru
      _
    // Predicated region
    $region126: #{tpu_custom_call.1} parent=1 // pred_check
      _
    $region127: #{tpu_custom_call.1} parent=1 // pred_check_branch
      %215 = sbr.rel (0) target = $region129
    $region128: #{tpu_custom_call.1} parent=1 // pred_region
      %216 = dma.done [#allocation21], 1536
    $region129: #{tpu_custom_call.1} parent=1 // pred_fallthru
      _
    %v217 = vld [vmem:[%s0] sm:$0xff]
    %v218 = vld [vmem:[%s0 + $0x8] sm:$0xff]
    %v219 = vld [vmem:[%s0 + $0x10] sm:$0xff]
    %v220 = vld [vmem:[%s0 + $0x18] sm:$0xff]
    %v221 = vld [vmem:[%s0 + $0x20] sm:$0xff]
    %v222 = vld [vmem:[%s0 + $0x28] sm:$0xff]
    %v223 = vld [vmem:[%s0 + $0x30] sm:$0xff]
    %v224 = vld [vmem:[%s0 + $0x38] sm:$0xff]
    %s225 = scalar_lea.vmem %s0, 64
    %v226 = vld [vmem:[%s225] sm:$0xff]
    %v227 = vld [vmem:[%s225 + $0x8] sm:$0xff]
    %v228 = vld [vmem:[%s225 + $0x10] sm:$0xff]
    %v229 = vld [vmem:[%s225 + $0x18] sm:$0xff]
    %v230 = vld [vmem:[%s225 + $0x20] sm:$0xff]
    %v231 = vld [vmem:[%s225 + $0x28] sm:$0xff]
    %v232 = vld [vmem:[%s225 + $0x30] sm:$0xff]
    %v233 = vld [vmem:[%s225 + $0x38] sm:$0xff]
    %v234 = vld [vmem:[%s1] sm:$0xff]
    %v235 = vld [vmem:[%s1 + $0x8] sm:$0xff]
    %v236 = vld [vmem:[%s1 + $0x10] sm:$0xff]
    %v237 = vld [vmem:[%s1 + $0x18] sm:$0xff]
    %vm238 = vcmask 523264
    %v240 = vsel %vm238, %v234, 0
    %v243 = vsel %vm238, %v235, 0
    %v246 = vsel %vm238, %v236, 0
    %v249 = vsel %vm238, %v237, 0
    %251 = vmatprep.subr.mxu0 0.0
    %252 = vmatpush1.msra.mxu0 0.0
    %253 = vmatprep.subr.mxu0 0.0
    %254 = vmatpush1.msra.mxu0 0.0
    %255 = vmatprep.subr.mxu0 0.0
    %256 = vmatpush1.msra.mxu0 0.0
    %257 = vmatprep.subr.mxu0 0.0
    %258 = vmatpush1.msra.mxu0 0.0
    %259 = vmatprep.subr.mxu0 0.0
    %260 = vmatpush1.msra.mxu0 0.0
    %261 = vmatprep.subr.mxu0 0.0
    %262 = vmatpush1.msra.mxu0 0.0
    %263 = vmatprep.subr.mxu0 0.0
    %264 = vmatpush1.msra.mxu0 0.0
    %265 = vmatprep.subr.mxu0 0.0
    %266 = vmatpush1.msra.mxu0 0.0
    %267 = vmatprep.subr.mxu0 0.0
    %268 = vmatpush1.msra.mxu0 %v224
    %269 = vmatprep.subr.mxu0 0.0
    %270 = vmatpush1.msra.mxu0 %v223
    %271 = vmatprep.subr.mxu0 0.0
    %272 = vmatpush1.msra.mxu0 %v222
    %273 = vmatprep.subr.mxu0 0.0
    %274 = vmatpush1.msra.mxu0 %v221
    %275 = vmatprep.subr.mxu0 0.0
    %276 = vmatpush1.msra.mxu0 %v220
    %277 = vmatprep.subr.mxu0 0.0
    %278 = vmatpush1.msra.mxu0 %v219
    %279 = vmatprep.subr.mxu0 0.0
    %280 = vmatpush1.msra.mxu0 %v218
    %281 = vmatprep.subr.mxu0 0.0
    %282 = vmatpush1.msra.mxu0 %v217
    %283 = vmatprep.subr.mxu0 0.0
    %284 = vmatpush2.msra.mxu0 0.0
    %285 = vmatprep.subr.mxu0 0.0
    %286 = vmatpush2.msra.mxu0 0.0
    %287 = vmatprep.subr.mxu0 0.0
    %288 = vmatpush2.msra.mxu0 0.0
    %289 = vmatprep.subr.mxu0 0.0
    %290 = vmatpush2.msra.mxu0 0.0
    %291 = vmatprep.subr.mxu0 0.0
    %292 = vmatpush2.msra.mxu0 0.0
    %293 = vmatprep.subr.mxu0 0.0
    %294 = vmatpush2.msra.mxu0 0.0
    %295 = vmatprep.subr.mxu0 0.0
    %296 = vmatpush2.msra.mxu0 0.0
    %297 = vmatprep.subr.mxu0 0.0
    %298 = vmatpush2.msra.mxu0 0.0
    %299 = vmatprep.subr.mxu0 0.0
    %300 = vmatpush2.msra.mxu0 0.0
    %301 = vmatprep.subr.mxu0 0.0
    %302 = vmatpush2.msra.mxu0 0.0
    %303 = vmatprep.subr.mxu0 0.0
    %304 = vmatpush2.msra.mxu0 0.0
    %305 = vmatprep.subr.mxu0 0.0
    %306 = vmatpush2.msra.mxu0 0.0
    %307 = vmatprep.subr.mxu0 0.0
    %308 = vmatpush2.msra.mxu0 0.0
    %309 = vmatprep.subr.mxu0 0.0
    %310 = vmatpush2.msra.mxu0 0.0
    %311 = vmatprep.subr.mxu0 0.0
    %312 = vmatpush2.msra.mxu0 0.0
    %313 = vmatprep.subr.mxu0 0.0
    %314 = vmatpush2.msra.mxu0 0.0
    %315 = vmatprep.mubr.f32.mxu0 0.0
    %316 = vmatmul.mubr.f32.gmra.mxu0 %v240
    %v317 = vpop.f32.mrf.mxu0
    %v318 = vadd.f32 0.0, %v317
    %v319 = vpop.f32.mrf.mxu0
    %320 = vmatprep.mubr.f32.mxu0 0.0
    %321 = vmatmul.mubr.f32.gmra.mxu0 %v243
    %v322 = vpop.f32.mrf.mxu0
    %v323 = vadd.f32 0.0, %v322
    %v324 = vpop.f32.mrf.mxu0
    %325 = vmatprep.mubr.f32.mxu0 0.0
    %326 = vmatmul.mubr.f32.gmra.mxu0 %v246
    %v327 = vpop.f32.mrf.mxu0
    %v328 = vadd.f32 0.0, %v327
    %v329 = vpop.f32.mrf.mxu0
    %330 = vmatprep.mubr.f32.mxu0 0.0
    %331 = vmatmul.mubr.f32.gmra.mxu0 %v249
    %v332 = vpop.f32.mrf.mxu0
    %v333 = vadd.f32 0.0, %v332
    %v334 = vpop.f32.mrf.mxu0
    %335 = vdwg.mxu0
    %v336 = vld [vmem:[#allocation2] sm:$0xf]
    %s337 = scalar_lea.vmem %s1, 32
    %v338 = vld [vmem:[%s337] sm:$0xff]
    %v339 = vld [vmem:[%s337 + $0x8] sm:$0xff]
    %v340 = vld [vmem:[%s337 + $0x10] sm:$0xff]
    %v341 = vld [vmem:[%s337 + $0x18] sm:$0xff]
    %v343 = vsel %vm238, %v338, 0
    %v346 = vsel %vm238, %v339, 0
    %v349 = vsel %vm238, %v340, 0
    %v352 = vsel %vm238, %v341, 0
    %354 = vmatprep.subr.mxu0 0.0
    %355 = vmatpush1.msra.mxu0 0.0
    %356 = vmatprep.subr.mxu0 0.0
    %357 = vmatpush1.msra.mxu0 0.0
    %358 = vmatprep.subr.mxu0 0.0
    %359 = vmatpush1.msra.mxu0 0.0
    %360 = vmatprep.subr.mxu0 0.0
    %361 = vmatpush1.msra.mxu0 0.0
    %362 = vmatprep.subr.mxu0 0.0
    %363 = vmatpush1.msra.mxu0 0.0
    %364 = vmatprep.subr.mxu0 0.0
    %365 = vmatpush1.msra.mxu0 0.0
    %366 = vmatprep.subr.mxu0 0.0
    %367 = vmatpush1.msra.mxu0 0.0
    %368 = vmatprep.subr.mxu0 0.0
    %369 = vmatpush1.msra.mxu0 0.0
    %370 = vmatprep.subr.mxu0 0.0
    %371 = vmatpush1.msra.mxu0 %v224
    %372 = vmatprep.subr.mxu0 0.0
    %373 = vmatpush1.msra.mxu0 %v223
    %374 = vmatprep.subr.mxu0 0.0
    %375 = vmatpush1.msra.mxu0 %v222
    %376 = vmatprep.subr.mxu0 0.0
    %377 = vmatpush1.msra.mxu0 %v221
    %378 = vmatprep.subr.mxu0 0.0
    %379 = vmatpush1.msra.mxu0 %v220
    %380 = vmatprep.subr.mxu0 0.0
    %381 = vmatpush1.msra.mxu0 %v219
    %382 = vmatprep.subr.mxu0 0.0
    %383 = vmatpush1.msra.mxu0 %v218
    %384 = vmatprep.subr.mxu0 0.0
    %385 = vmatpush1.msra.mxu0 %v217
    %386 = vmatprep.subr.mxu0 0.0
    %387 = vmatpush2.msra.mxu0 0.0
    %388 = vmatprep.subr.mxu0 0.0
    %389 = vmatpush2.msra.mxu0 0.0
    %390 = vmatprep.subr.mxu0 0.0
    %391 = vmatpush2.msra.mxu0 0.0
    %392 = vmatprep.subr.mxu0 0.0
    %393 = vmatpush2.msra.mxu0 0.0
    %394 = vmatprep.subr.mxu0 0.0
    %395 = vmatpush2.msra.mxu0 0.0
    %396 = vmatprep.subr.mxu0 0.0
    %397 = vmatpush2.msra.mxu0 0.0
    %398 = vmatprep.subr.mxu0 0.0
    %399 = vmatpush2.msra.mxu0 0.0
    %400 = vmatprep.subr.mxu0 0.0
    %401 = vmatpush2.msra.mxu0 0.0
    %402 = vmatprep.subr.mxu0 0.0
    %403 = vmatpush2.msra.mxu0 0.0
    %404 = vmatprep.subr.mxu0 0.0
    %405 = vmatpush2.msra.mxu0 0.0
    %406 = vmatprep.subr.mxu0 0.0
    %407 = vmatpush2.msra.mxu0 0.0
    %408 = vmatprep.subr.mxu0 0.0
    %409 = vmatpush2.msra.mxu0 0.0
    %410 = vmatprep.subr.mxu0 0.0
    %411 = vmatpush2.msra.mxu0 0.0
    %412 = vmatprep.subr.mxu0 0.0
    %413 = vmatpush2.msra.mxu0 0.0
    %414 = vmatprep.subr.mxu0 0.0
    %415 = vmatpush2.msra.mxu0 0.0
    %416 = vmatprep.subr.mxu0 0.0
    %417 = vmatpush2.msra.mxu0 0.0
    %418 = vmatprep.mubr.f32.mxu0 0.0
    %419 = vmatmul.mubr.f32.gmra.mxu0 %v343
    %v420 = vpop.f32.mrf.mxu0
    %v421 = vadd.f32 0.0, %v420
    %v422 = vpop.f32.mrf.mxu0
    %423 = vmatprep.mubr.f32.mxu0 0.0
    %424 = vmatmul.mubr.f32.gmra.mxu0 %v346
    %v425 = vpop.f32.mrf.mxu0
    %v426 = vadd.f32 0.0, %v425
    %v427 = vpop.f32.mrf.mxu0
    %428 = vmatprep.mubr.f32.mxu0 0.0
    %429 = vmatmul.mubr.f32.gmra.mxu0 %v349
    %v430 = vpop.f32.mrf.mxu0
    %v431 = vadd.f32 0.0, %v430
    %v432 = vpop.f32.mrf.mxu0
    %433 = vmatprep.mubr.f32.mxu0 0.0
    %434 = vmatmul.mubr.f32.gmra.mxu0 %v352
    %v435 = vpop.f32.mrf.mxu0
    %v436 = vadd.f32 0.0, %v435
    %v437 = vpop.f32.mrf.mxu0
    %438 = vdwg.mxu0
    %s439 = scalar_lea.vmem [#allocation2], 4
    %v440 = vld [vmem:[%s439] sm:$0xf]
    %vm441 = vcmask 31744
    %v443 = vsel %vm441, %v421, 0
    %v446 = vsel %vm441, %v426, 0
    %v449 = vsel %vm441, %v431, 0
    %v452 = vsel %vm441, %v436, 0
    %vm454 = vcmask 1043456
    %v456 = vsel %vm454, %v440, 0
    %458 = vmatprep.subr.mxu0 0.0
    %459 = vmatpush1.msra.mxu0 0.0
    %460 = vmatprep.subr.mxu0 0.0
    %461 = vmatpush1.msra.mxu0 0.0
    %462 = vmatprep.subr.mxu0 0.0
    %463 = vmatpush1.msra.mxu0 0.0
    %464 = vmatprep.subr.mxu0 0.0
    %465 = vmatpush1.msra.mxu0 0.0
    %466 = vmatprep.subr.mxu0 0.0
    %467 = vmatpush1.msra.mxu0 0.0
    %468 = vmatprep.subr.mxu0 0.0
    %469 = vmatpush1.msra.mxu0 0.0
    %470 = vmatprep.subr.mxu0 0.0
    %471 = vmatpush1.msra.mxu0 0.0
    %472 = vmatprep.subr.mxu0 0.0
    %473 = vmatpush1.msra.mxu0 0.0
    %474 = vmatprep.subr.mxu0 0.0
    %475 = vmatpush1.msra.mxu0 0.0
    %476 = vmatprep.subr.mxu0 0.0
    %477 = vmatpush1.msra.mxu0 0.0
    %478 = vmatprep.subr.mxu0 0.0
    %479 = vmatpush1.msra.mxu0 0.0
    %480 = vmatprep.subr.mxu0 0.0
    %481 = vmatpush1.msra.mxu0 0.0
    %482 = vmatprep.subr.mxu0 0.0
    %483 = vmatpush1.msra.mxu0 0.0
    %484 = vmatprep.subr.mxu0 0.0
    %485 = vmatpush1.msra.mxu0 0.0
    %486 = vmatprep.subr.mxu0 0.0
    %487 = vmatpush1.msra.mxu0 0.0
    %488 = vmatprep.subr.mxu0 0.0
    %489 = vmatpush1.msra.mxu0 %v456
    %490 = vmatprep.subr.mxu0 0.0
    %491 = vmatpush2.msra.mxu0 0.0
    %492 = vmatprep.subr.mxu0 0.0
    %493 = vmatpush2.msra.mxu0 0.0
    %494 = vmatprep.subr.mxu0 0.0
    %495 = vmatpush2.msra.mxu0 0.0
    %496 = vmatprep.subr.mxu0 0.0
    %497 = vmatpush2.msra.mxu0 0.0
    %498 = vmatprep.subr.mxu0 0.0
    %499 = vmatpush2.msra.mxu0 0.0
    %500 = vmatprep.subr.mxu0 0.0
    %501 = vmatpush2.msra.mxu0 0.0
    %502 = vmatprep.subr.mxu0 0.0
    %503 = vmatpush2.msra.mxu0 0.0
    %504 = vmatprep.subr.mxu0 0.0
    %505 = vmatpush2.msra.mxu0 0.0
    %506 = vmatprep.subr.mxu0 0.0
    %507 = vmatpush2.msra.mxu0 0.0
    %508 = vmatprep.subr.mxu0 0.0
    %509 = vmatpush2.msra.mxu0 0.0
    %510 = vmatprep.subr.mxu0 0.0
    %511 = vmatpush2.msra.mxu0 0.0
    %512 = vmatprep.subr.mxu0 0.0
    %513 = vmatpush2.msra.mxu0 0.0
    %514 = vmatprep.subr.mxu0 0.0
    %515 = vmatpush2.msra.mxu0 0.0
    %516 = vmatprep.subr.mxu0 0.0
    %517 = vmatpush2.msra.mxu0 0.0
    %518 = vmatprep.subr.mxu0 0.0
    %519 = vmatpush2.msra.mxu0 0.0
    %520 = vmatprep.subr.mxu0 0.0
    %521 = vmatpush2.msra.mxu0 0.0
    %522 = vmatprep.mubr.f32.mxu0 0.0
    %523 = vmatmul.mubr.f32.gmra.mxu0 %v443
    %v524 = vpop.f32.mrf.mxu0
    %v525 = vadd.f32 0.0, %v524
    %v526 = vpop.f32.mrf.mxu0
    %527 = vmatprep.mubr.f32.mxu0 0.0
    %528 = vmatmul.mubr.f32.gmra.mxu0 %v446
    %v529 = vpop.f32.mrf.mxu0
    %v530 = vadd.f32 0.0, %v529
    %v531 = vpop.f32.mrf.mxu0
    %532 = vmatprep.mubr.f32.mxu0 0.0
    %533 = vmatmul.mubr.f32.gmra.mxu0 %v449
    %v534 = vpop.f32.mrf.mxu0
    %v535 = vadd.f32 0.0, %v534
    %v536 = vpop.f32.mrf.mxu0
    %537 = vmatprep.mubr.f32.mxu0 0.0
    %538 = vmatmul.mubr.f32.gmra.mxu0 %v452
    %v539 = vpop.f32.mrf.mxu0
    %v540 = vadd.f32 0.0, %v539
    %v541 = vpop.f32.mrf.mxu0
    %542 = vdwg.mxu0
    %v544 = vsel %vm441, %v318, 0
    %v547 = vsel %vm441, %v323, 0
    %v550 = vsel %vm441, %v328, 0
    %v553 = vsel %vm441, %v333, 0
    %v556 = vsel %vm454, %v336, 0
    %558 = vmatprep.subr.mxu0 0.0
    %559 = vmatpush1.msra.mxu0 0.0
    %560 = vmatprep.subr.mxu0 0.0
    %561 = vmatpush1.msra.mxu0 0.0
    %562 = vmatprep.subr.mxu0 0.0
    %563 = vmatpush1.msra.mxu0 0.0
    %564 = vmatprep.subr.mxu0 0.0
    %565 = vmatpush1.msra.mxu0 0.0
    %566 = vmatprep.subr.mxu0 0.0
    %567 = vmatpush1.msra.mxu0 0.0
    %568 = vmatprep.subr.mxu0 0.0
    %569 = vmatpush1.msra.mxu0 0.0
    %570 = vmatprep.subr.mxu0 0.0
    %571 = vmatpush1.msra.mxu0 0.0
    %572 = vmatprep.subr.mxu0 0.0
    %573 = vmatpush1.msra.mxu0 0.0
    %574 = vmatprep.subr.mxu0 0.0
    %575 = vmatpush1.msra.mxu0 0.0
    %576 = vmatprep.subr.mxu0 0.0
    %577 = vmatpush1.msra.mxu0 0.0
    %578 = vmatprep.subr.mxu0 0.0
    %579 = vmatpush1.msra.mxu0 0.0
    %580 = vmatprep.subr.mxu0 0.0
    %581 = vmatpush1.msra.mxu0 0.0
    %582 = vmatprep.subr.mxu0 0.0
    %583 = vmatpush1.msra.mxu0 0.0
    %584 = vmatprep.subr.mxu0 0.0
    %585 = vmatpush1.msra.mxu0 0.0
    %586 = vmatprep.subr.mxu0 0.0
    %587 = vmatpush1.msra.mxu0 0.0
    %588 = vmatprep.subr.mxu0 0.0
    %589 = vmatpush1.msra.mxu0 %v556
    %590 = vmatprep.subr.mxu0 0.0
    %591 = vmatpush2.msra.mxu0 0.0
    %592 = vmatprep.subr.mxu0 0.0
    %593 = vmatpush2.msra.mxu0 0.0
    %594 = vmatprep.subr.mxu0 0.0
    %595 = vmatpush2.msra.mxu0 0.0
    %596 = vmatprep.subr.mxu0 0.0
    %597 = vmatpush2.msra.mxu0 0.0
    %598 = vmatprep.subr.mxu0 0.0
    %599 = vmatpush2.msra.mxu0 0.0
    %600 = vmatprep.subr.mxu0 0.0
    %601 = vmatpush2.msra.mxu0 0.0
    %602 = vmatprep.subr.mxu0 0.0
    %603 = vmatpush2.msra.mxu0 0.0
    %604 = vmatprep.subr.mxu0 0.0
    %605 = vmatpush2.msra.mxu0 0.0
    %606 = vmatprep.subr.mxu0 0.0
    %607 = vmatpush2.msra.mxu0 0.0
    %608 = vmatprep.subr.mxu0 0.0
    %609 = vmatpush2.msra.mxu0 0.0
    %610 = vmatprep.subr.mxu0 0.0
    %611 = vmatpush2.msra.mxu0 0.0
    %612 = vmatprep.subr.mxu0 0.0
    %613 = vmatpush2.msra.mxu0 0.0
    %614 = vmatprep.subr.mxu0 0.0
    %615 = vmatpush2.msra.mxu0 0.0
    %616 = vmatprep.subr.mxu0 0.0
    %617 = vmatpush2.msra.mxu0 0.0
    %618 = vmatprep.subr.mxu0 0.0
    %619 = vmatpush2.msra.mxu0 0.0
    %620 = vmatprep.subr.mxu0 0.0
    %621 = vmatpush2.msra.mxu0 0.0
    %622 = vmatprep.mubr.f32.mxu0 0.0
    %623 = vmatmul.mubr.f32.gmra.mxu0 %v544
    %v624 = vpop.f32.mrf.mxu0
    %v625 = vadd.f32 %v525, %v624
    %v626 = vpop.f32.mrf.mxu0
    %627 = vmatprep.mubr.f32.mxu0 0.0
    %628 = vmatmul.mubr.f32.gmra.mxu0 %v547
    %v629 = vpop.f32.mrf.mxu0
    %v630 = vadd.f32 %v530, %v629
    %v631 = vpop.f32.mrf.mxu0
    %632 = vmatprep.mubr.f32.mxu0 0.0
    %633 = vmatmul.mubr.f32.gmra.mxu0 %v550
    %v634 = vpop.f32.mrf.mxu0
    %v635 = vadd.f32 %v535, %v634
    %v636 = vpop.f32.mrf.mxu0
    %637 = vmatprep.mubr.f32.mxu0 0.0
    %638 = vmatmul.mubr.f32.gmra.mxu0 %v553
    %v639 = vpop.f32.mrf.mxu0
    %v640 = vadd.f32 %v540, %v639
    %v641 = vpop.f32.mrf.mxu0
    %642 = vdwg.mxu0
    %s643 = scalar_lea.vmem %s1, 64
    %v644 = vld [vmem:[%s643] sm:$0xff]
    %v645 = vld [vmem:[%s643 + $0x8] sm:$0xff]
    %v646 = vld [vmem:[%s643 + $0x10] sm:$0xff]
    %v647 = vld [vmem:[%s643 + $0x18] sm:$0xff]
    %v649 = vsel %vm238, %v644, 0
    %v652 = vsel %vm238, %v645, 0
    %v655 = vsel %vm238, %v646, 0
    %v658 = vsel %vm238, %v647, 0
    %660 = vmatprep.subr.mxu0 0.0
    %661 = vmatpush1.msra.mxu0 0.0
    %662 = vmatprep.subr.mxu0 0.0
    %663 = vmatpush1.msra.mxu0 0.0
    %664 = vmatprep.subr.mxu0 0.0
    %665 = vmatpush1.msra.mxu0 0.0
    %666 = vmatprep.subr.mxu0 0.0
    %667 = vmatpush1.msra.mxu0 0.0
    %668 = vmatprep.subr.mxu0 0.0
    %669 = vmatpush1.msra.mxu0 0.0
    %670 = vmatprep.subr.mxu0 0.0
    %671 = vmatpush1.msra.mxu0 0.0
    %672 = vmatprep.subr.mxu0 0.0
    %673 = vmatpush1.msra.mxu0 0.0
    %674 = vmatprep.subr.mxu0 0.0
    %675 = vmatpush1.msra.mxu0 0.0
    %676 = vmatprep.subr.mxu0 0.0
    %677 = vmatpush1.msra.mxu0 %v224
    %678 = vmatprep.subr.mxu0 0.0
    %679 = vmatpush1.msra.mxu0 %v223
    %680 = vmatprep.subr.mxu0 0.0
    %681 = vmatpush1.msra.mxu0 %v222
    %682 = vmatprep.subr.mxu0 0.0
    %683 = vmatpush1.msra.mxu0 %v221
    %684 = vmatprep.subr.mxu0 0.0
    %685 = vmatpush1.msra.mxu0 %v220
    %686 = vmatprep.subr.mxu0 0.0
    %687 = vmatpush1.msra.mxu0 %v219
    %688 = vmatprep.subr.mxu0 0.0
    %689 = vmatpush1.msra.mxu0 %v218
    %690 = vmatprep.subr.mxu0 0.0
    %691 = vmatpush1.msra.mxu0 %v217
    %692 = vmatprep.subr.mxu0 0.0
    %693 = vmatpush2.msra.mxu0 0.0
    %694 = vmatprep.subr.mxu0 0.0
    %695 = vmatpush2.msra.mxu0 0.0
    %696 = vmatprep.subr.mxu0 0.0
    %697 = vmatpush2.msra.mxu0 0.0
    %698 = vmatprep.subr.mxu0 0.0
    %699 = vmatpush2.msra.mxu0 0.0
    %700 = vmatprep.subr.mxu0 0.0
    %701 = vmatpush2.msra.mxu0 0.0
    %702 = vmatprep.subr.mxu0 0.0
    %703 = vmatpush2.msra.mxu0 0.0
    %704 = vmatprep.subr.mxu0 0.0
    %705 = vmatpush2.msra.mxu0 0.0
    %706 = vmatprep.subr.mxu0 0.0
    %707 = vmatpush2.msra.mxu0 0.0
    %708 = vmatprep.subr.mxu0 0.0
    %709 = vmatpush2.msra.mxu0 0.0
    %710 = vmatprep.subr.mxu0 0.0
    %711 = vmatpush2.msra.mxu0 0.0
    %712 = vmatprep.subr.mxu0 0.0
    %713 = vmatpush2.msra.mxu0 0.0
    %714 = vmatprep.subr.mxu0 0.0
    %715 = vmatpush2.msra.mxu0 0.0
    %716 = vmatprep.subr.mxu0 0.0
    %717 = vmatpush2.msra.mxu0 0.0
    %718 = vmatprep.subr.mxu0 0.0
    %719 = vmatpush2.msra.mxu0 0.0
    %720 = vmatprep.subr.mxu0 0.0
    %721 = vmatpush2.msra.mxu0 0.0
    %722 = vmatprep.subr.mxu0 0.0
    %723 = vmatpush2.msra.mxu0 0.0
    %724 = vmatprep.mubr.f32.mxu0 0.0
    %725 = vmatmul.mubr.f32.gmra.mxu0 %v649
    %v726 = vpop.f32.mrf.mxu0
    %v727 = vadd.f32 0.0, %v726
    %v728 = vpop.f32.mrf.mxu0
    %729 = vmatprep.mubr.f32.mxu0 0.0
    %730 = vmatmul.mubr.f32.gmra.mxu0 %v652
    %v731 = vpop.f32.mrf.mxu0
    %v732 = vadd.f32 0.0, %v731
    %v733 = vpop.f32.mrf.mxu0
    %734 = vmatprep.mubr.f32.mxu0 0.0
    %735 = vmatmul.mubr.f32.gmra.mxu0 %v655
    %v736 = vpop.f32.mrf.mxu0
    %v737 = vadd.f32 0.0, %v736
    %v738 = vpop.f32.mrf.mxu0
    %739 = vmatprep.mubr.f32.mxu0 0.0
    %740 = vmatmul.mubr.f32.gmra.mxu0 %v658
    %v741 = vpop.f32.mrf.mxu0
    %v742 = vadd.f32 0.0, %v741
    %v743 = vpop.f32.mrf.mxu0
    %744 = vdwg.mxu0
    %s745 = scalar_lea.vmem [#allocation2], 8
    %v746 = vld [vmem:[%s745] sm:$0xf]
    %v748 = vsel %vm441, %v727, 0
    %v751 = vsel %vm441, %v732, 0
    %v754 = vsel %vm441, %v737, 0
    %v757 = vsel %vm441, %v742, 0
    %v760 = vsel %vm454, %v746, 0
    %762 = vmatprep.subr.mxu0 0.0
    %763 = vmatpush1.msra.mxu0 0.0
    %764 = vmatprep.subr.mxu0 0.0
    %765 = vmatpush1.msra.mxu0 0.0
    %766 = vmatprep.subr.mxu0 0.0
    %767 = vmatpush1.msra.mxu0 0.0
    %768 = vmatprep.subr.mxu0 0.0
    %769 = vmatpush1.msra.mxu0 0.0
    %770 = vmatprep.subr.mxu0 0.0
    %771 = vmatpush1.msra.mxu0 0.0
    %772 = vmatprep.subr.mxu0 0.0
    %773 = vmatpush1.msra.mxu0 0.0
    %774 = vmatprep.subr.mxu0 0.0
    %775 = vmatpush1.msra.mxu0 0.0
    %776 = vmatprep.subr.mxu0 0.0
    %777 = vmatpush1.msra.mxu0 0.0
    %778 = vmatprep.subr.mxu0 0.0
    %779 = vmatpush1.msra.mxu0 0.0
    %780 = vmatprep.subr.mxu0 0.0
    %781 = vmatpush1.msra.mxu0 0.0
    %782 = vmatprep.subr.mxu0 0.0
    %783 = vmatpush1.msra.mxu0 0.0
    %784 = vmatprep.subr.mxu0 0.0
    %785 = vmatpush1.msra.mxu0 0.0
    %786 = vmatprep.subr.mxu0 0.0
    %787 = vmatpush1.msra.mxu0 0.0
    %788 = vmatprep.subr.mxu0 0.0
    %789 = vmatpush1.msra.mxu0 0.0
    %790 = vmatprep.subr.mxu0 0.0
    %791 = vmatpush1.msra.mxu0 0.0
    %792 = vmatprep.subr.mxu0 0.0
    %793 = vmatpush1.msra.mxu0 %v760
    %794 = vmatprep.subr.mxu0 0.0
    %795 = vmatpush2.msra.mxu0 0.0
    %796 = vmatprep.subr.mxu0 0.0
    %797 = vmatpush2.msra.mxu0 0.0
    %798 = vmatprep.subr.mxu0 0.0
    %799 = vmatpush2.msra.mxu0 0.0
    %800 = vmatprep.subr.mxu0 0.0
    %801 = vmatpush2.msra.mxu0 0.0
    %802 = vmatprep.subr.mxu0 0.0
    %803 = vmatpush2.msra.mxu0 0.0
    %804 = vmatprep.subr.mxu0 0.0
    %805 = vmatpush2.msra.mxu0 0.0
    %806 = vmatprep.subr.mxu0 0.0
    %807 = vmatpush2.msra.mxu0 0.0
    %808 = vmatprep.subr.mxu0 0.0
    %809 = vmatpush2.msra.mxu0 0.0
    %810 = vmatprep.subr.mxu0 0.0
    %811 = vmatpush2.msra.mxu0 0.0
    %812 = vmatprep.subr.mxu0 0.0
    %813 = vmatpush2.msra.mxu0 0.0
    %814 = vmatprep.subr.mxu0 0.0
    %815 = vmatpush2.msra.mxu0 0.0
    %816 = vmatprep.subr.mxu0 0.0
    %817 = vmatpush2.msra.mxu0 0.0
    %818 = vmatprep.subr.mxu0 0.0
    %819 = vmatpush2.msra.mxu0 0.0
    %820 = vmatprep.subr.mxu0 0.0
    %821 = vmatpush2.msra.mxu0 0.0
    %822 = vmatprep.subr.mxu0 0.0
    %823 = vmatpush2.msra.mxu0 0.0
    %824 = vmatprep.subr.mxu0 0.0
    %825 = vmatpush2.msra.mxu0 0.0
    %826 = vmatprep.mubr.f32.mxu0 0.0
    %827 = vmatmul.mubr.f32.gmra.mxu0 %v748
    %v828 = vpop.f32.mrf.mxu0
    %v829 = vadd.f32 0.0, %v828
    %v830 = vpop.f32.mrf.mxu0
    %831 = vmatprep.mubr.f32.mxu0 0.0
    %832 = vmatmul.mubr.f32.gmra.mxu0 %v751
    %v833 = vpop.f32.mrf.mxu0
    %v834 = vadd.f32 0.0, %v833
    %v835 = vpop.f32.mrf.mxu0
    %836 = vmatprep.mubr.f32.mxu0 0.0
    %837 = vmatmul.mubr.f32.gmra.mxu0 %v754
    %v838 = vpop.f32.mrf.mxu0
    %v839 = vadd.f32 0.0, %v838
    %v840 = vpop.f32.mrf.mxu0
    %841 = vmatprep.mubr.f32.mxu0 0.0
    %842 = vmatmul.mubr.f32.gmra.mxu0 %v757
    %v843 = vpop.f32.mrf.mxu0
    %v844 = vadd.f32 0.0, %v843
    %v845 = vpop.f32.mrf.mxu0
    %846 = vdwg.mxu0
    %v847 = vadd.f32 %v625, %v829
    %v848 = vadd.f32 %v630, %v834
    %v849 = vadd.f32 %v635, %v839
    %v850 = vadd.f32 %v640, %v844
    %vm851 = vcmask 64512
    %v852 = vsel %vm851, %v847, 0.0
    %v853 = vsel %vm851, %v848, 0.0
    %v854 = vadd.f32 %v852, %v853
    %v855 = vsel %vm851, %v849, 0.0
    %v856 = vadd.f32 %v854, %v855
    %v857 = vsel %vm851, %v850, 0.0
    %v858 = vadd.f32 %v856, %v857
    %v859 = vrot.slane %v858, 4
    %v860 = vadd.f32 %v858, %v859
    %v861 = vrot.slane %v860, 2
    %v862 = vadd.f32 %v860, %v861
    %v863 = vrot.slane %v862, 1
    %v864 = vadd.f32 %v862, %v863
    %v865 = vmul.f32 %v847, %v847
    %v866 = vmul.f32 %v848, %v848
    %v867 = vmul.f32 %v849, %v849
    %v868 = vmul.f32 %v850, %v850
    %v869 = vsel %vm851, %v865, 0.0
    %v870 = vsel %vm851, %v866, 0.0
    %v871 = vadd.f32 %v869, %v870
    %v872 = vsel %vm851, %v867, 0.0
    %v873 = vadd.f32 %v871, %v872
    %v874 = vsel %vm851, %v868, 0.0
    %v875 = vadd.f32 %v873, %v874
    %v876 = vrot.slane %v875, 4
    %v877 = vadd.f32 %v875, %v876
    %v878 = vrot.slane %v877, 2
    %v879 = vadd.f32 %v877, %v878
    %v880 = vrot.slane %v879, 1
    %v881 = vadd.f32 %v879, %v880
    %882 = vmatprep.subr.mxu0 0.0
    %883 = vmatpush1.msra.mxu0 0.0
    %884 = vmatprep.subr.mxu0 0.0
    %885 = vmatpush1.msra.mxu0 0.0
    %886 = vmatprep.subr.mxu0 0.0
    %887 = vmatpush1.msra.mxu0 0.0
    %888 = vmatprep.subr.mxu0 0.0
    %889 = vmatpush1.msra.mxu0 0.0
    %890 = vmatprep.subr.mxu0 0.0
    %891 = vmatpush1.msra.mxu0 0.0
    %892 = vmatprep.subr.mxu0 0.0
    %893 = vmatpush1.msra.mxu0 0.0
    %894 = vmatprep.subr.mxu0 0.0
    %895 = vmatpush1.msra.mxu0 0.0
    %896 = vmatprep.subr.mxu0 0.0
    %897 = vmatpush1.msra.mxu0 0.0
    %898 = vmatprep.subr.mxu0 0.0
    %899 = vmatpush1.msra.mxu0 %v233
    %900 = vmatprep.subr.mxu0 0.0
    %901 = vmatpush1.msra.mxu0 %v232
    %902 = vmatprep.subr.mxu0 0.0
    %903 = vmatpush1.msra.mxu0 %v231
    %904 = vmatprep.subr.mxu0 0.0
    %905 = vmatpush1.msra.mxu0 %v230
    %906 = vmatprep.subr.mxu0 0.0
    %907 = vmatpush1.msra.mxu0 %v229
    %908 = vmatprep.subr.mxu0 0.0
    %909 = vmatpush1.msra.mxu0 %v228
    %910 = vmatprep.subr.mxu0 0.0
    %911 = vmatpush1.msra.mxu0 %v227
    %912 = vmatprep.subr.mxu0 0.0
    %913 = vmatpush1.msra.mxu0 %v226
    %914 = vmatprep.subr.mxu0 0.0
    %915 = vmatpush2.msra.mxu0 0.0
    %916 = vmatprep.subr.mxu0 0.0
    %917 = vmatpush2.msra.mxu0 0.0
    %918 = vmatprep.subr.mxu0 0.0
    %919 = vmatpush2.msra.mxu0 0.0
    %920 = vmatprep.subr.mxu0 0.0
    %921 = vmatpush2.msra.mxu0 0.0
    %922 = vmatprep.subr.mxu0 0.0
    %923 = vmatpush2.msra.mxu0 0.0
    %924 = vmatprep.subr.mxu0 0.0
    %925 = vmatpush2.msra.mxu0 0.0
    %926 = vmatprep.subr.mxu0 0.0
    %927 = vmatpush2.msra.mxu0 0.0
    %928 = vmatprep.subr.mxu0 0.0
    %929 = vmatpush2.msra.mxu0 0.0
    %930 = vmatprep.subr.mxu0 0.0
    %931 = vmatpush2.msra.mxu0 0.0
    %932 = vmatprep.subr.mxu0 0.0
    %933 = vmatpush2.msra.mxu0 0.0
    %934 = vmatprep.subr.mxu0 0.0
    %935 = vmatpush2.msra.mxu0 0.0
    %936 = vmatprep.subr.mxu0 0.0
    %937 = vmatpush2.msra.mxu0 0.0
    %938 = vmatprep.subr.mxu0 0.0
    %939 = vmatpush2.msra.mxu0 0.0
    %940 = vmatprep.subr.mxu0 0.0
    %941 = vmatpush2.msra.mxu0 0.0
    %942 = vmatprep.subr.mxu0 0.0
    %943 = vmatpush2.msra.mxu0 0.0
    %944 = vmatprep.subr.mxu0 0.0
    %945 = vmatpush2.msra.mxu0 0.0
    %946 = vmatprep.mubr.f32.mxu0 0.0
    %947 = vmatmul.mubr.f32.gmra.mxu0 %v240
    %v948 = vpop.f32.mrf.mxu0
    %v949 = vadd.f32 0.0, %v948
    %v950 = vpop.f32.mrf.mxu0
    %951 = vmatprep.mubr.f32.mxu0 0.0
    %952 = vmatmul.mubr.f32.gmra.mxu0 %v243
    %v953 = vpop.f32.mrf.mxu0
    %v954 = vadd.f32 0.0, %v953
    %v955 = vpop.f32.mrf.mxu0
    %956 = vmatprep.mubr.f32.mxu0 0.0
    %957 = vmatmul.mubr.f32.gmra.mxu0 %v246
    %v958 = vpop.f32.mrf.mxu0
    %v959 = vadd.f32 0.0, %v958
    %v960 = vpop.f32.mrf.mxu0
    %961 = vmatprep.mubr.f32.mxu0 0.0
    %962 = vmatmul.mubr.f32.gmra.mxu0 %v249
    %v963 = vpop.f32.mrf.mxu0
    %v964 = vadd.f32 0.0, %v963
    %v965 = vpop.f32.mrf.mxu0
    %966 = vdwg.mxu0
    %967 = vmatprep.subr.mxu0 0.0
    %968 = vmatpush1.msra.mxu0 0.0
    %969 = vmatprep.subr.mxu0 0.0
    %970 = vmatpush1.msra.mxu0 0.0
    %971 = vmatprep.subr.mxu0 0.0
    %972 = vmatpush1.msra.mxu0 0.0
    %973 = vmatprep.subr.mxu0 0.0
    %974 = vmatpush1.msra.mxu0 0.0
    %975 = vmatprep.subr.mxu0 0.0
    %976 = vmatpush1.msra.mxu0 0.0
    %977 = vmatprep.subr.mxu0 0.0
    %978 = vmatpush1.msra.mxu0 0.0
    %979 = vmatprep.subr.mxu0 0.0
    %980 = vmatpush1.msra.mxu0 0.0
    %981 = vmatprep.subr.mxu0 0.0
    %982 = vmatpush1.msra.mxu0 0.0
    %983 = vmatprep.subr.mxu0 0.0
    %984 = vmatpush1.msra.mxu0 %v233
    %985 = vmatprep.subr.mxu0 0.0
    %986 = vmatpush1.msra.mxu0 %v232
    %987 = vmatprep.subr.mxu0 0.0
    %988 = vmatpush1.msra.mxu0 %v231
    %989 = vmatprep.subr.mxu0 0.0
    %990 = vmatpush1.msra.mxu0 %v230
    %991 = vmatprep.subr.mxu0 0.0
    %992 = vmatpush1.msra.mxu0 %v229
    %993 = vmatprep.subr.mxu0 0.0
    %994 = vmatpush1.msra.mxu0 %v228
    %995 = vmatprep.subr.mxu0 0.0
    %996 = vmatpush1.msra.mxu0 %v227
    %997 = vmatprep.subr.mxu0 0.0
    %998 = vmatpush1.msra.mxu0 %v226
    %999 = vmatprep.subr.mxu0 0.0
    %1000 = vmatpush2.msra.mxu0 0.0
    %1001 = vmatprep.subr.mxu0 0.0
    %1002 = vmatpush2.msra.mxu0 0.0
    %1003 = vmatprep.subr.mxu0 0.0
    %1004 = vmatpush2.msra.mxu0 0.0
    %1005 = vmatprep.subr.mxu0 0.0
    %1006 = vmatpush2.msra.mxu0 0.0
    %1007 = vmatprep.subr.mxu0 0.0
    %1008 = vmatpush2.msra.mxu0 0.0
    %1009 = vmatprep.subr.mxu0 0.0
    %1010 = vmatpush2.msra.mxu0 0.0
    %1011 = vmatprep.subr.mxu0 0.0
    %1012 = vmatpush2.msra.mxu0 0.0
    %1013 = vmatprep.subr.mxu0 0.0
    %1014 = vmatpush2.msra.mxu0 0.0
    %1015 = vmatprep.subr.mxu0 0.0
    %1016 = vmatpush2.msra.mxu0 0.0
    %1017 = vmatprep.subr.mxu0 0.0
    %1018 = vmatpush2.msra.mxu0 0.0
    %1019 = vmatprep.subr.mxu0 0.0
    %1020 = vmatpush2.msra.mxu0 0.0
    %1021 = vmatprep.subr.mxu0 0.0
    %1022 = vmatpush2.msra.mxu0 0.0
    %1023 = vmatprep.subr.mxu0 0.0
    %1024 = vmatpush2.msra.mxu0 0.0
    %1025 = vmatprep.subr.mxu0 0.0
    %1026 = vmatpush2.msra.mxu0 0.0
    %1027 = vmatprep.subr.mxu0 0.0
    %1028 = vmatpush2.msra.mxu0 0.0
    %1029 = vmatprep.subr.mxu0 0.0
    %1030 = vmatpush2.msra.mxu0 0.0
    %1031 = vmatprep.mubr.f32.mxu0 0.0
    %1032 = vmatmul.mubr.f32.gmra.mxu0 %v343
    %v1033 = vpop.f32.mrf.mxu0
    %v1034 = vadd.f32 0.0, %v1033
    %v1035 = vpop.f32.mrf.mxu0
    %1036 = vmatprep.mubr.f32.mxu0 0.0
    %1037 = vmatmul.mubr.f32.gmra.mxu0 %v346
    %v1038 = vpop.f32.mrf.mxu0
    %v1039 = vadd.f32 0.0, %v1038
    %v1040 = vpop.f32.mrf.mxu0
    %1041 = vmatprep.mubr.f32.mxu0 0.0
    %1042 = vmatmul.mubr.f32.gmra.mxu0 %v349
    %v1043 = vpop.f32.mrf.mxu0
    %v1044 = vadd.f32 0.0, %v1043
    %v1045 = vpop.f32.mrf.mxu0
    %1046 = vmatprep.mubr.f32.mxu0 0.0
    %1047 = vmatmul.mubr.f32.gmra.mxu0 %v352
    %v1048 = vpop.f32.mrf.mxu0
    %v1049 = vadd.f32 0.0, %v1048
    %v1050 = vpop.f32.mrf.mxu0
    %1051 = vdwg.mxu0
    %v1053 = vsel %vm441, %v1034, 0
    %v1056 = vsel %vm441, %v1039, 0
    %v1059 = vsel %vm441, %v1044, 0
    %v1062 = vsel %vm441, %v1049, 0
    %1064 = vmatprep.subr.mxu0 0.0
    %1065 = vmatpush1.msra.mxu0 0.0
    %1066 = vmatprep.subr.mxu0 0.0
    %1067 = vmatpush1.msra.mxu0 0.0
    %1068 = vmatprep.subr.mxu0 0.0
    %1069 = vmatpush1.msra.mxu0 0.0
    %1070 = vmatprep.subr.mxu0 0.0
    %1071 = vmatpush1.msra.mxu0 0.0
    %1072 = vmatprep.subr.mxu0 0.0
    %1073 = vmatpush1.msra.mxu0 0.0
    %1074 = vmatprep.subr.mxu0 0.0
    %1075 = vmatpush1.msra.mxu0 0.0
    %1076 = vmatprep.subr.mxu0 0.0
    %1077 = vmatpush1.msra.mxu0 0.0
    %1078 = vmatprep.subr.mxu0 0.0
    %1079 = vmatpush1.msra.mxu0 0.0
    %1080 = vmatprep.subr.mxu0 0.0
    %1081 = vmatpush1.msra.mxu0 0.0
    %1082 = vmatprep.subr.mxu0 0.0
    %1083 = vmatpush1.msra.mxu0 0.0
    %1084 = vmatprep.subr.mxu0 0.0
    %1085 = vmatpush1.msra.mxu0 0.0
    %1086 = vmatprep.subr.mxu0 0.0
    %1087 = vmatpush1.msra.mxu0 0.0
    %1088 = vmatprep.subr.mxu0 0.0
    %1089 = vmatpush1.msra.mxu0 0.0
    %1090 = vmatprep.subr.mxu0 0.0
    %1091 = vmatpush1.msra.mxu0 0.0
    %1092 = vmatprep.subr.mxu0 0.0
    %1093 = vmatpush1.msra.mxu0 0.0
    %1094 = vmatprep.subr.mxu0 0.0
    %1095 = vmatpush1.msra.mxu0 %v456
    %1096 = vmatprep.subr.mxu0 0.0
    %1097 = vmatpush2.msra.mxu0 0.0
    %1098 = vmatprep.subr.mxu0 0.0
    %1099 = vmatpush2.msra.mxu0 0.0
    %1100 = vmatprep.subr.mxu0 0.0
    %1101 = vmatpush2.msra.mxu0 0.0
    %1102 = vmatprep.subr.mxu0 0.0
    %1103 = vmatpush2.msra.mxu0 0.0
    %1104 = vmatprep.subr.mxu0 0.0
    %1105 = vmatpush2.msra.mxu0 0.0
    %1106 = vmatprep.subr.mxu0 0.0
    %1107 = vmatpush2.msra.mxu0 0.0
    %1108 = vmatprep.subr.mxu0 0.0
    %1109 = vmatpush2.msra.mxu0 0.0
    %1110 = vmatprep.subr.mxu0 0.0
    %1111 = vmatpush2.msra.mxu0 0.0
    %1112 = vmatprep.subr.mxu0 0.0
    %1113 = vmatpush2.msra.mxu0 0.0
    %1114 = vmatprep.subr.mxu0 0.0
    %1115 = vmatpush2.msra.mxu0 0.0
    %1116 = vmatprep.subr.mxu0 0.0
    %1117 = vmatpush2.msra.mxu0 0.0
    %1118 = vmatprep.subr.mxu0 0.0
    %1119 = vmatpush2.msra.mxu0 0.0
    %1120 = vmatprep.subr.mxu0 0.0
    %1121 = vmatpush2.msra.mxu0 0.0
    %1122 = vmatprep.subr.mxu0 0.0
    %1123 = vmatpush2.msra.mxu0 0.0
    %1124 = vmatprep.subr.mxu0 0.0
    %1125 = vmatpush2.msra.mxu0 0.0
    %1126 = vmatprep.subr.mxu0 0.0
    %1127 = vmatpush2.msra.mxu0 0.0
    %1128 = vmatprep.mubr.f32.mxu0 0.0
    %1129 = vmatmul.mubr.f32.gmra.mxu0 %v1053
    %v1130 = vpop.f32.mrf.mxu0
    %v1131 = vadd.f32 0.0, %v1130
    %v1132 = vpop.f32.mrf.mxu0
    %1133 = vmatprep.mubr.f32.mxu0 0.0
    %1134 = vmatmul.mubr.f32.gmra.mxu0 %v1056
    %v1135 = vpop.f32.mrf.mxu0
    %v1136 = vadd.f32 0.0, %v1135
    %v1137 = vpop.f32.mrf.mxu0
    %1138 = vmatprep.mubr.f32.mxu0 0.0
    %1139 = vmatmul.mubr.f32.gmra.mxu0 %v1059
    %v1140 = vpop.f32.mrf.mxu0
    %v1141 = vadd.f32 0.0, %v1140
    %v1142 = vpop.f32.mrf.mxu0
    %1143 = vmatprep.mubr.f32.mxu0 0.0
    %1144 = vmatmul.mubr.f32.gmra.mxu0 %v1062
    %v1145 = vpop.f32.mrf.mxu0
    %v1146 = vadd.f32 0.0, %v1145
    %v1147 = vpop.f32.mrf.mxu0
    %1148 = vdwg.mxu0
    %v1150 = vsel %vm441, %v949, 0
    %v1153 = vsel %vm441, %v954, 0
    %v1156 = vsel %vm441, %v959, 0
    %v1159 = vsel %vm441, %v964, 0
    %1161 = vmatprep.subr.mxu0 0.0
    %1162 = vmatpush1.msra.mxu0 0.0
    %1163 = vmatprep.subr.mxu0 0.0
    %1164 = vmatpush1.msra.mxu0 0.0
    %1165 = vmatprep.subr.mxu0 0.0
    %1166 = vmatpush1.msra.mxu0 0.0
    %1167 = vmatprep.subr.mxu0 0.0
    %1168 = vmatpush1.msra.mxu0 0.0
    %1169 = vmatprep.subr.mxu0 0.0
    %1170 = vmatpush1.msra.mxu0 0.0
    %1171 = vmatprep.subr.mxu0 0.0
    %1172 = vmatpush1.msra.mxu0 0.0
    %1173 = vmatprep.subr.mxu0 0.0
    %1174 = vmatpush1.msra.mxu0 0.0
    %1175 = vmatprep.subr.mxu0 0.0
    %1176 = vmatpush1.msra.mxu0 0.0
    %1177 = vmatprep.subr.mxu0 0.0
    %1178 = vmatpush1.msra.mxu0 0.0
    %1179 = vmatprep.subr.mxu0 0.0
    %1180 = vmatpush1.msra.mxu0 0.0
    %1181 = vmatprep.subr.mxu0 0.0
    %1182 = vmatpush1.msra.mxu0 0.0
    %1183 = vmatprep.subr.mxu0 0.0
    %1184 = vmatpush1.msra.mxu0 0.0
    %1185 = vmatprep.subr.mxu0 0.0
    %1186 = vmatpush1.msra.mxu0 0.0
    %1187 = vmatprep.subr.mxu0 0.0
    %1188 = vmatpush1.msra.mxu0 0.0
    %1189 = vmatprep.subr.mxu0 0.0
    %1190 = vmatpush1.msra.mxu0 0.0
    %1191 = vmatprep.subr.mxu0 0.0
    %1192 = vmatpush1.msra.mxu0 %v556
    %1193 = vmatprep.subr.mxu0 0.0
    %1194 = vmatpush2.msra.mxu0 0.0
    %1195 = vmatprep.subr.mxu0 0.0
    %1196 = vmatpush2.msra.mxu0 0.0
    %1197 = vmatprep.subr.mxu0 0.0
    %1198 = vmatpush2.msra.mxu0 0.0
    %1199 = vmatprep.subr.mxu0 0.0
    %1200 = vmatpush2.msra.mxu0 0.0
    %1201 = vmatprep.subr.mxu0 0.0
    %1202 = vmatpush2.msra.mxu0 0.0
    %1203 = vmatprep.subr.mxu0 0.0
    %1204 = vmatpush2.msra.mxu0 0.0
    %1205 = vmatprep.subr.mxu0 0.0
    %1206 = vmatpush2.msra.mxu0 0.0
    %1207 = vmatprep.subr.mxu0 0.0
    %1208 = vmatpush2.msra.mxu0 0.0
    %1209 = vmatprep.subr.mxu0 0.0
    %1210 = vmatpush2.msra.mxu0 0.0
    %1211 = vmatprep.subr.mxu0 0.0
    %1212 = vmatpush2.msra.mxu0 0.0
    %1213 = vmatprep.subr.mxu0 0.0
    %1214 = vmatpush2.msra.mxu0 0.0
    %1215 = vmatprep.subr.mxu0 0.0
    %1216 = vmatpush2.msra.mxu0 0.0
    %1217 = vmatprep.subr.mxu0 0.0
    %1218 = vmatpush2.msra.mxu0 0.0
    %1219 = vmatprep.subr.mxu0 0.0
    %1220 = vmatpush2.msra.mxu0 0.0
    %1221 = vmatprep.subr.mxu0 0.0
    %1222 = vmatpush2.msra.mxu0 0.0
    %1223 = vmatprep.subr.mxu0 0.0
    %1224 = vmatpush2.msra.mxu0 0.0
    %1225 = vmatprep.mubr.f32.mxu0 0.0
    %1226 = vmatmul.mubr.f32.gmra.mxu0 %v1150
    %v1227 = vpop.f32.mrf.mxu0
    %v1228 = vadd.f32 %v1131, %v1227
    %v1229 = vpop.f32.mrf.mxu0
    %1230 = vmatprep.mubr.f32.mxu0 0.0
    %1231 = vmatmul.mubr.f32.gmra.mxu0 %v1153
    %v1232 = vpop.f32.mrf.mxu0
    %v1233 = vadd.f32 %v1136, %v1232
    %v1234 = vpop.f32.mrf.mxu0
    %1235 = vmatprep.mubr.f32.mxu0 0.0
    %1236 = vmatmul.mubr.f32.gmra.mxu0 %v1156
    %v1237 = vpop.f32.mrf.mxu0
    %v1238 = vadd.f32 %v1141, %v1237
    %v1239 = vpop.f32.mrf.mxu0
    %1240 = vmatprep.mubr.f32.mxu0 0.0
    %1241 = vmatmul.mubr.f32.gmra.mxu0 %v1159
    %v1242 = vpop.f32.mrf.mxu0
    %v1243 = vadd.f32 %v1146, %v1242
    %v1244 = vpop.f32.mrf.mxu0
    %1245 = vdwg.mxu0
    %1246 = vmatprep.subr.mxu0 0.0
    %1247 = vmatpush1.msra.mxu0 0.0
    %1248 = vmatprep.subr.mxu0 0.0
    %1249 = vmatpush1.msra.mxu0 0.0
    %1250 = vmatprep.subr.mxu0 0.0
    %1251 = vmatpush1.msra.mxu0 0.0
    %1252 = vmatprep.subr.mxu0 0.0
    %1253 = vmatpush1.msra.mxu0 0.0
    %1254 = vmatprep.subr.mxu0 0.0
    %1255 = vmatpush1.msra.mxu0 0.0
    %1256 = vmatprep.subr.mxu0 0.0
    %1257 = vmatpush1.msra.mxu0 0.0
    %1258 = vmatprep.subr.mxu0 0.0
    %1259 = vmatpush1.msra.mxu0 0.0
    %1260 = vmatprep.subr.mxu0 0.0
    %1261 = vmatpush1.msra.mxu0 0.0
    %1262 = vmatprep.subr.mxu0 0.0
    %1263 = vmatpush1.msra.mxu0 %v233
    %1264 = vmatprep.subr.mxu0 0.0
    %1265 = vmatpush1.msra.mxu0 %v232
    %1266 = vmatprep.subr.mxu0 0.0
    %1267 = vmatpush1.msra.mxu0 %v231
    %1268 = vmatprep.subr.mxu0 0.0
    %1269 = vmatpush1.msra.mxu0 %v230
    %1270 = vmatprep.subr.mxu0 0.0
    %1271 = vmatpush1.msra.mxu0 %v229
    %1272 = vmatprep.subr.mxu0 0.0
    %1273 = vmatpush1.msra.mxu0 %v228
    %1274 = vmatprep.subr.mxu0 0.0
    %1275 = vmatpush1.msra.mxu0 %v227
    %1276 = vmatprep.subr.mxu0 0.0
    %1277 = vmatpush1.msra.mxu0 %v226
    %1278 = vmatprep.subr.mxu0 0.0
    %1279 = vmatpush2.msra.mxu0 0.0
    %1280 = vmatprep.subr.mxu0 0.0
    %1281 = vmatpush2.msra.mxu0 0.0
    %1282 = vmatprep.subr.mxu0 0.0
    %1283 = vmatpush2.msra.mxu0 0.0
    %1284 = vmatprep.subr.mxu0 0.0
    %1285 = vmatpush2.msra.mxu0 0.0
    %1286 = vmatprep.subr.mxu0 0.0
    %1287 = vmatpush2.msra.mxu0 0.0
    %1288 = vmatprep.subr.mxu0 0.0
    %1289 = vmatpush2.msra.mxu0 0.0
    %1290 = vmatprep.subr.mxu0 0.0
    %1291 = vmatpush2.msra.mxu0 0.0
    %1292 = vmatprep.subr.mxu0 0.0
    %1293 = vmatpush2.msra.mxu0 0.0
    %1294 = vmatprep.subr.mxu0 0.0
    %1295 = vmatpush2.msra.mxu0 0.0
    %1296 = vmatprep.subr.mxu0 0.0
    %1297 = vmatpush2.msra.mxu0 0.0
    %1298 = vmatprep.subr.mxu0 0.0
    %1299 = vmatpush2.msra.mxu0 0.0
    %1300 = vmatprep.subr.mxu0 0.0
    %1301 = vmatpush2.msra.mxu0 0.0
    %1302 = vmatprep.subr.mxu0 0.0
    %1303 = vmatpush2.msra.mxu0 0.0
    %1304 = vmatprep.subr.mxu0 0.0
    %1305 = vmatpush2.msra.mxu0 0.0
    %1306 = vmatprep.subr.mxu0 0.0
    %1307 = vmatpush2.msra.mxu0 0.0
    %1308 = vmatprep.subr.mxu0 0.0
    %1309 = vmatpush2.msra.mxu0 0.0
    %1310 = vmatprep.mubr.f32.mxu0 0.0
    %1311 = vmatmul.mubr.f32.gmra.mxu0 %v649
    %v1312 = vpop.f32.mrf.mxu0
    %v1313 = vadd.f32 0.0, %v1312
    %v1314 = vpop.f32.mrf.mxu0
    %1315 = vmatprep.mubr.f32.mxu0 0.0
    %1316 = vmatmul.mubr.f32.gmra.mxu0 %v652
    %v1317 = vpop.f32.mrf.mxu0
    %v1318 = vadd.f32 0.0, %v1317
    %v1319 = vpop.f32.mrf.mxu0
    %1320 = vmatprep.mubr.f32.mxu0 0.0
    %1321 = vmatmul.mubr.f32.gmra.mxu0 %v655
    %v1322 = vpop.f32.mrf.mxu0
    %v1323 = vadd.f32 0.0, %v1322
    %v1324 = vpop.f32.mrf.mxu0
    %1325 = vmatprep.mubr.f32.mxu0 0.0
    %1326 = vmatmul.mubr.f32.gmra.mxu0 %v658
    %v1327 = vpop.f32.mrf.mxu0
    %v1328 = vadd.f32 0.0, %v1327
    %v1329 = vpop.f32.mrf.mxu0
    %1330 = vdwg.mxu0
    %v1332 = vsel %vm441, %v1313, 0
    %v1335 = vsel %vm441, %v1318, 0
    %v1338 = vsel %vm441, %v1323, 0
    %v1341 = vsel %vm441, %v1328, 0
    %1343 = vmatprep.subr.mxu0 0.0
    %1344 = vmatpush1.msra.mxu0 0.0
    %1345 = vmatprep.subr.mxu0 0.0
    %1346 = vmatpush1.msra.mxu0 0.0
    %1347 = vmatprep.subr.mxu0 0.0
    %1348 = vmatpush1.msra.mxu0 0.0
    %1349 = vmatprep.subr.mxu0 0.0
    %1350 = vmatpush1.msra.mxu0 0.0
    %1351 = vmatprep.subr.mxu0 0.0
    %1352 = vmatpush1.msra.mxu0 0.0
    %1353 = vmatprep.subr.mxu0 0.0
    %1354 = vmatpush1.msra.mxu0 0.0
    %1355 = vmatprep.subr.mxu0 0.0
    %1356 = vmatpush1.msra.mxu0 0.0
    %1357 = vmatprep.subr.mxu0 0.0
    %1358 = vmatpush1.msra.mxu0 0.0
    %1359 = vmatprep.subr.mxu0 0.0
    %1360 = vmatpush1.msra.mxu0 0.0
    %1361 = vmatprep.subr.mxu0 0.0
    %1362 = vmatpush1.msra.mxu0 0.0
    %1363 = vmatprep.subr.mxu0 0.0
    %1364 = vmatpush1.msra.mxu0 0.0
    %1365 = vmatprep.subr.mxu0 0.0
    %1366 = vmatpush1.msra.mxu0 0.0
    %1367 = vmatprep.subr.mxu0 0.0
    %1368 = vmatpush1.msra.mxu0 0.0
    %1369 = vmatprep.subr.mxu0 0.0
    %1370 = vmatpush1.msra.mxu0 0.0
    %1371 = vmatprep.subr.mxu0 0.0
    %1372 = vmatpush1.msra.mxu0 0.0
    %1373 = vmatprep.subr.mxu0 0.0
    %1374 = vmatpush1.msra.mxu0 %v760
    %1375 = vmatprep.subr.mxu0 0.0
    %1376 = vmatpush2.msra.mxu0 0.0
    %1377 = vmatprep.subr.mxu0 0.0
    %1378 = vmatpush2.msra.mxu0 0.0
    %1379 = vmatprep.subr.mxu0 0.0
    %1380 = vmatpush2.msra.mxu0 0.0
    %1381 = vmatprep.subr.mxu0 0.0
    %1382 = vmatpush2.msra.mxu0 0.0
    %1383 = vmatprep.subr.mxu0 0.0
    %1384 = vmatpush2.msra.mxu0 0.0
    %1385 = vmatprep.subr.mxu0 0.0
    %1386 = vmatpush2.msra.mxu0 0.0
    %1387 = vmatprep.subr.mxu0 0.0
    %1388 = vmatpush2.msra.mxu0 0.0
    %1389 = vmatprep.subr.mxu0 0.0
    %1390 = vmatpush2.msra.mxu0 0.0
    %1391 = vmatprep.subr.mxu0 0.0
    %1392 = vmatpush2.msra.mxu0 0.0
    %1393 = vmatprep.subr.mxu0 0.0
    %1394 = vmatpush2.msra.mxu0 0.0
    %1395 = vmatprep.subr.mxu0 0.0
    %1396 = vmatpush2.msra.mxu0 0.0
    %1397 = vmatprep.subr.mxu0 0.0
    %1398 = vmatpush2.msra.mxu0 0.0
    %1399 = vmatprep.subr.mxu0 0.0
    %1400 = vmatpush2.msra.mxu0 0.0
    %1401 = vmatprep.subr.mxu0 0.0
    %1402 = vmatpush2.msra.mxu0 0.0
    %1403 = vmatprep.subr.mxu0 0.0
    %1404 = vmatpush2.msra.mxu0 0.0
    %1405 = vmatprep.subr.mxu0 0.0
    %1406 = vmatpush2.msra.mxu0 0.0
    %1407 = vmatprep.mubr.f32.mxu0 0.0
    %1408 = vmatmul.mubr.f32.gmra.mxu0 %v1332
    %v1409 = vpop.f32.mrf.mxu0
    %v1410 = vadd.f32 0.0, %v1409
    %v1411 = vpop.f32.mrf.mxu0
    %1412 = vmatprep.mubr.f32.mxu0 0.0
    %1413 = vmatmul.mubr.f32.gmra.mxu0 %v1335
    %v1414 = vpop.f32.mrf.mxu0
    %v1415 = vadd.f32 0.0, %v1414
    %v1416 = vpop.f32.mrf.mxu0
    %1417 = vmatprep.mubr.f32.mxu0 0.0
    %1418 = vmatmul.mubr.f32.gmra.mxu0 %v1338
    %v1419 = vpop.f32.mrf.mxu0
    %v1420 = vadd.f32 0.0, %v1419
    %v1421 = vpop.f32.mrf.mxu0
    %1422 = vmatprep.mubr.f32.mxu0 0.0
    %1423 = vmatmul.mubr.f32.gmra.mxu0 %v1341
    %v1424 = vpop.f32.mrf.mxu0
    %v1425 = vadd.f32 0.0, %v1424
    %v1426 = vpop.f32.mrf.mxu0
    %1427 = vdwg.mxu0
    %v1428 = vadd.f32 %v1228, %v1410
    %v1429 = vadd.f32 %v1233, %v1415
    %v1430 = vadd.f32 %v1238, %v1420
    %v1431 = vadd.f32 %v1243, %v1425
    %v1432 = vsel %vm851, %v1428, 0.0
    %v1433 = vsel %vm851, %v1429, 0.0
    %v1434 = vadd.f32 %v1432, %v1433
    %v1435 = vsel %vm851, %v1430, 0.0
    %v1436 = vadd.f32 %v1434, %v1435
    %v1437 = vsel %vm851, %v1431, 0.0
    %v1438 = vadd.f32 %v1436, %v1437
    %v1439 = vrot.slane %v1438, 4
    %v1440 = vadd.f32 %v1438, %v1439
    %v1441 = vrot.slane %v1440, 2
    %v1442 = vadd.f32 %v1440, %v1441
    %v1443 = vrot.slane %v1442, 1
    %v1444 = vadd.f32 %v1442, %v1443
    %v1445 = vmul.f32 %v1428, %v1428
    %v1446 = vmul.f32 %v1429, %v1429
    %v1447 = vmul.f32 %v1430, %v1430
    %v1448 = vmul.f32 %v1431, %v1431
    %v1449 = vsel %vm851, %v1445, 0.0
    %v1450 = vsel %vm851, %v1446, 0.0
    %v1451 = vadd.f32 %v1449, %v1450
    %v1452 = vsel %vm851, %v1447, 0.0
    %v1453 = vadd.f32 %v1451, %v1452
    %v1454 = vsel %vm851, %v1448, 0.0
    %v1455 = vadd.f32 %v1453, %v1454
    %v1456 = vrot.slane %v1455, 4
    %v1457 = vadd.f32 %v1455, %v1456
    %v1458 = vrot.slane %v1457, 2
    %v1459 = vadd.f32 %v1457, %v1458
    %v1460 = vrot.slane %v1459, 1
    %v1461 = vadd.f32 %v1459, %v1460
    %v1462 = vadd.f32 %v864, %v1444
    %v1463 = vadd.f32 %v881, %v1461
    %v1464 = vmul.f32 %v1462, 0.015625
    %v1465 = vmul.f32 %v1463, 0.015625
    %v1466 = vmul.f32 %v1464, %v1464
    %v1467 = vsub.f32 %v1465, %v1466
    %v1468 = vld [vmem:[#allocation5] sm:$0x1]
    %v1469 = vadd.f32 %v1467, 1e-05
    %v1470 = vrsqrt.pop %v1469
    %v1471 = vmul.f32 %v1468, %v1470
    %v1472 = vld [vmem:[#allocation7] sm:$0x1]
    %v1473 = vmul.f32 %v1464, %v1471
    %v1474 = vsub.f32 %v1472, %v1473
    %v1476 = vlaneseq
    %v1477 = vshrl.u32 %v1476, 7
    %v1478 = vsub.s32 0, %v1477
    %v1479 = vrot.slane %v1471, %v1478
    %v1481 = vmul.f32 %v847, %v1479
    %v1482 = vmul.f32 %v848, %v1479
    %v1483 = vmul.f32 %v849, %v1479
    %v1484 = vmul.f32 %v850, %v1479
    %v1486 = vlaneseq
    %v1487 = vshrl.u32 %v1486, 7
    %v1488 = vsub.s32 0, %v1487
    %v1489 = vrot.slane %v1474, %v1488
    %v1491 = vadd.f32 %v1481, %v1489
    %v1492 = vadd.f32 %v1482, %v1489
    %v1493 = vadd.f32 %v1483, %v1489
    %v1494 = vadd.f32 %v1484, %v1489
    %v1495 = vmax.f32 %v1491, 0.0
    %v1496 = vmax.f32 %v1492, 0.0
    %v1497 = vmax.f32 %v1493, 0.0
    %v1498 = vmax.f32 %v1494, 0.0
    %v1499 = vmul.f32 %v1428, %v1479
    %v1500 = vmul.f32 %v1429, %v1479
    %v1501 = vmul.f32 %v1430, %v1479
    %v1502 = vmul.f32 %v1431, %v1479
    %v1503 = vadd.f32 %v1499, %v1489
    %v1504 = vadd.f32 %v1500, %v1489
    %v1505 = vadd.f32 %v1501, %v1489
    %v1506 = vadd.f32 %v1502, %v1489
    %v1507 = vmax.f32 %v1503, 0.0
    %v1508 = vmax.f32 %v1504, 0.0
    %v1509 = vmax.f32 %v1505, 0.0
    %v1510 = vmax.f32 %v1506, 0.0
    %v1511 = vld [vmem:[%s5] sm:$0xff]
    %v1512 = vld [vmem:[%s5 + $0x8] sm:$0xff]
    %vm1513 = vcmask 261120
    %v1515 = vsel %vm1513, %v1511, 0
    %v1518 = vsel %vm1513, %v1512, 0
    %1520 = vmatprep.subr.mxu0 0.0
    %1521 = vmatpush1.msra.mxu0 0.0
    %1522 = vmatprep.subr.mxu0 0.0
    %1523 = vmatpush1.msra.mxu0 0.0
    %1524 = vmatprep.subr.mxu0 0.0
    %1525 = vmatpush1.msra.mxu0 0.0
    %1526 = vmatprep.subr.mxu0 0.0
    %1527 = vmatpush1.msra.mxu0 0.0
    %1528 = vmatprep.subr.mxu0 0.0
    %1529 = vmatpush1.msra.mxu0 0.0
    %1530 = vmatprep.subr.mxu0 0.0
    %1531 = vmatpush1.msra.mxu0 0.0
    %1532 = vmatprep.subr.mxu0 0.0
    %1533 = vmatpush1.msra.mxu0 0.0
    %1534 = vmatprep.subr.mxu0 0.0
    %1535 = vmatpush1.msra.mxu0 0.0
    %1536 = vmatprep.subr.mxu0 0.0
    %1537 = vmatpush1.msra.mxu0 0.0
    %1538 = vmatprep.subr.mxu0 0.0
    %1539 = vmatpush1.msra.mxu0 0.0
    %1540 = vmatprep.subr.mxu0 0.0
    %1541 = vmatpush1.msra.mxu0 0.0
    %1542 = vmatprep.subr.mxu0 0.0
    %1543 = vmatpush1.msra.mxu0 0.0
    %1544 = vmatprep.subr.mxu0 0.0
    %1545 = vmatpush1.msra.mxu0 %v1498
    %1546 = vmatprep.subr.mxu0 0.0
    %1547 = vmatpush1.msra.mxu0 %v1497
    %1548 = vmatprep.subr.mxu0 0.0
    %1549 = vmatpush1.msra.mxu0 %v1496
    %1550 = vmatprep.subr.mxu0 0.0
    %1551 = vmatpush1.msra.mxu0 %v1495
    %1552 = vmatprep.subr.mxu0 0.0
    %1553 = vmatpush2.msra.mxu0 0.0
    %1554 = vmatprep.subr.mxu0 0.0
    %1555 = vmatpush2.msra.mxu0 0.0
    %1556 = vmatprep.subr.mxu0 0.0
    %1557 = vmatpush2.msra.mxu0 0.0
    %1558 = vmatprep.subr.mxu0 0.0
    %1559 = vmatpush2.msra.mxu0 0.0
    %1560 = vmatprep.subr.mxu0 0.0
    %1561 = vmatpush2.msra.mxu0 0.0
    %1562 = vmatprep.subr.mxu0 0.0
    %1563 = vmatpush2.msra.mxu0 0.0
    %1564 = vmatprep.subr.mxu0 0.0
    %1565 = vmatpush2.msra.mxu0 0.0
    %1566 = vmatprep.subr.mxu0 0.0
    %1567 = vmatpush2.msra.mxu0 0.0
    %1568 = vmatprep.subr.mxu0 0.0
    %1569 = vmatpush2.msra.mxu0 0.0
    %1570 = vmatprep.subr.mxu0 0.0
    %1571 = vmatpush2.msra.mxu0 0.0
    %1572 = vmatprep.subr.mxu0 0.0
    %1573 = vmatpush2.msra.mxu0 0.0
    %1574 = vmatprep.subr.mxu0 0.0
    %1575 = vmatpush2.msra.mxu0 0.0
    %1576 = vmatprep.subr.mxu0 0.0
    %1577 = vmatpush2.msra.mxu0 0.0
    %1578 = vmatprep.subr.mxu0 0.0
    %1579 = vmatpush2.msra.mxu0 0.0
    %1580 = vmatprep.subr.mxu0 0.0
    %1581 = vmatpush2.msra.mxu0 0.0
    %1582 = vmatprep.subr.mxu0 0.0
    %1583 = vmatpush2.msra.mxu0 0.0
    %1584 = vmatprep.mubr.f32.mxu0 0.0
    %1585 = vmatmul.mubr.f32.gmra.mxu0 %v1515
    %v1586 = vpop.f32.mrf.mxu0
    %v1587 = vadd.f32 0.0, %v1586
    %v1588 = vpop.f32.mrf.mxu0
    %1589 = vmatprep.mubr.f32.mxu0 0.0
    %1590 = vmatmul.mubr.f32.gmra.mxu0 %v1518
    %v1591 = vpop.f32.mrf.mxu0
    %v1592 = vadd.f32 0.0, %v1591
    %v1593 = vpop.f32.mrf.mxu0
    %1594 = vdwg.mxu0
    %v1595 = vld [vmem:[#allocation8] sm:$0xff]
    %s1596 = scalar_lea.vmem %s5, 16
    %v1597 = vld [vmem:[%s1596] sm:$0xff]
    %v1598 = vld [vmem:[%s1596 + $0x8] sm:$0xff]
    %v1600 = vsel %vm1513, %v1597, 0
    %v1603 = vsel %vm1513, %v1598, 0
    %1605 = vmatprep.subr.mxu0 0.0
    %1606 = vmatpush1.msra.mxu0 0.0
    %1607 = vmatprep.subr.mxu0 0.0
    %1608 = vmatpush1.msra.mxu0 0.0
    %1609 = vmatprep.subr.mxu0 0.0
    %1610 = vmatpush1.msra.mxu0 0.0
    %1611 = vmatprep.subr.mxu0 0.0
    %1612 = vmatpush1.msra.mxu0 0.0
    %1613 = vmatprep.subr.mxu0 0.0
    %1614 = vmatpush1.msra.mxu0 0.0
    %1615 = vmatprep.subr.mxu0 0.0
    %1616 = vmatpush1.msra.mxu0 0.0
    %1617 = vmatprep.subr.mxu0 0.0
    %1618 = vmatpush1.msra.mxu0 0.0
    %1619 = vmatprep.subr.mxu0 0.0
    %1620 = vmatpush1.msra.mxu0 0.0
    %1621 = vmatprep.subr.mxu0 0.0
    %1622 = vmatpush1.msra.mxu0 0.0
    %1623 = vmatprep.subr.mxu0 0.0
    %1624 = vmatpush1.msra.mxu0 0.0
    %1625 = vmatprep.subr.mxu0 0.0
    %1626 = vmatpush1.msra.mxu0 0.0
    %1627 = vmatprep.subr.mxu0 0.0
    %1628 = vmatpush1.msra.mxu0 0.0
    %1629 = vmatprep.subr.mxu0 0.0
    %1630 = vmatpush1.msra.mxu0 %v1498
    %1631 = vmatprep.subr.mxu0 0.0
    %1632 = vmatpush1.msra.mxu0 %v1497
    %1633 = vmatprep.subr.mxu0 0.0
    %1634 = vmatpush1.msra.mxu0 %v1496
    %1635 = vmatprep.subr.mxu0 0.0
    %1636 = vmatpush1.msra.mxu0 %v1495
    %1637 = vmatprep.subr.mxu0 0.0
    %1638 = vmatpush2.msra.mxu0 0.0
    %1639 = vmatprep.subr.mxu0 0.0
    %1640 = vmatpush2.msra.mxu0 0.0
    %1641 = vmatprep.subr.mxu0 0.0
    %1642 = vmatpush2.msra.mxu0 0.0
    %1643 = vmatprep.subr.mxu0 0.0
    %1644 = vmatpush2.msra.mxu0 0.0
    %1645 = vmatprep.subr.mxu0 0.0
    %1646 = vmatpush2.msra.mxu0 0.0
    %1647 = vmatprep.subr.mxu0 0.0
    %1648 = vmatpush2.msra.mxu0 0.0
    %1649 = vmatprep.subr.mxu0 0.0
    %1650 = vmatpush2.msra.mxu0 0.0
    %1651 = vmatprep.subr.mxu0 0.0
    %1652 = vmatpush2.msra.mxu0 0.0
    %1653 = vmatprep.subr.mxu0 0.0
    %1654 = vmatpush2.msra.mxu0 0.0
    %1655 = vmatprep.subr.mxu0 0.0
    %1656 = vmatpush2.msra.mxu0 0.0
    %1657 = vmatprep.subr.mxu0 0.0
    %1658 = vmatpush2.msra.mxu0 0.0
    %1659 = vmatprep.subr.mxu0 0.0
    %1660 = vmatpush2.msra.mxu0 0.0
    %1661 = vmatprep.subr.mxu0 0.0
    %1662 = vmatpush2.msra.mxu0 0.0
    %1663 = vmatprep.subr.mxu0 0.0
    %1664 = vmatpush2.msra.mxu0 0.0
    %1665 = vmatprep.subr.mxu0 0.0
    %1666 = vmatpush2.msra.mxu0 0.0
    %1667 = vmatprep.subr.mxu0 0.0
    %1668 = vmatpush2.msra.mxu0 0.0
    %1669 = vmatprep.mubr.f32.mxu0 0.0
    %1670 = vmatmul.mubr.f32.gmra.mxu0 %v1600
    %v1671 = vpop.f32.mrf.mxu0
    %v1672 = vadd.f32 0.0, %v1671
    %v1673 = vpop.f32.mrf.mxu0
    %1674 = vmatprep.mubr.f32.mxu0 0.0
    %1675 = vmatmul.mubr.f32.gmra.mxu0 %v1603
    %v1676 = vpop.f32.mrf.mxu0
    %v1677 = vadd.f32 0.0, %v1676
    %v1678 = vpop.f32.mrf.mxu0
    %1679 = vdwg.mxu0
    %s1680 = scalar_lea.vmem [#allocation8], 8
    %v1681 = vld [vmem:[%s1680] sm:$0xff]
    %v1683 = vsel %vm851, %v1672, 0
    %v1686 = vsel %vm851, %v1677, 0
    %1688 = vmatprep.subr.mxu0 0.0
    %1689 = vmatpush1.msra.mxu0 0.0
    %1690 = vmatprep.subr.mxu0 0.0
    %1691 = vmatpush1.msra.mxu0 0.0
    %1692 = vmatprep.subr.mxu0 0.0
    %1693 = vmatpush1.msra.mxu0 0.0
    %1694 = vmatprep.subr.mxu0 0.0
    %1695 = vmatpush1.msra.mxu0 0.0
    %1696 = vmatprep.subr.mxu0 0.0
    %1697 = vmatpush1.msra.mxu0 0.0
    %1698 = vmatprep.subr.mxu0 0.0
    %1699 = vmatpush1.msra.mxu0 0.0
    %1700 = vmatprep.subr.mxu0 0.0
    %1701 = vmatpush1.msra.mxu0 0.0
    %1702 = vmatprep.subr.mxu0 0.0
    %1703 = vmatpush1.msra.mxu0 0.0
    %1704 = vmatprep.subr.mxu0 0.0
    %1705 = vmatpush1.msra.mxu0 0.0
    %1706 = vmatprep.subr.mxu0 0.0
    %1707 = vmatpush1.msra.mxu0 0.0
    %1708 = vmatprep.subr.mxu0 0.0
    %1709 = vmatpush1.msra.mxu0 0.0
    %1710 = vmatprep.subr.mxu0 0.0
    %1711 = vmatpush1.msra.mxu0 0.0
    %1712 = vmatprep.subr.mxu0 0.0
    %1713 = vmatpush1.msra.mxu0 0.0
    %1714 = vmatprep.subr.mxu0 0.0
    %1715 = vmatpush1.msra.mxu0 0.0
    %1716 = vmatprep.subr.mxu0 0.0
    %1717 = vmatpush1.msra.mxu0 0.0
    %1718 = vmatprep.subr.mxu0 0.0
    %1719 = vmatpush1.msra.mxu0 %v1681
    %1720 = vmatprep.subr.mxu0 0.0
    %1721 = vmatpush2.msra.mxu0 0.0
    %1722 = vmatprep.subr.mxu0 0.0
    %1723 = vmatpush2.msra.mxu0 0.0
    %1724 = vmatprep.subr.mxu0 0.0
    %1725 = vmatpush2.msra.mxu0 0.0
    %1726 = vmatprep.subr.mxu0 0.0
    %1727 = vmatpush2.msra.mxu0 0.0
    %1728 = vmatprep.subr.mxu0 0.0
    %1729 = vmatpush2.msra.mxu0 0.0
    %1730 = vmatprep.subr.mxu0 0.0
    %1731 = vmatpush2.msra.mxu0 0.0
    %1732 = vmatprep.subr.mxu0 0.0
    %1733 = vmatpush2.msra.mxu0 0.0
    %1734 = vmatprep.subr.mxu0 0.0
    %1735 = vmatpush2.msra.mxu0 0.0
    %1736 = vmatprep.subr.mxu0 0.0
    %1737 = vmatpush2.msra.mxu0 0.0
    %1738 = vmatprep.subr.mxu0 0.0
    %1739 = vmatpush2.msra.mxu0 0.0
    %1740 = vmatprep.subr.mxu0 0.0
    %1741 = vmatpush2.msra.mxu0 0.0
    %1742 = vmatprep.subr.mxu0 0.0
    %1743 = vmatpush2.msra.mxu0 0.0
    %1744 = vmatprep.subr.mxu0 0.0
    %1745 = vmatpush2.msra.mxu0 0.0
    %1746 = vmatprep.subr.mxu0 0.0
    %1747 = vmatpush2.msra.mxu0 0.0
    %1748 = vmatprep.subr.mxu0 0.0
    %1749 = vmatpush2.msra.mxu0 0.0
    %1750 = vmatprep.subr.mxu0 0.0
    %1751 = vmatpush2.msra.mxu0 0.0
    %1752 = vmatprep.mubr.f32.mxu0 0.0
    %1753 = vmatmul.mubr.f32.gmra.mxu0 %v1683
    %v1754 = vpop.f32.mrf.mxu0
    %v1755 = vadd.f32 0.0, %v1754
    %v1756 = vpop.f32.mrf.mxu0
    %1757 = vmatprep.mubr.f32.mxu0 0.0
    %1758 = vmatmul.mubr.f32.gmra.mxu0 %v1686
    %v1759 = vpop.f32.mrf.mxu0
    %v1760 = vadd.f32 0.0, %v1759
    %v1761 = vpop.f32.mrf.mxu0
    %1762 = vdwg.mxu0
    %v1764 = vsel %vm851, %v1587, 0
    %v1767 = vsel %vm851, %v1592, 0
    %1769 = vmatprep.subr.mxu0 0.0
    %1770 = vmatpush1.msra.mxu0 0.0
    %1771 = vmatprep.subr.mxu0 0.0
    %1772 = vmatpush1.msra.mxu0 0.0
    %1773 = vmatprep.subr.mxu0 0.0
    %1774 = vmatpush1.msra.mxu0 0.0
    %1775 = vmatprep.subr.mxu0 0.0
    %1776 = vmatpush1.msra.mxu0 0.0
    %1777 = vmatprep.subr.mxu0 0.0
    %1778 = vmatpush1.msra.mxu0 0.0
    %1779 = vmatprep.subr.mxu0 0.0
    %1780 = vmatpush1.msra.mxu0 0.0
    %1781 = vmatprep.subr.mxu0 0.0
    %1782 = vmatpush1.msra.mxu0 0.0
    %1783 = vmatprep.subr.mxu0 0.0
    %1784 = vmatpush1.msra.mxu0 0.0
    %1785 = vmatprep.subr.mxu0 0.0
    %1786 = vmatpush1.msra.mxu0 0.0
    %1787 = vmatprep.subr.mxu0 0.0
    %1788 = vmatpush1.msra.mxu0 0.0
    %1789 = vmatprep.subr.mxu0 0.0
    %1790 = vmatpush1.msra.mxu0 0.0
    %1791 = vmatprep.subr.mxu0 0.0
    %1792 = vmatpush1.msra.mxu0 0.0
    %1793 = vmatprep.subr.mxu0 0.0
    %1794 = vmatpush1.msra.mxu0 0.0
    %1795 = vmatprep.subr.mxu0 0.0
    %1796 = vmatpush1.msra.mxu0 0.0
    %1797 = vmatprep.subr.mxu0 0.0
    %1798 = vmatpush1.msra.mxu0 0.0
    %1799 = vmatprep.subr.mxu0 0.0
    %1800 = vmatpush1.msra.mxu0 %v1595
    %1801 = vmatprep.subr.mxu0 0.0
    %1802 = vmatpush2.msra.mxu0 0.0
    %1803 = vmatprep.subr.mxu0 0.0
    %1804 = vmatpush2.msra.mxu0 0.0
    %1805 = vmatprep.subr.mxu0 0.0
    %1806 = vmatpush2.msra.mxu0 0.0
    %1807 = vmatprep.subr.mxu0 0.0
    %1808 = vmatpush2.msra.mxu0 0.0
    %1809 = vmatprep.subr.mxu0 0.0
    %1810 = vmatpush2.msra.mxu0 0.0
    %1811 = vmatprep.subr.mxu0 0.0
    %1812 = vmatpush2.msra.mxu0 0.0
    %1813 = vmatprep.subr.mxu0 0.0
    %1814 = vmatpush2.msra.mxu0 0.0
    %1815 = vmatprep.subr.mxu0 0.0
    %1816 = vmatpush2.msra.mxu0 0.0
    %1817 = vmatprep.subr.mxu0 0.0
    %1818 = vmatpush2.msra.mxu0 0.0
    %1819 = vmatprep.subr.mxu0 0.0
    %1820 = vmatpush2.msra.mxu0 0.0
    %1821 = vmatprep.subr.mxu0 0.0
    %1822 = vmatpush2.msra.mxu0 0.0
    %1823 = vmatprep.subr.mxu0 0.0
    %1824 = vmatpush2.msra.mxu0 0.0
    %1825 = vmatprep.subr.mxu0 0.0
    %1826 = vmatpush2.msra.mxu0 0.0
    %1827 = vmatprep.subr.mxu0 0.0
    %1828 = vmatpush2.msra.mxu0 0.0
    %1829 = vmatprep.subr.mxu0 0.0
    %1830 = vmatpush2.msra.mxu0 0.0
    %1831 = vmatprep.subr.mxu0 0.0
    %1832 = vmatpush2.msra.mxu0 0.0
    %1833 = vmatprep.mubr.f32.mxu0 0.0
    %1834 = vmatmul.mubr.f32.gmra.mxu0 %v1764
    %v1835 = vpop.f32.mrf.mxu0
    %v1836 = vadd.f32 %v1755, %v1835
    %v1837 = vpop.f32.mrf.mxu0
    %1838 = vmatprep.mubr.f32.mxu0 0.0
    %1839 = vmatmul.mubr.f32.gmra.mxu0 %v1767
    %v1840 = vpop.f32.mrf.mxu0
    %v1841 = vadd.f32 %v1760, %v1840
    %v1842 = vpop.f32.mrf.mxu0
    %1843 = vdwg.mxu0
    %s1844 = scalar_lea.vmem %s5, 32
    %v1845 = vld [vmem:[%s1844] sm:$0xff]
    %v1846 = vld [vmem:[%s1844 + $0x8] sm:$0xff]
    %v1848 = vsel %vm1513, %v1845, 0
    %v1851 = vsel %vm1513, %v1846, 0
    %1853 = vmatprep.subr.mxu0 0.0
    %1854 = vmatpush1.msra.mxu0 0.0
    %1855 = vmatprep.subr.mxu0 0.0
    %1856 = vmatpush1.msra.mxu0 0.0
    %1857 = vmatprep.subr.mxu0 0.0
    %1858 = vmatpush1.msra.mxu0 0.0
    %1859 = vmatprep.subr.mxu0 0.0
    %1860 = vmatpush1.msra.mxu0 0.0
    %1861 = vmatprep.subr.mxu0 0.0
    %1862 = vmatpush1.msra.mxu0 0.0
    %1863 = vmatprep.subr.mxu0 0.0
    %1864 = vmatpush1.msra.mxu0 0.0
    %1865 = vmatprep.subr.mxu0 0.0
    %1866 = vmatpush1.msra.mxu0 0.0
    %1867 = vmatprep.subr.mxu0 0.0
    %1868 = vmatpush1.msra.mxu0 0.0
    %1869 = vmatprep.subr.mxu0 0.0
    %1870 = vmatpush1.msra.mxu0 0.0
    %1871 = vmatprep.subr.mxu0 0.0
    %1872 = vmatpush1.msra.mxu0 0.0
    %1873 = vmatprep.subr.mxu0 0.0
    %1874 = vmatpush1.msra.mxu0 0.0
    %1875 = vmatprep.subr.mxu0 0.0
    %1876 = vmatpush1.msra.mxu0 0.0
    %1877 = vmatprep.subr.mxu0 0.0
    %1878 = vmatpush1.msra.mxu0 %v1498
    %1879 = vmatprep.subr.mxu0 0.0
    %1880 = vmatpush1.msra.mxu0 %v1497
    %1881 = vmatprep.subr.mxu0 0.0
    %1882 = vmatpush1.msra.mxu0 %v1496
    %1883 = vmatprep.subr.mxu0 0.0
    %1884 = vmatpush1.msra.mxu0 %v1495
    %1885 = vmatprep.subr.mxu0 0.0
    %1886 = vmatpush2.msra.mxu0 0.0
    %1887 = vmatprep.subr.mxu0 0.0
    %1888 = vmatpush2.msra.mxu0 0.0
    %1889 = vmatprep.subr.mxu0 0.0
    %1890 = vmatpush2.msra.mxu0 0.0
    %1891 = vmatprep.subr.mxu0 0.0
    %1892 = vmatpush2.msra.mxu0 0.0
    %1893 = vmatprep.subr.mxu0 0.0
    %1894 = vmatpush2.msra.mxu0 0.0
    %1895 = vmatprep.subr.mxu0 0.0
    %1896 = vmatpush2.msra.mxu0 0.0
    %1897 = vmatprep.subr.mxu0 0.0
    %1898 = vmatpush2.msra.mxu0 0.0
    %1899 = vmatprep.subr.mxu0 0.0
    %1900 = vmatpush2.msra.mxu0 0.0
    %1901 = vmatprep.subr.mxu0 0.0
    %1902 = vmatpush2.msra.mxu0 0.0
    %1903 = vmatprep.subr.mxu0 0.0
    %1904 = vmatpush2.msra.mxu0 0.0
    %1905 = vmatprep.subr.mxu0 0.0
    %1906 = vmatpush2.msra.mxu0 0.0
    %1907 = vmatprep.subr.mxu0 0.0
    %1908 = vmatpush2.msra.mxu0 0.0
    %1909 = vmatprep.subr.mxu0 0.0
    %1910 = vmatpush2.msra.mxu0 0.0
    %1911 = vmatprep.subr.mxu0 0.0
    %1912 = vmatpush2.msra.mxu0 0.0
    %1913 = vmatprep.subr.mxu0 0.0
    %1914 = vmatpush2.msra.mxu0 0.0
    %1915 = vmatprep.subr.mxu0 0.0
    %1916 = vmatpush2.msra.mxu0 0.0
    %1917 = vmatprep.mubr.f32.mxu0 0.0
    %1918 = vmatmul.mubr.f32.gmra.mxu0 %v1848
    %v1919 = vpop.f32.mrf.mxu0
    %v1920 = vadd.f32 0.0, %v1919
    %v1921 = vpop.f32.mrf.mxu0
    %1922 = vmatprep.mubr.f32.mxu0 0.0
    %1923 = vmatmul.mubr.f32.gmra.mxu0 %v1851
    %v1924 = vpop.f32.mrf.mxu0
    %v1925 = vadd.f32 0.0, %v1924
    %v1926 = vpop.f32.mrf.mxu0
    %1927 = vdwg.mxu0
    %s1928 = scalar_lea.vmem [#allocation8], 16
    %v1929 = vld [vmem:[%s1928] sm:$0xff]
    %v1931 = vsel %vm851, %v1920, 0
    %v1934 = vsel %vm851, %v1925, 0
    %1936 = vmatprep.subr.mxu0 0.0
    %1937 = vmatpush1.msra.mxu0 0.0
    %1938 = vmatprep.subr.mxu0 0.0
    %1939 = vmatpush1.msra.mxu0 0.0
    %1940 = vmatprep.subr.mxu0 0.0
    %1941 = vmatpush1.msra.mxu0 0.0
    %1942 = vmatprep.subr.mxu0 0.0
    %1943 = vmatpush1.msra.mxu0 0.0
    %1944 = vmatprep.subr.mxu0 0.0
    %1945 = vmatpush1.msra.mxu0 0.0
    %1946 = vmatprep.subr.mxu0 0.0
    %1947 = vmatpush1.msra.mxu0 0.0
    %1948 = vmatprep.subr.mxu0 0.0
    %1949 = vmatpush1.msra.mxu0 0.0
    %1950 = vmatprep.subr.mxu0 0.0
    %1951 = vmatpush1.msra.mxu0 0.0
    %1952 = vmatprep.subr.mxu0 0.0
    %1953 = vmatpush1.msra.mxu0 0.0
    %1954 = vmatprep.subr.mxu0 0.0
    %1955 = vmatpush1.msra.mxu0 0.0
    %1956 = vmatprep.subr.mxu0 0.0
    %1957 = vmatpush1.msra.mxu0 0.0
    %1958 = vmatprep.subr.mxu0 0.0
    %1959 = vmatpush1.msra.mxu0 0.0
    %1960 = vmatprep.subr.mxu0 0.0
    %1961 = vmatpush1.msra.mxu0 0.0
    %1962 = vmatprep.subr.mxu0 0.0
    %1963 = vmatpush1.msra.mxu0 0.0
    %1964 = vmatprep.subr.mxu0 0.0
    %1965 = vmatpush1.msra.mxu0 0.0
    %1966 = vmatprep.subr.mxu0 0.0
    %1967 = vmatpush1.msra.mxu0 %v1929
    %1968 = vmatprep.subr.mxu0 0.0
    %1969 = vmatpush2.msra.mxu0 0.0
    %1970 = vmatprep.subr.mxu0 0.0
    %1971 = vmatpush2.msra.mxu0 0.0
    %1972 = vmatprep.subr.mxu0 0.0
    %1973 = vmatpush2.msra.mxu0 0.0
    %1974 = vmatprep.subr.mxu0 0.0
    %1975 = vmatpush2.msra.mxu0 0.0
    %1976 = vmatprep.subr.mxu0 0.0
    %1977 = vmatpush2.msra.mxu0 0.0
    %1978 = vmatprep.subr.mxu0 0.0
    %1979 = vmatpush2.msra.mxu0 0.0
    %1980 = vmatprep.subr.mxu0 0.0
    %1981 = vmatpush2.msra.mxu0 0.0
    %1982 = vmatprep.subr.mxu0 0.0
    %1983 = vmatpush2.msra.mxu0 0.0
    %1984 = vmatprep.subr.mxu0 0.0
    %1985 = vmatpush2.msra.mxu0 0.0
    %1986 = vmatprep.subr.mxu0 0.0
    %1987 = vmatpush2.msra.mxu0 0.0
    %1988 = vmatprep.subr.mxu0 0.0
    %1989 = vmatpush2.msra.mxu0 0.0
    %1990 = vmatprep.subr.mxu0 0.0
    %1991 = vmatpush2.msra.mxu0 0.0
    %1992 = vmatprep.subr.mxu0 0.0
    %1993 = vmatpush2.msra.mxu0 0.0
    %1994 = vmatprep.subr.mxu0 0.0
    %1995 = vmatpush2.msra.mxu0 0.0
    %1996 = vmatprep.subr.mxu0 0.0
    %1997 = vmatpush2.msra.mxu0 0.0
    %1998 = vmatprep.subr.mxu0 0.0
    %1999 = vmatpush2.msra.mxu0 0.0
    %2000 = vmatprep.mubr.f32.mxu0 0.0
    %2001 = vmatmul.mubr.f32.gmra.mxu0 %v1931
    %v2002 = vpop.f32.mrf.mxu0
    %v2003 = vadd.f32 0.0, %v2002
    %v2004 = vpop.f32.mrf.mxu0
    %2005 = vmatprep.mubr.f32.mxu0 0.0
    %2006 = vmatmul.mubr.f32.gmra.mxu0 %v1934
    %v2007 = vpop.f32.mrf.mxu0
    %v2008 = vadd.f32 0.0, %v2007
    %v2009 = vpop.f32.mrf.mxu0
    %2010 = vdwg.mxu0
    %v2011 = vadd.f32 %v1836, %v2003
    %v2012 = vadd.f32 %v1841, %v2008
    %vm2013 = vcmask 130048
    %v2014 = vsel %vm2013, %v2011, 0.0
    %v2015 = vsel %vm2013, %v2012, 0.0
    %v2016 = vadd.f32 %v2014, %v2015
    %v2017 = vrot.slane %v2016, 4
    %v2018 = vadd.f32 %v2016, %v2017
    %v2019 = vrot.slane %v2018, 2
    %v2020 = vadd.f32 %v2018, %v2019
    %v2021 = vrot.slane %v2020, 1
    %v2022 = vadd.f32 %v2020, %v2021
    %v2023 = vmul.f32 %v2011, %v2011
    %v2024 = vmul.f32 %v2012, %v2012
    %v2025 = vsel %vm2013, %v2023, 0.0
    %v2026 = vsel %vm2013, %v2024, 0.0
    %v2027 = vadd.f32 %v2025, %v2026
    %v2028 = vrot.slane %v2027, 4
    %v2029 = vadd.f32 %v2027, %v2028
    %v2030 = vrot.slane %v2029, 2
    %v2031 = vadd.f32 %v2029, %v2030
    %v2032 = vrot.slane %v2031, 1
    %v2033 = vadd.f32 %v2031, %v2032
    %2034 = vmatprep.subr.mxu0 0.0
    %2035 = vmatpush1.msra.mxu0 0.0
    %2036 = vmatprep.subr.mxu0 0.0
    %2037 = vmatpush1.msra.mxu0 0.0
    %2038 = vmatprep.subr.mxu0 0.0
    %2039 = vmatpush1.msra.mxu0 0.0
    %2040 = vmatprep.subr.mxu0 0.0
    %2041 = vmatpush1.msra.mxu0 0.0
    %2042 = vmatprep.subr.mxu0 0.0
    %2043 = vmatpush1.msra.mxu0 0.0
    %2044 = vmatprep.subr.mxu0 0.0
    %2045 = vmatpush1.msra.mxu0 0.0
    %2046 = vmatprep.subr.mxu0 0.0
    %2047 = vmatpush1.msra.mxu0 0.0
    %2048 = vmatprep.subr.mxu0 0.0
    %2049 = vmatpush1.msra.mxu0 0.0
    %2050 = vmatprep.subr.mxu0 0.0
    %2051 = vmatpush1.msra.mxu0 0.0
    %2052 = vmatprep.subr.mxu0 0.0
    %2053 = vmatpush1.msra.mxu0 0.0
    %2054 = vmatprep.subr.mxu0 0.0
    %2055 = vmatpush1.msra.mxu0 0.0
    %2056 = vmatprep.subr.mxu0 0.0
    %2057 = vmatpush1.msra.mxu0 0.0
    %2058 = vmatprep.subr.mxu0 0.0
    %2059 = vmatpush1.msra.mxu0 %v1510
    %2060 = vmatprep.subr.mxu0 0.0
    %2061 = vmatpush1.msra.mxu0 %v1509
    %2062 = vmatprep.subr.mxu0 0.0
    %2063 = vmatpush1.msra.mxu0 %v1508
    %2064 = vmatprep.subr.mxu0 0.0
    %2065 = vmatpush1.msra.mxu0 %v1507
    %2066 = vmatprep.subr.mxu0 0.0
    %2067 = vmatpush2.msra.mxu0 0.0
    %2068 = vmatprep.subr.mxu0 0.0
    %2069 = vmatpush2.msra.mxu0 0.0
    %2070 = vmatprep.subr.mxu0 0.0
    %2071 = vmatpush2.msra.mxu0 0.0
    %2072 = vmatprep.subr.mxu0 0.0
    %2073 = vmatpush2.msra.mxu0 0.0
    %2074 = vmatprep.subr.mxu0 0.0
    %2075 = vmatpush2.msra.mxu0 0.0
    %2076 = vmatprep.subr.mxu0 0.0
    %2077 = vmatpush2.msra.mxu0 0.0
    %2078 = vmatprep.subr.mxu0 0.0
    %2079 = vmatpush2.msra.mxu0 0.0
    %2080 = vmatprep.subr.mxu0 0.0
    %2081 = vmatpush2.msra.mxu0 0.0
    %2082 = vmatprep.subr.mxu0 0.0
    %2083 = vmatpush2.msra.mxu0 0.0
    %2084 = vmatprep.subr.mxu0 0.0
    %2085 = vmatpush2.msra.mxu0 0.0
    %2086 = vmatprep.subr.mxu0 0.0
    %2087 = vmatpush2.msra.mxu0 0.0
    %2088 = vmatprep.subr.mxu0 0.0
    %2089 = vmatpush2.msra.mxu0 0.0
    %2090 = vmatprep.subr.mxu0 0.0
    %2091 = vmatpush2.msra.mxu0 0.0
    %2092 = vmatprep.subr.mxu0 0.0
    %2093 = vmatpush2.msra.mxu0 0.0
    %2094 = vmatprep.subr.mxu0 0.0
    %2095 = vmatpush2.msra.mxu0 0.0
    %2096 = vmatprep.subr.mxu0 0.0
    %2097 = vmatpush2.msra.mxu0 0.0
    %2098 = vmatprep.mubr.f32.mxu0 0.0
    %2099 = vmatmul.mubr.f32.gmra.mxu0 %v1515
    %v2100 = vpop.f32.mrf.mxu0
    %v2101 = vadd.f32 0.0, %v2100
    %v2102 = vpop.f32.mrf.mxu0
    %2103 = vmatprep.mubr.f32.mxu0 0.0
    %2104 = vmatmul.mubr.f32.gmra.mxu0 %v1518
    %v2105 = vpop.f32.mrf.mxu0
    %v2106 = vadd.f32 0.0, %v2105
    %v2107 = vpop.f32.mrf.mxu0
    %2108 = vdwg.mxu0
    %2109 = vmatprep.subr.mxu0 0.0
    %2110 = vmatpush1.msra.mxu0 0.0
    %2111 = vmatprep.subr.mxu0 0.0
    %2112 = vmatpush1.msra.mxu0 0.0
    %2113 = vmatprep.subr.mxu0 0.0
    %2114 = vmatpush1.msra.mxu0 0.0
    %2115 = vmatprep.subr.mxu0 0.0
    %2116 = vmatpush1.msra.mxu0 0.0
    %2117 = vmatprep.subr.mxu0 0.0
    %2118 = vmatpush1.msra.mxu0 0.0
    %2119 = vmatprep.subr.mxu0 0.0
    %2120 = vmatpush1.msra.mxu0 0.0
    %2121 = vmatprep.subr.mxu0 0.0
    %2122 = vmatpush1.msra.mxu0 0.0
    %2123 = vmatprep.subr.mxu0 0.0
    %2124 = vmatpush1.msra.mxu0 0.0
    %2125 = vmatprep.subr.mxu0 0.0
    %2126 = vmatpush1.msra.mxu0 0.0
    %2127 = vmatprep.subr.mxu0 0.0
    %2128 = vmatpush1.msra.mxu0 0.0
    %2129 = vmatprep.subr.mxu0 0.0
    %2130 = vmatpush1.msra.mxu0 0.0
    %2131 = vmatprep.subr.mxu0 0.0
    %2132 = vmatpush1.msra.mxu0 0.0
    %2133 = vmatprep.subr.mxu0 0.0
    %2134 = vmatpush1.msra.mxu0 %v1510
    %2135 = vmatprep.subr.mxu0 0.0
    %2136 = vmatpush1.msra.mxu0 %v1509
    %2137 = vmatprep.subr.mxu0 0.0
    %2138 = vmatpush1.msra.mxu0 %v1508
    %2139 = vmatprep.subr.mxu0 0.0
    %2140 = vmatpush1.msra.mxu0 %v1507
    %2141 = vmatprep.subr.mxu0 0.0
    %2142 = vmatpush2.msra.mxu0 0.0
    %2143 = vmatprep.subr.mxu0 0.0
    %2144 = vmatpush2.msra.mxu0 0.0
    %2145 = vmatprep.subr.mxu0 0.0
    %2146 = vmatpush2.msra.mxu0 0.0
    %2147 = vmatprep.subr.mxu0 0.0
    %2148 = vmatpush2.msra.mxu0 0.0
    %2149 = vmatprep.subr.mxu0 0.0
    %2150 = vmatpush2.msra.mxu0 0.0
    %2151 = vmatprep.subr.mxu0 0.0
    %2152 = vmatpush2.msra.mxu0 0.0
    %2153 = vmatprep.subr.mxu0 0.0
    %2154 = vmatpush2.msra.mxu0 0.0
    %2155 = vmatprep.subr.mxu0 0.0
    %2156 = vmatpush2.msra.mxu0 0.0
    %2157 = vmatprep.subr.mxu0 0.0
    %2158 = vmatpush2.msra.mxu0 0.0
    %2159 = vmatprep.subr.mxu0 0.0
    %2160 = vmatpush2.msra.mxu0 0.0
    %2161 = vmatprep.subr.mxu0 0.0
    %2162 = vmatpush2.msra.mxu0 0.0
    %2163 = vmatprep.subr.mxu0 0.0
    %2164 = vmatpush2.msra.mxu0 0.0
    %2165 = vmatprep.subr.mxu0 0.0
    %2166 = vmatpush2.msra.mxu0 0.0
    %2167 = vmatprep.subr.mxu0 0.0
    %2168 = vmatpush2.msra.mxu0 0.0
    %2169 = vmatprep.subr.mxu0 0.0
    %2170 = vmatpush2.msra.mxu0 0.0
    %2171 = vmatprep.subr.mxu0 0.0
    %2172 = vmatpush2.msra.mxu0 0.0
    %2173 = vmatprep.mubr.f32.mxu0 0.0
    %2174 = vmatmul.mubr.f32.gmra.mxu0 %v1600
    %v2175 = vpop.f32.mrf.mxu0
    %v2176 = vadd.f32 0.0, %v2175
    %v2177 = vpop.f32.mrf.mxu0
    %2178 = vmatprep.mubr.f32.mxu0 0.0
    %2179 = vmatmul.mubr.f32.gmra.mxu0 %v1603
    %v2180 = vpop.f32.mrf.mxu0
    %v2181 = vadd.f32 0.0, %v2180
    %v2182 = vpop.f32.mrf.mxu0
    %2183 = vdwg.mxu0
    %v2185 = vsel %vm851, %v2176, 0
    %v2188 = vsel %vm851, %v2181, 0
    %2190 = vmatprep.subr.mxu0 0.0
    %2191 = vmatpush1.msra.mxu0 0.0
    %2192 = vmatprep.subr.mxu0 0.0
    %2193 = vmatpush1.msra.mxu0 0.0
    %2194 = vmatprep.subr.mxu0 0.0
    %2195 = vmatpush1.msra.mxu0 0.0
    %2196 = vmatprep.subr.mxu0 0.0
    %2197 = vmatpush1.msra.mxu0 0.0
    %2198 = vmatprep.subr.mxu0 0.0
    %2199 = vmatpush1.msra.mxu0 0.0
    %2200 = vmatprep.subr.mxu0 0.0
    %2201 = vmatpush1.msra.mxu0 0.0
    %2202 = vmatprep.subr.mxu0 0.0
    %2203 = vmatpush1.msra.mxu0 0.0
    %2204 = vmatprep.subr.mxu0 0.0
    %2205 = vmatpush1.msra.mxu0 0.0
    %2206 = vmatprep.subr.mxu0 0.0
    %2207 = vmatpush1.msra.mxu0 0.0
    %2208 = vmatprep.subr.mxu0 0.0
    %2209 = vmatpush1.msra.mxu0 0.0
    %2210 = vmatprep.subr.mxu0 0.0
    %2211 = vmatpush1.msra.mxu0 0.0
    %2212 = vmatprep.subr.mxu0 0.0
    %2213 = vmatpush1.msra.mxu0 0.0
    %2214 = vmatprep.subr.mxu0 0.0
    %2215 = vmatpush1.msra.mxu0 0.0
    %2216 = vmatprep.subr.mxu0 0.0
    %2217 = vmatpush1.msra.mxu0 0.0
    %2218 = vmatprep.subr.mxu0 0.0
    %2219 = vmatpush1.msra.mxu0 0.0
    %2220 = vmatprep.subr.mxu0 0.0
    %2221 = vmatpush1.msra.mxu0 %v1681
    %2222 = vmatprep.subr.mxu0 0.0
    %2223 = vmatpush2.msra.mxu0 0.0
    %2224 = vmatprep.subr.mxu0 0.0
    %2225 = vmatpush2.msra.mxu0 0.0
    %2226 = vmatprep.subr.mxu0 0.0
    %2227 = vmatpush2.msra.mxu0 0.0
    %2228 = vmatprep.subr.mxu0 0.0
    %2229 = vmatpush2.msra.mxu0 0.0
    %2230 = vmatprep.subr.mxu0 0.0
    %2231 = vmatpush2.msra.mxu0 0.0
    %2232 = vmatprep.subr.mxu0 0.0
    %2233 = vmatpush2.msra.mxu0 0.0
    %2234 = vmatprep.subr.mxu0 0.0
    %2235 = vmatpush2.msra.mxu0 0.0
    %2236 = vmatprep.subr.mxu0 0.0
    %2237 = vmatpush2.msra.mxu0 0.0
    %2238 = vmatprep.subr.mxu0 0.0
    %2239 = vmatpush2.msra.mxu0 0.0
    %2240 = vmatprep.subr.mxu0 0.0
    %2241 = vmatpush2.msra.mxu0 0.0
    %2242 = vmatprep.subr.mxu0 0.0
    %2243 = vmatpush2.msra.mxu0 0.0
    %2244 = vmatprep.subr.mxu0 0.0
    %2245 = vmatpush2.msra.mxu0 0.0
    %2246 = vmatprep.subr.mxu0 0.0
    %2247 = vmatpush2.msra.mxu0 0.0
    %2248 = vmatprep.subr.mxu0 0.0
    %2249 = vmatpush2.msra.mxu0 0.0
    %2250 = vmatprep.subr.mxu0 0.0
    %2251 = vmatpush2.msra.mxu0 0.0
    %2252 = vmatprep.subr.mxu0 0.0
    %2253 = vmatpush2.msra.mxu0 0.0
    %2254 = vmatprep.mubr.f32.mxu0 0.0
    %2255 = vmatmul.mubr.f32.gmra.mxu0 %v2185
    %v2256 = vpop.f32.mrf.mxu0
    %v2257 = vadd.f32 0.0, %v2256
    %v2258 = vpop.f32.mrf.mxu0
    %2259 = vmatprep.mubr.f32.mxu0 0.0
    %2260 = vmatmul.mubr.f32.gmra.mxu0 %v2188
    %v2261 = vpop.f32.mrf.mxu0
    %v2262 = vadd.f32 0.0, %v2261
    %v2263 = vpop.f32.mrf.mxu0
    %2264 = vdwg.mxu0
    %v2266 = vsel %vm851, %v2101, 0
    %v2269 = vsel %vm851, %v2106, 0
    %2271 = vmatprep.subr.mxu0 0.0
    %2272 = vmatpush1.msra.mxu0 0.0
    %2273 = vmatprep.subr.mxu0 0.0
    %2274 = vmatpush1.msra.mxu0 0.0
    %2275 = vmatprep.subr.mxu0 0.0
    %2276 = vmatpush1.msra.mxu0 0.0
    %2277 = vmatprep.subr.mxu0 0.0
    %2278 = vmatpush1.msra.mxu0 0.0
    %2279 = vmatprep.subr.mxu0 0.0
    %2280 = vmatpush1.msra.mxu0 0.0
    %2281 = vmatprep.subr.mxu0 0.0
    %2282 = vmatpush1.msra.mxu0 0.0
    %2283 = vmatprep.subr.mxu0 0.0
    %2284 = vmatpush1.msra.mxu0 0.0
    %2285 = vmatprep.subr.mxu0 0.0
    %2286 = vmatpush1.msra.mxu0 0.0
    %2287 = vmatprep.subr.mxu0 0.0
    %2288 = vmatpush1.msra.mxu0 0.0
    %2289 = vmatprep.subr.mxu0 0.0
    %2290 = vmatpush1.msra.mxu0 0.0
    %2291 = vmatprep.subr.mxu0 0.0
    %2292 = vmatpush1.msra.mxu0 0.0
    %2293 = vmatprep.subr.mxu0 0.0
    %2294 = vmatpush1.msra.mxu0 0.0
    %2295 = vmatprep.subr.mxu0 0.0
    %2296 = vmatpush1.msra.mxu0 0.0
    %2297 = vmatprep.subr.mxu0 0.0
    %2298 = vmatpush1.msra.mxu0 0.0
    %2299 = vmatprep.subr.mxu0 0.0
    %2300 = vmatpush1.msra.mxu0 0.0
    %2301 = vmatprep.subr.mxu0 0.0
    %2302 = vmatpush1.msra.mxu0 %v1595
    %2303 = vmatprep.subr.mxu0 0.0
    %2304 = vmatpush2.msra.mxu0 0.0
    %2305 = vmatprep.subr.mxu0 0.0
    %2306 = vmatpush2.msra.mxu0 0.0
    %2307 = vmatprep.subr.mxu0 0.0
    %2308 = vmatpush2.msra.mxu0 0.0
    %2309 = vmatprep.subr.mxu0 0.0
    %2310 = vmatpush2.msra.mxu0 0.0
    %2311 = vmatprep.subr.mxu0 0.0
    %2312 = vmatpush2.msra.mxu0 0.0
    %2313 = vmatprep.subr.mxu0 0.0
    %2314 = vmatpush2.msra.mxu0 0.0
    %2315 = vmatprep.subr.mxu0 0.0
    %2316 = vmatpush2.msra.mxu0 0.0
    %2317 = vmatprep.subr.mxu0 0.0
    %2318 = vmatpush2.msra.mxu0 0.0
    %2319 = vmatprep.subr.mxu0 0.0
    %2320 = vmatpush2.msra.mxu0 0.0
    %2321 = vmatprep.subr.mxu0 0.0
    %2322 = vmatpush2.msra.mxu0 0.0
    %2323 = vmatprep.subr.mxu0 0.0
    %2324 = vmatpush2.msra.mxu0 0.0
    %2325 = vmatprep.subr.mxu0 0.0
    %2326 = vmatpush2.msra.mxu0 0.0
    %2327 = vmatprep.subr.mxu0 0.0
    %2328 = vmatpush2.msra.mxu0 0.0
    %2329 = vmatprep.subr.mxu0 0.0
    %2330 = vmatpush2.msra.mxu0 0.0
    %2331 = vmatprep.subr.mxu0 0.0
    %2332 = vmatpush2.msra.mxu0 0.0
    %2333 = vmatprep.subr.mxu0 0.0
    %2334 = vmatpush2.msra.mxu0 0.0
    %2335 = vmatprep.mubr.f32.mxu0 0.0
    %2336 = vmatmul.mubr.f32.gmra.mxu0 %v2266
    %v2337 = vpop.f32.mrf.mxu0
    %v2338 = vadd.f32 %v2257, %v2337
    %v2339 = vpop.f32.mrf.mxu0
    %2340 = vmatprep.mubr.f32.mxu0 0.0
    %2341 = vmatmul.mubr.f32.gmra.mxu0 %v2269
    %v2342 = vpop.f32.mrf.mxu0
    %v2343 = vadd.f32 %v2262, %v2342
    %v2344 = vpop.f32.mrf.mxu0
    %2345 = vdwg.mxu0
    %2346 = vmatprep.subr.mxu0 0.0
    %2347 = vmatpush1.msra.mxu0 0.0
    %2348 = vmatprep.subr.mxu0 0.0
    %2349 = vmatpush1.msra.mxu0 0.0
    %2350 = vmatprep.subr.mxu0 0.0
    %2351 = vmatpush1.msra.mxu0 0.0
    %2352 = vmatprep.subr.mxu0 0.0
    %2353 = vmatpush1.msra.mxu0 0.0
    %2354 = vmatprep.subr.mxu0 0.0
    %2355 = vmatpush1.msra.mxu0 0.0
    %2356 = vmatprep.subr.mxu0 0.0
    %2357 = vmatpush1.msra.mxu0 0.0
    %2358 = vmatprep.subr.mxu0 0.0
    %2359 = vmatpush1.msra.mxu0 0.0
    %2360 = vmatprep.subr.mxu0 0.0
    %2361 = vmatpush1.msra.mxu0 0.0
    %2362 = vmatprep.subr.mxu0 0.0
    %2363 = vmatpush1.msra.mxu0 0.0
    %2364 = vmatprep.subr.mxu0 0.0
    %2365 = vmatpush1.msra.mxu0 0.0
    %2366 = vmatprep.subr.mxu0 0.0
    %2367 = vmatpush1.msra.mxu0 0.0
    %2368 = vmatprep.subr.mxu0 0.0
    %2369 = vmatpush1.msra.mxu0 0.0
    %2370 = vmatprep.subr.mxu0 0.0
    %2371 = vmatpush1.msra.mxu0 %v1510
    %2372 = vmatprep.subr.mxu0 0.0
    %2373 = vmatpush1.msra.mxu0 %v1509
    %2374 = vmatprep.subr.mxu0 0.0
    %2375 = vmatpush1.msra.mxu0 %v1508
    %2376 = vmatprep.subr.mxu0 0.0
    %2377 = vmatpush1.msra.mxu0 %v1507
    %2378 = vmatprep.subr.mxu0 0.0
    %2379 = vmatpush2.msra.mxu0 0.0
    %2380 = vmatprep.subr.mxu0 0.0
    %2381 = vmatpush2.msra.mxu0 0.0
    %2382 = vmatprep.subr.mxu0 0.0
    %2383 = vmatpush2.msra.mxu0 0.0
    %2384 = vmatprep.subr.mxu0 0.0
    %2385 = vmatpush2.msra.mxu0 0.0
    %2386 = vmatprep.subr.mxu0 0.0
    %2387 = vmatpush2.msra.mxu0 0.0
    %2388 = vmatprep.subr.mxu0 0.0
    %2389 = vmatpush2.msra.mxu0 0.0
    %2390 = vmatprep.subr.mxu0 0.0
    %2391 = vmatpush2.msra.mxu0 0.0
    %2392 = vmatprep.subr.mxu0 0.0
    %2393 = vmatpush2.msra.mxu0 0.0
    %2394 = vmatprep.subr.mxu0 0.0
    %2395 = vmatpush2.msra.mxu0 0.0
    %2396 = vmatprep.subr.mxu0 0.0
    %2397 = vmatpush2.msra.mxu0 0.0
    %2398 = vmatprep.subr.mxu0 0.0
    %2399 = vmatpush2.msra.mxu0 0.0
    %2400 = vmatprep.subr.mxu0 0.0
    %2401 = vmatpush2.msra.mxu0 0.0
    %2402 = vmatprep.subr.mxu0 0.0
    %2403 = vmatpush2.msra.mxu0 0.0
    %2404 = vmatprep.subr.mxu0 0.0
    %2405 = vmatpush2.msra.mxu0 0.0
    %2406 = vmatprep.subr.mxu0 0.0
    %2407 = vmatpush2.msra.mxu0 0.0
    %2408 = vmatprep.subr.mxu0 0.0
    %2409 = vmatpush2.msra.mxu0 0.0
    %2410 = vmatprep.mubr.f32.mxu0 0.0
    %2411 = vmatmul.mubr.f32.gmra.mxu0 %v1848
    %v2412 = vpop.f32.mrf.mxu0
    %v2413 = vadd.f32 0.0, %v2412
    %v2414 = vpop.f32.mrf.mxu0
    %2415 = vmatprep.mubr.f32.mxu0 0.0
    %2416 = vmatmul.mubr.f32.gmra.mxu0 %v1851
    %v2417 = vpop.f32.mrf.mxu0
    %v2418 = vadd.f32 0.0, %v2417
    %v2419 = vpop.f32.mrf.mxu0
    %2420 = vdwg.mxu0
    %v2422 = vsel %vm851, %v2413, 0
    %v2425 = vsel %vm851, %v2418, 0
    %2427 = vmatprep.subr.mxu0 0.0
    %2428 = vmatpush1.msra.mxu0 0.0
    %2429 = vmatprep.subr.mxu0 0.0
    %2430 = vmatpush1.msra.mxu0 0.0
    %2431 = vmatprep.subr.mxu0 0.0
    %2432 = vmatpush1.msra.mxu0 0.0
    %2433 = vmatprep.subr.mxu0 0.0
    %2434 = vmatpush1.msra.mxu0 0.0
    %2435 = vmatprep.subr.mxu0 0.0
    %2436 = vmatpush1.msra.mxu0 0.0
    %2437 = vmatprep.subr.mxu0 0.0
    %2438 = vmatpush1.msra.mxu0 0.0
    %2439 = vmatprep.subr.mxu0 0.0
    %2440 = vmatpush1.msra.mxu0 0.0
    %2441 = vmatprep.subr.mxu0 0.0
    %2442 = vmatpush1.msra.mxu0 0.0
    %2443 = vmatprep.subr.mxu0 0.0
    %2444 = vmatpush1.msra.mxu0 0.0
    %2445 = vmatprep.subr.mxu0 0.0
    %2446 = vmatpush1.msra.mxu0 0.0
    %2447 = vmatprep.subr.mxu0 0.0
    %2448 = vmatpush1.msra.mxu0 0.0
    %2449 = vmatprep.subr.mxu0 0.0
    %2450 = vmatpush1.msra.mxu0 0.0
    %2451 = vmatprep.subr.mxu0 0.0
    %2452 = vmatpush1.msra.mxu0 0.0
    %2453 = vmatprep.subr.mxu0 0.0
    %2454 = vmatpush1.msra.mxu0 0.0
    %2455 = vmatprep.subr.mxu0 0.0
    %2456 = vmatpush1.msra.mxu0 0.0
    %2457 = vmatprep.subr.mxu0 0.0
    %2458 = vmatpush1.msra.mxu0 %v1929
    %2459 = vmatprep.subr.mxu0 0.0
    %2460 = vmatpush2.msra.mxu0 0.0
    %2461 = vmatprep.subr.mxu0 0.0
    %2462 = vmatpush2.msra.mxu0 0.0
    %2463 = vmatprep.subr.mxu0 0.0
    %2464 = vmatpush2.msra.mxu0 0.0
    %2465 = vmatprep.subr.mxu0 0.0
    %2466 = vmatpush2.msra.mxu0 0.0
    %2467 = vmatprep.subr.mxu0 0.0
    %2468 = vmatpush2.msra.mxu0 0.0
    %2469 = vmatprep.subr.mxu0 0.0
    %2470 = vmatpush2.msra.mxu0 0.0
    %2471 = vmatprep.subr.mxu0 0.0
    %2472 = vmatpush2.msra.mxu0 0.0
    %2473 = vmatprep.subr.mxu0 0.0
    %2474 = vmatpush2.msra.mxu0 0.0
    %2475 = vmatprep.subr.mxu0 0.0
    %2476 = vmatpush2.msra.mxu0 0.0
    %2477 = vmatprep.subr.mxu0 0.0
    %2478 = vmatpush2.msra.mxu0 0.0
    %2479 = vmatprep.subr.mxu0 0.0
    %2480 = vmatpush2.msra.mxu0 0.0
    %2481 = vmatprep.subr.mxu0 0.0
    %2482 = vmatpush2.msra.mxu0 0.0
    %2483 = vmatprep.subr.mxu0 0.0
    %2484 = vmatpush2.msra.mxu0 0.0
    %2485 = vmatprep.subr.mxu0 0.0
    %2486 = vmatpush2.msra.mxu0 0.0
    %2487 = vmatprep.subr.mxu0 0.0
    %2488 = vmatpush2.msra.mxu0 0.0
    %2489 = vmatprep.subr.mxu0 0.0
    %2490 = vmatpush2.msra.mxu0 0.0
    %2491 = vmatprep.mubr.f32.mxu0 0.0
    %2492 = vmatmul.mubr.f32.gmra.mxu0 %v2422
    %v2493 = vpop.f32.mrf.mxu0
    %v2494 = vadd.f32 0.0, %v2493
    %v2495 = vpop.f32.mrf.mxu0
    %2496 = vmatprep.mubr.f32.mxu0 0.0
    %2497 = vmatmul.mubr.f32.gmra.mxu0 %v2425
    %v2498 = vpop.f32.mrf.mxu0
    %v2499 = vadd.f32 0.0, %v2498
    %v2500 = vpop.f32.mrf.mxu0
    %2501 = vdwg.mxu0
    %v2502 = vadd.f32 %v2338, %v2494
    %v2503 = vadd.f32 %v2343, %v2499
    %v2504 = vsel %vm2013, %v2502, 0.0
    %v2505 = vsel %vm2013, %v2503, 0.0
    %v2506 = vadd.f32 %v2504, %v2505
    %v2507 = vrot.slane %v2506, 4
    %v2508 = vadd.f32 %v2506, %v2507
    %v2509 = vrot.slane %v2508, 2
    %v2510 = vadd.f32 %v2508, %v2509
    %v2511 = vrot.slane %v2510, 1
    %v2512 = vadd.f32 %v2510, %v2511
    %v2513 = vmul.f32 %v2502, %v2502
    %v2514 = vmul.f32 %v2503, %v2503
    %v2515 = vsel %vm2013, %v2513, 0.0
    %v2516 = vsel %vm2013, %v2514, 0.0
    %v2517 = vadd.f32 %v2515, %v2516
    %v2518 = vrot.slane %v2517, 4
    %v2519 = vadd.f32 %v2517, %v2518
    %v2520 = vrot.slane %v2519, 2
    %v2521 = vadd.f32 %v2519, %v2520
    %v2522 = vrot.slane %v2521, 1
    %v2523 = vadd.f32 %v2521, %v2522
    %v2524 = vadd.f32 %v2022, %v2512
    %v2525 = vadd.f32 %v2033, %v2523
    %v2526 = vmul.f32 %v2524, 0.03125
    %v2527 = vmul.f32 %v2525, 0.03125
    %v2528 = vmul.f32 %v2526, %v2526
    %v2529 = vsub.f32 %v2527, %v2528
    %v2530 = vld [vmem:[#allocation10] sm:$0x1]
    %v2531 = vadd.f32 %v2529, 1e-05
    %v2532 = vrsqrt.pop %v2531
    %v2533 = vmul.f32 %v2530, %v2532
    %v2534 = vld [vmem:[#allocation11] sm:$0x1]
    %v2535 = vmul.f32 %v2526, %v2533
    %v2536 = vsub.f32 %v2534, %v2535
    %v2538 = vlaneseq
    %v2539 = vshrl.u32 %v2538, 7
    %v2540 = vsub.s32 0, %v2539
    %v2541 = vrot.slane %v2533, %v2540
    %v2543 = vmul.f32 %v2011, %v2541
    %v2544 = vmul.f32 %v2012, %v2541
    %v2546 = vlaneseq
    %v2547 = vshrl.u32 %v2546, 7
    %v2548 = vsub.s32 0, %v2547
    %v2549 = vrot.slane %v2536, %v2548
    %v2551 = vadd.f32 %v2543, %v2549
    %v2552 = vadd.f32 %v2544, %v2549
    %v2553 = vmax.f32 %v2551, 0.0
    %v2554 = vmax.f32 %v2552, 0.0
    %v2555 = vmul.f32 %v2502, %v2541
    %v2556 = vmul.f32 %v2503, %v2541
    %v2557 = vadd.f32 %v2555, %v2549
    %v2558 = vadd.f32 %v2556, %v2549
    %v2559 = vmax.f32 %v2557, 0.0
    %v2560 = vmax.f32 %v2558, 0.0
    %v2561 = vld [vmem:[#allocation13] sm:$0xff]
    %v2563 = vsel %vm2013, %v2561, 0
    %2565 = vmatprep.subr.mxu0 0.0
    %2566 = vmatpush1.msra.mxu0 0.0
    %2567 = vmatprep.subr.mxu0 0.0
    %2568 = vmatpush1.msra.mxu0 0.0
    %2569 = vmatprep.subr.mxu0 0.0
    %2570 = vmatpush1.msra.mxu0 0.0
    %2571 = vmatprep.subr.mxu0 0.0
    %2572 = vmatpush1.msra.mxu0 0.0
    %2573 = vmatprep.subr.mxu0 0.0
    %2574 = vmatpush1.msra.mxu0 0.0
    %2575 = vmatprep.subr.mxu0 0.0
    %2576 = vmatpush1.msra.mxu0 0.0
    %2577 = vmatprep.subr.mxu0 0.0
    %2578 = vmatpush1.msra.mxu0 0.0
    %2579 = vmatprep.subr.mxu0 0.0
    %2580 = vmatpush1.msra.mxu0 0.0
    %2581 = vmatprep.subr.mxu0 0.0
    %2582 = vmatpush1.msra.mxu0 0.0
    %2583 = vmatprep.subr.mxu0 0.0
    %2584 = vmatpush1.msra.mxu0 0.0
    %2585 = vmatprep.subr.mxu0 0.0
    %2586 = vmatpush1.msra.mxu0 0.0
    %2587 = vmatprep.subr.mxu0 0.0
    %2588 = vmatpush1.msra.mxu0 0.0
    %2589 = vmatprep.subr.mxu0 0.0
    %2590 = vmatpush1.msra.mxu0 0.0
    %2591 = vmatprep.subr.mxu0 0.0
    %2592 = vmatpush1.msra.mxu0 0.0
    %2593 = vmatprep.subr.mxu0 0.0
    %2594 = vmatpush1.msra.mxu0 %v2554
    %2595 = vmatprep.subr.mxu0 0.0
    %2596 = vmatpush1.msra.mxu0 %v2553
    %2597 = vmatprep.subr.mxu0 0.0
    %2598 = vmatpush2.msra.mxu0 0.0
    %2599 = vmatprep.subr.mxu0 0.0
    %2600 = vmatpush2.msra.mxu0 0.0
    %2601 = vmatprep.subr.mxu0 0.0
    %2602 = vmatpush2.msra.mxu0 0.0
    %2603 = vmatprep.subr.mxu0 0.0
    %2604 = vmatpush2.msra.mxu0 0.0
    %2605 = vmatprep.subr.mxu0 0.0
    %2606 = vmatpush2.msra.mxu0 0.0
    %2607 = vmatprep.subr.mxu0 0.0
    %2608 = vmatpush2.msra.mxu0 0.0
    %2609 = vmatprep.subr.mxu0 0.0
    %2610 = vmatpush2.msra.mxu0 0.0
    %2611 = vmatprep.subr.mxu0 0.0
    %2612 = vmatpush2.msra.mxu0 0.0
    %2613 = vmatprep.subr.mxu0 0.0
    %2614 = vmatpush2.msra.mxu0 0.0
    %2615 = vmatprep.subr.mxu0 0.0
    %2616 = vmatpush2.msra.mxu0 0.0
    %2617 = vmatprep.subr.mxu0 0.0
    %2618 = vmatpush2.msra.mxu0 0.0
    %2619 = vmatprep.subr.mxu0 0.0
    %2620 = vmatpush2.msra.mxu0 0.0
    %2621 = vmatprep.subr.mxu0 0.0
    %2622 = vmatpush2.msra.mxu0 0.0
    %2623 = vmatprep.subr.mxu0 0.0
    %2624 = vmatpush2.msra.mxu0 0.0
    %2625 = vmatprep.subr.mxu0 0.0
    %2626 = vmatpush2.msra.mxu0 0.0
    %2627 = vmatprep.subr.mxu0 0.0
    %2628 = vmatpush2.msra.mxu0 0.0
    %2629 = vmatprep.mubr.f32.mxu0 0.0
    %2630 = vmatmul.mubr.f32.gmra.mxu0 %v2563
    %v2631 = vpop.f32.mrf.mxu0
    %v2632 = vadd.f32 0.0, %v2631
    %v2633 = vpop.f32.mrf.mxu0
    %2634 = vdwg.mxu0
    %v2635 = vld [vmem:[#allocation14] sm:$0xff]
    %v2636 = vld [vmem:[#allocation14 + $0x8] sm:$0xff]
    %s2637 = scalar_lea.vmem [#allocation13], 8
    %v2638 = vld [vmem:[%s2637] sm:$0xff]
    %v2640 = vsel %vm2013, %v2638, 0
    %2642 = vmatprep.subr.mxu0 0.0
    %2643 = vmatpush1.msra.mxu0 0.0
    %2644 = vmatprep.subr.mxu0 0.0
    %2645 = vmatpush1.msra.mxu0 0.0
    %2646 = vmatprep.subr.mxu0 0.0
    %2647 = vmatpush1.msra.mxu0 0.0
    %2648 = vmatprep.subr.mxu0 0.0
    %2649 = vmatpush1.msra.mxu0 0.0
    %2650 = vmatprep.subr.mxu0 0.0
    %2651 = vmatpush1.msra.mxu0 0.0
    %2652 = vmatprep.subr.mxu0 0.0
    %2653 = vmatpush1.msra.mxu0 0.0
    %2654 = vmatprep.subr.mxu0 0.0
    %2655 = vmatpush1.msra.mxu0 0.0
    %2656 = vmatprep.subr.mxu0 0.0
    %2657 = vmatpush1.msra.mxu0 0.0
    %2658 = vmatprep.subr.mxu0 0.0
    %2659 = vmatpush1.msra.mxu0 0.0
    %2660 = vmatprep.subr.mxu0 0.0
    %2661 = vmatpush1.msra.mxu0 0.0
    %2662 = vmatprep.subr.mxu0 0.0
    %2663 = vmatpush1.msra.mxu0 0.0
    %2664 = vmatprep.subr.mxu0 0.0
    %2665 = vmatpush1.msra.mxu0 0.0
    %2666 = vmatprep.subr.mxu0 0.0
    %2667 = vmatpush1.msra.mxu0 0.0
    %2668 = vmatprep.subr.mxu0 0.0
    %2669 = vmatpush1.msra.mxu0 0.0
    %2670 = vmatprep.subr.mxu0 0.0
    %2671 = vmatpush1.msra.mxu0 %v2554
    %2672 = vmatprep.subr.mxu0 0.0
    %2673 = vmatpush1.msra.mxu0 %v2553
    %2674 = vmatprep.subr.mxu0 0.0
    %2675 = vmatpush2.msra.mxu0 0.0
    %2676 = vmatprep.subr.mxu0 0.0
    %2677 = vmatpush2.msra.mxu0 0.0
    %2678 = vmatprep.subr.mxu0 0.0
    %2679 = vmatpush2.msra.mxu0 0.0
    %2680 = vmatprep.subr.mxu0 0.0
    %2681 = vmatpush2.msra.mxu0 0.0
    %2682 = vmatprep.subr.mxu0 0.0
    %2683 = vmatpush2.msra.mxu0 0.0
    %2684 = vmatprep.subr.mxu0 0.0
    %2685 = vmatpush2.msra.mxu0 0.0
    %2686 = vmatprep.subr.mxu0 0.0
    %2687 = vmatpush2.msra.mxu0 0.0
    %2688 = vmatprep.subr.mxu0 0.0
    %2689 = vmatpush2.msra.mxu0 0.0
    %2690 = vmatprep.subr.mxu0 0.0
    %2691 = vmatpush2.msra.mxu0 0.0
    %2692 = vmatprep.subr.mxu0 0.0
    %2693 = vmatpush2.msra.mxu0 0.0
    %2694 = vmatprep.subr.mxu0 0.0
    %2695 = vmatpush2.msra.mxu0 0.0
    %2696 = vmatprep.subr.mxu0 0.0
    %2697 = vmatpush2.msra.mxu0 0.0
    %2698 = vmatprep.subr.mxu0 0.0
    %2699 = vmatpush2.msra.mxu0 0.0
    %2700 = vmatprep.subr.mxu0 0.0
    %2701 = vmatpush2.msra.mxu0 0.0
    %2702 = vmatprep.subr.mxu0 0.0
    %2703 = vmatpush2.msra.mxu0 0.0
    %2704 = vmatprep.subr.mxu0 0.0
    %2705 = vmatpush2.msra.mxu0 0.0
    %2706 = vmatprep.mubr.f32.mxu0 0.0
    %2707 = vmatmul.mubr.f32.gmra.mxu0 %v2640
    %v2708 = vpop.f32.mrf.mxu0
    %v2709 = vadd.f32 0.0, %v2708
    %v2710 = vpop.f32.mrf.mxu0
    %2711 = vdwg.mxu0
    %s2712 = scalar_lea.vmem [#allocation14], 16
    %v2713 = vld [vmem:[%s2712] sm:$0xff]
    %v2714 = vld [vmem:[%s2712 + $0x8] sm:$0xff]
    %v2716 = vsel %vm2013, %v2709, 0
    %2718 = vmatprep.subr.mxu0 0.0
    %2719 = vmatpush1.msra.mxu0 0.0
    %2720 = vmatprep.subr.mxu0 0.0
    %2721 = vmatpush1.msra.mxu0 0.0
    %2722 = vmatprep.subr.mxu0 0.0
    %2723 = vmatpush1.msra.mxu0 0.0
    %2724 = vmatprep.subr.mxu0 0.0
    %2725 = vmatpush1.msra.mxu0 0.0
    %2726 = vmatprep.subr.mxu0 0.0
    %2727 = vmatpush1.msra.mxu0 0.0
    %2728 = vmatprep.subr.mxu0 0.0
    %2729 = vmatpush1.msra.mxu0 0.0
    %2730 = vmatprep.subr.mxu0 0.0
    %2731 = vmatpush1.msra.mxu0 0.0
    %2732 = vmatprep.subr.mxu0 0.0
    %2733 = vmatpush1.msra.mxu0 0.0
    %2734 = vmatprep.subr.mxu0 0.0
    %2735 = vmatpush1.msra.mxu0 0.0
    %2736 = vmatprep.subr.mxu0 0.0
    %2737 = vmatpush1.msra.mxu0 0.0
    %2738 = vmatprep.subr.mxu0 0.0
    %2739 = vmatpush1.msra.mxu0 0.0
    %2740 = vmatprep.subr.mxu0 0.0
    %2741 = vmatpush1.msra.mxu0 0.0
    %2742 = vmatprep.subr.mxu0 0.0
    %2743 = vmatpush1.msra.mxu0 0.0
    %2744 = vmatprep.subr.mxu0 0.0
    %2745 = vmatpush1.msra.mxu0 0.0
    %2746 = vmatprep.subr.mxu0 0.0
    %2747 = vmatpush1.msra.mxu0 %v2714
    %2748 = vmatprep.subr.mxu0 0.0
    %2749 = vmatpush1.msra.mxu0 %v2713
    %2750 = vmatprep.subr.mxu0 0.0
    %2751 = vmatpush2.msra.mxu0 0.0
    %2752 = vmatprep.subr.mxu0 0.0
    %2753 = vmatpush2.msra.mxu0 0.0
    %2754 = vmatprep.subr.mxu0 0.0
    %2755 = vmatpush2.msra.mxu0 0.0
    %2756 = vmatprep.subr.mxu0 0.0
    %2757 = vmatpush2.msra.mxu0 0.0
    %2758 = vmatprep.subr.mxu0 0.0
    %2759 = vmatpush2.msra.mxu0 0.0
    %2760 = vmatprep.subr.mxu0 0.0
    %2761 = vmatpush2.msra.mxu0 0.0
    %2762 = vmatprep.subr.mxu0 0.0
    %2763 = vmatpush2.msra.mxu0 0.0
    %2764 = vmatprep.subr.mxu0 0.0
    %2765 = vmatpush2.msra.mxu0 0.0
    %2766 = vmatprep.subr.mxu0 0.0
    %2767 = vmatpush2.msra.mxu0 0.0
    %2768 = vmatprep.subr.mxu0 0.0
    %2769 = vmatpush2.msra.mxu0 0.0
    %2770 = vmatprep.subr.mxu0 0.0
    %2771 = vmatpush2.msra.mxu0 0.0
    %2772 = vmatprep.subr.mxu0 0.0
    %2773 = vmatpush2.msra.mxu0 0.0
    %2774 = vmatprep.subr.mxu0 0.0
    %2775 = vmatpush2.msra.mxu0 0.0
    %2776 = vmatprep.subr.mxu0 0.0
    %2777 = vmatpush2.msra.mxu0 0.0
    %2778 = vmatprep.subr.mxu0 0.0
    %2779 = vmatpush2.msra.mxu0 0.0
    %2780 = vmatprep.subr.mxu0 0.0
    %2781 = vmatpush2.msra.mxu0 0.0
    %2782 = vmatprep.mubr.f32.mxu0 0.0
    %2783 = vmatmul.mubr.f32.gmra.mxu0 %v2716
    %v2784 = vpop.f32.mrf.mxu0
    %v2785 = vadd.f32 0.0, %v2784
    %v2786 = vpop.f32.mrf.mxu0
    %2787 = vdwg.mxu0
    %v2789 = vsel %vm2013, %v2632, 0
    %2791 = vmatprep.subr.mxu0 0.0
    %2792 = vmatpush1.msra.mxu0 0.0
    %2793 = vmatprep.subr.mxu0 0.0
    %2794 = vmatpush1.msra.mxu0 0.0
    %2795 = vmatprep.subr.mxu0 0.0
    %2796 = vmatpush1.msra.mxu0 0.0
    %2797 = vmatprep.subr.mxu0 0.0
    %2798 = vmatpush1.msra.mxu0 0.0
    %2799 = vmatprep.subr.mxu0 0.0
    %2800 = vmatpush1.msra.mxu0 0.0
    %2801 = vmatprep.subr.mxu0 0.0
    %2802 = vmatpush1.msra.mxu0 0.0
    %2803 = vmatprep.subr.mxu0 0.0
    %2804 = vmatpush1.msra.mxu0 0.0
    %2805 = vmatprep.subr.mxu0 0.0
    %2806 = vmatpush1.msra.mxu0 0.0
    %2807 = vmatprep.subr.mxu0 0.0
    %2808 = vmatpush1.msra.mxu0 0.0
    %2809 = vmatprep.subr.mxu0 0.0
    %2810 = vmatpush1.msra.mxu0 0.0
    %2811 = vmatprep.subr.mxu0 0.0
    %2812 = vmatpush1.msra.mxu0 0.0
    %2813 = vmatprep.subr.mxu0 0.0
    %2814 = vmatpush1.msra.mxu0 0.0
    %2815 = vmatprep.subr.mxu0 0.0
    %2816 = vmatpush1.msra.mxu0 0.0
    %2817 = vmatprep.subr.mxu0 0.0
    %2818 = vmatpush1.msra.mxu0 0.0
    %2819 = vmatprep.subr.mxu0 0.0
    %2820 = vmatpush1.msra.mxu0 %v2636
    %2821 = vmatprep.subr.mxu0 0.0
    %2822 = vmatpush1.msra.mxu0 %v2635
    %2823 = vmatprep.subr.mxu0 0.0
    %2824 = vmatpush2.msra.mxu0 0.0
    %2825 = vmatprep.subr.mxu0 0.0
    %2826 = vmatpush2.msra.mxu0 0.0
    %2827 = vmatprep.subr.mxu0 0.0
    %2828 = vmatpush2.msra.mxu0 0.0
    %2829 = vmatprep.subr.mxu0 0.0
    %2830 = vmatpush2.msra.mxu0 0.0
    %2831 = vmatprep.subr.mxu0 0.0
    %2832 = vmatpush2.msra.mxu0 0.0
    %2833 = vmatprep.subr.mxu0 0.0
    %2834 = vmatpush2.msra.mxu0 0.0
    %2835 = vmatprep.subr.mxu0 0.0
    %2836 = vmatpush2.msra.mxu0 0.0
    %2837 = vmatprep.subr.mxu0 0.0
    %2838 = vmatpush2.msra.mxu0 0.0
    %2839 = vmatprep.subr.mxu0 0.0
    %2840 = vmatpush2.msra.mxu0 0.0
    %2841 = vmatprep.subr.mxu0 0.0
    %2842 = vmatpush2.msra.mxu0 0.0
    %2843 = vmatprep.subr.mxu0 0.0
    %2844 = vmatpush2.msra.mxu0 0.0
    %2845 = vmatprep.subr.mxu0 0.0
    %2846 = vmatpush2.msra.mxu0 0.0
    %2847 = vmatprep.subr.mxu0 0.0
    %2848 = vmatpush2.msra.mxu0 0.0
    %2849 = vmatprep.subr.mxu0 0.0
    %2850 = vmatpush2.msra.mxu0 0.0
    %2851 = vmatprep.subr.mxu0 0.0
    %2852 = vmatpush2.msra.mxu0 0.0
    %2853 = vmatprep.subr.mxu0 0.0
    %2854 = vmatpush2.msra.mxu0 0.0
    %2855 = vmatprep.mubr.f32.mxu0 0.0
    %2856 = vmatmul.mubr.f32.gmra.mxu0 %v2789
    %v2857 = vpop.f32.mrf.mxu0
    %v2858 = vadd.f32 %v2785, %v2857
    %v2859 = vpop.f32.mrf.mxu0
    %2860 = vdwg.mxu0
    %s2861 = scalar_lea.vmem [#allocation13], 16
    %v2862 = vld [vmem:[%s2861] sm:$0xff]
    %v2864 = vsel %vm2013, %v2862, 0
    %2866 = vmatprep.subr.mxu0 0.0
    %2867 = vmatpush1.msra.mxu0 0.0
    %2868 = vmatprep.subr.mxu0 0.0
    %2869 = vmatpush1.msra.mxu0 0.0
    %2870 = vmatprep.subr.mxu0 0.0
    %2871 = vmatpush1.msra.mxu0 0.0
    %2872 = vmatprep.subr.mxu0 0.0
    %2873 = vmatpush1.msra.mxu0 0.0
    %2874 = vmatprep.subr.mxu0 0.0
    %2875 = vmatpush1.msra.mxu0 0.0
    %2876 = vmatprep.subr.mxu0 0.0
    %2877 = vmatpush1.msra.mxu0 0.0
    %2878 = vmatprep.subr.mxu0 0.0
    %2879 = vmatpush1.msra.mxu0 0.0
    %2880 = vmatprep.subr.mxu0 0.0
    %2881 = vmatpush1.msra.mxu0 0.0
    %2882 = vmatprep.subr.mxu0 0.0
    %2883 = vmatpush1.msra.mxu0 0.0
    %2884 = vmatprep.subr.mxu0 0.0
    %2885 = vmatpush1.msra.mxu0 0.0
    %2886 = vmatprep.subr.mxu0 0.0
    %2887 = vmatpush1.msra.mxu0 0.0
    %2888 = vmatprep.subr.mxu0 0.0
    %2889 = vmatpush1.msra.mxu0 0.0
    %2890 = vmatprep.subr.mxu0 0.0
    %2891 = vmatpush1.msra.mxu0 0.0
    %2892 = vmatprep.subr.mxu0 0.0
    %2893 = vmatpush1.msra.mxu0 0.0
    %2894 = vmatprep.subr.mxu0 0.0
    %2895 = vmatpush1.msra.mxu0 %v2554
    %2896 = vmatprep.subr.mxu0 0.0
    %2897 = vmatpush1.msra.mxu0 %v2553
    %2898 = vmatprep.subr.mxu0 0.0
    %2899 = vmatpush2.msra.mxu0 0.0
    %2900 = vmatprep.subr.mxu0 0.0
    %2901 = vmatpush2.msra.mxu0 0.0
    %2902 = vmatprep.subr.mxu0 0.0
    %2903 = vmatpush2.msra.mxu0 0.0
    %2904 = vmatprep.subr.mxu0 0.0
    %2905 = vmatpush2.msra.mxu0 0.0
    %2906 = vmatprep.subr.mxu0 0.0
    %2907 = vmatpush2.msra.mxu0 0.0
    %2908 = vmatprep.subr.mxu0 0.0
    %2909 = vmatpush2.msra.mxu0 0.0
    %2910 = vmatprep.subr.mxu0 0.0
    %2911 = vmatpush2.msra.mxu0 0.0
    %2912 = vmatprep.subr.mxu0 0.0
    %2913 = vmatpush2.msra.mxu0 0.0
    %2914 = vmatprep.subr.mxu0 0.0
    %2915 = vmatpush2.msra.mxu0 0.0
    %2916 = vmatprep.subr.mxu0 0.0
    %2917 = vmatpush2.msra.mxu0 0.0
    %2918 = vmatprep.subr.mxu0 0.0
    %2919 = vmatpush2.msra.mxu0 0.0
    %2920 = vmatprep.subr.mxu0 0.0
    %2921 = vmatpush2.msra.mxu0 0.0
    %2922 = vmatprep.subr.mxu0 0.0
    %2923 = vmatpush2.msra.mxu0 0.0
    %2924 = vmatprep.subr.mxu0 0.0
    %2925 = vmatpush2.msra.mxu0 0.0
    %2926 = vmatprep.subr.mxu0 0.0
    %2927 = vmatpush2.msra.mxu0 0.0
    %2928 = vmatprep.subr.mxu0 0.0
    %2929 = vmatpush2.msra.mxu0 0.0
    %2930 = vmatprep.mubr.f32.mxu0 0.0
    %2931 = vmatmul.mubr.f32.gmra.mxu0 %v2864
    %v2932 = vpop.f32.mrf.mxu0
    %v2933 = vadd.f32 0.0, %v2932
    %v2934 = vpop.f32.mrf.mxu0
    %2935 = vdwg.mxu0
    %s2936 = scalar_lea.vmem [#allocation14], 32
    %v2937 = vld [vmem:[%s2936] sm:$0xff]
    %v2938 = vld [vmem:[%s2936 + $0x8] sm:$0xff]
    %v2940 = vsel %vm2013, %v2933, 0
    %2942 = vmatprep.subr.mxu0 0.0
    %2943 = vmatpush1.msra.mxu0 0.0
    %2944 = vmatprep.subr.mxu0 0.0
    %2945 = vmatpush1.msra.mxu0 0.0
    %2946 = vmatprep.subr.mxu0 0.0
    %2947 = vmatpush1.msra.mxu0 0.0
    %2948 = vmatprep.subr.mxu0 0.0
    %2949 = vmatpush1.msra.mxu0 0.0
    %2950 = vmatprep.subr.mxu0 0.0
    %2951 = vmatpush1.msra.mxu0 0.0
    %2952 = vmatprep.subr.mxu0 0.0
    %2953 = vmatpush1.msra.mxu0 0.0
    %2954 = vmatprep.subr.mxu0 0.0
    %2955 = vmatpush1.msra.mxu0 0.0
    %2956 = vmatprep.subr.mxu0 0.0
    %2957 = vmatpush1.msra.mxu0 0.0
    %2958 = vmatprep.subr.mxu0 0.0
    %2959 = vmatpush1.msra.mxu0 0.0
    %2960 = vmatprep.subr.mxu0 0.0
    %2961 = vmatpush1.msra.mxu0 0.0
    %2962 = vmatprep.subr.mxu0 0.0
    %2963 = vmatpush1.msra.mxu0 0.0
    %2964 = vmatprep.subr.mxu0 0.0
    %2965 = vmatpush1.msra.mxu0 0.0
    %2966 = vmatprep.subr.mxu0 0.0
    %2967 = vmatpush1.msra.mxu0 0.0
    %2968 = vmatprep.subr.mxu0 0.0
    %2969 = vmatpush1.msra.mxu0 0.0
    %2970 = vmatprep.subr.mxu0 0.0
    %2971 = vmatpush1.msra.mxu0 %v2938
    %2972 = vmatprep.subr.mxu0 0.0
    %2973 = vmatpush1.msra.mxu0 %v2937
    %2974 = vmatprep.subr.mxu0 0.0
    %2975 = vmatpush2.msra.mxu0 0.0
    %2976 = vmatprep.subr.mxu0 0.0
    %2977 = vmatpush2.msra.mxu0 0.0
    %2978 = vmatprep.subr.mxu0 0.0
    %2979 = vmatpush2.msra.mxu0 0.0
    %2980 = vmatprep.subr.mxu0 0.0
    %2981 = vmatpush2.msra.mxu0 0.0
    %2982 = vmatprep.subr.mxu0 0.0
    %2983 = vmatpush2.msra.mxu0 0.0
    %2984 = vmatprep.subr.mxu0 0.0
    %2985 = vmatpush2.msra.mxu0 0.0
    %2986 = vmatprep.subr.mxu0 0.0
    %2987 = vmatpush2.msra.mxu0 0.0
    %2988 = vmatprep.subr.mxu0 0.0
    %2989 = vmatpush2.msra.mxu0 0.0
    %2990 = vmatprep.subr.mxu0 0.0
    %2991 = vmatpush2.msra.mxu0 0.0
    %2992 = vmatprep.subr.mxu0 0.0
    %2993 = vmatpush2.msra.mxu0 0.0
    %2994 = vmatprep.subr.mxu0 0.0
    %2995 = vmatpush2.msra.mxu0 0.0
    %2996 = vmatprep.subr.mxu0 0.0
    %2997 = vmatpush2.msra.mxu0 0.0
    %2998 = vmatprep.subr.mxu0 0.0
    %2999 = vmatpush2.msra.mxu0 0.0
    %3000 = vmatprep.subr.mxu0 0.0
    %3001 = vmatpush2.msra.mxu0 0.0
    %3002 = vmatprep.subr.mxu0 0.0
    %3003 = vmatpush2.msra.mxu0 0.0
    %3004 = vmatprep.subr.mxu0 0.0
    %3005 = vmatpush2.msra.mxu0 0.0
    %3006 = vmatprep.mubr.f32.mxu0 0.0
    %3007 = vmatmul.mubr.f32.gmra.mxu0 %v2940
    %v3008 = vpop.f32.mrf.mxu0
    %v3009 = vadd.f32 0.0, %v3008
    %v3010 = vpop.f32.mrf.mxu0
    %3011 = vdwg.mxu0
    %v3012 = vadd.f32 %v2858, %v3009
    %v3013 = vsel %vm2013, %v3012, 0.0
    %v3014 = vrot.slane %v3013, 4
    %v3015 = vadd.f32 %v3013, %v3014
    %v3016 = vrot.slane %v3015, 2
    %v3017 = vadd.f32 %v3015, %v3016
    %v3018 = vrot.slane %v3017, 1
    %v3019 = vadd.f32 %v3017, %v3018
    %v3020 = vmul.f32 %v3012, %v3012
    %v3021 = vsel %vm2013, %v3020, 0.0
    %v3022 = vrot.slane %v3021, 4
    %v3023 = vadd.f32 %v3021, %v3022
    %v3024 = vrot.slane %v3023, 2
    %v3025 = vadd.f32 %v3023, %v3024
    %v3026 = vrot.slane %v3025, 1
    %v3027 = vadd.f32 %v3025, %v3026
    %3028 = vmatprep.subr.mxu0 0.0
    %3029 = vmatpush1.msra.mxu0 0.0
    %3030 = vmatprep.subr.mxu0 0.0
    %3031 = vmatpush1.msra.mxu0 0.0
    %3032 = vmatprep.subr.mxu0 0.0
    %3033 = vmatpush1.msra.mxu0 0.0
    %3034 = vmatprep.subr.mxu0 0.0
    %3035 = vmatpush1.msra.mxu0 0.0
    %3036 = vmatprep.subr.mxu0 0.0
    %3037 = vmatpush1.msra.mxu0 0.0
    %3038 = vmatprep.subr.mxu0 0.0
    %3039 = vmatpush1.msra.mxu0 0.0
    %3040 = vmatprep.subr.mxu0 0.0
    %3041 = vmatpush1.msra.mxu0 0.0
    %3042 = vmatprep.subr.mxu0 0.0
    %3043 = vmatpush1.msra.mxu0 0.0
    %3044 = vmatprep.subr.mxu0 0.0
    %3045 = vmatpush1.msra.mxu0 0.0
    %3046 = vmatprep.subr.mxu0 0.0
    %3047 = vmatpush1.msra.mxu0 0.0
    %3048 = vmatprep.subr.mxu0 0.0
    %3049 = vmatpush1.msra.mxu0 0.0
    %3050 = vmatprep.subr.mxu0 0.0
    %3051 = vmatpush1.msra.mxu0 0.0
    %3052 = vmatprep.subr.mxu0 0.0
    %3053 = vmatpush1.msra.mxu0 0.0
    %3054 = vmatprep.subr.mxu0 0.0
    %3055 = vmatpush1.msra.mxu0 0.0
    %3056 = vmatprep.subr.mxu0 0.0
    %3057 = vmatpush1.msra.mxu0 %v2560
    %3058 = vmatprep.subr.mxu0 0.0
    %3059 = vmatpush1.msra.mxu0 %v2559
    %3060 = vmatprep.subr.mxu0 0.0
    %3061 = vmatpush2.msra.mxu0 0.0
    %3062 = vmatprep.subr.mxu0 0.0
    %3063 = vmatpush2.msra.mxu0 0.0
    %3064 = vmatprep.subr.mxu0 0.0
    %3065 = vmatpush2.msra.mxu0 0.0
    %3066 = vmatprep.subr.mxu0 0.0
    %3067 = vmatpush2.msra.mxu0 0.0
    %3068 = vmatprep.subr.mxu0 0.0
    %3069 = vmatpush2.msra.mxu0 0.0
    %3070 = vmatprep.subr.mxu0 0.0
    %3071 = vmatpush2.msra.mxu0 0.0
    %3072 = vmatprep.subr.mxu0 0.0
    %3073 = vmatpush2.msra.mxu0 0.0
    %3074 = vmatprep.subr.mxu0 0.0
    %3075 = vmatpush2.msra.mxu0 0.0
    %3076 = vmatprep.subr.mxu0 0.0
    %3077 = vmatpush2.msra.mxu0 0.0
    %3078 = vmatprep.subr.mxu0 0.0
    %3079 = vmatpush2.msra.mxu0 0.0
    %3080 = vmatprep.subr.mxu0 0.0
    %3081 = vmatpush2.msra.mxu0 0.0
    %3082 = vmatprep.subr.mxu0 0.0
    %3083 = vmatpush2.msra.mxu0 0.0
    %3084 = vmatprep.subr.mxu0 0.0
    %3085 = vmatpush2.msra.mxu0 0.0
    %3086 = vmatprep.subr.mxu0 0.0
    %3087 = vmatpush2.msra.mxu0 0.0
    %3088 = vmatprep.subr.mxu0 0.0
    %3089 = vmatpush2.msra.mxu0 0.0
    %3090 = vmatprep.subr.mxu0 0.0
    %3091 = vmatpush2.msra.mxu0 0.0
    %3092 = vmatprep.mubr.f32.mxu0 0.0
    %3093 = vmatmul.mubr.f32.gmra.mxu0 %v2563
    %v3094 = vpop.f32.mrf.mxu0
    %v3095 = vadd.f32 0.0, %v3094
    %v3096 = vpop.f32.mrf.mxu0
    %3097 = vdwg.mxu0
    %3098 = vmatprep.subr.mxu0 0.0
    %3099 = vmatpush1.msra.mxu0 0.0
    %3100 = vmatprep.subr.mxu0 0.0
    %3101 = vmatpush1.msra.mxu0 0.0
    %3102 = vmatprep.subr.mxu0 0.0
    %3103 = vmatpush1.msra.mxu0 0.0
    %3104 = vmatprep.subr.mxu0 0.0
    %3105 = vmatpush1.msra.mxu0 0.0
    %3106 = vmatprep.subr.mxu0 0.0
    %3107 = vmatpush1.msra.mxu0 0.0
    %3108 = vmatprep.subr.mxu0 0.0
    %3109 = vmatpush1.msra.mxu0 0.0
    %3110 = vmatprep.subr.mxu0 0.0
    %3111 = vmatpush1.msra.mxu0 0.0
    %3112 = vmatprep.subr.mxu0 0.0
    %3113 = vmatpush1.msra.mxu0 0.0
    %3114 = vmatprep.subr.mxu0 0.0
    %3115 = vmatpush1.msra.mxu0 0.0
    %3116 = vmatprep.subr.mxu0 0.0
    %3117 = vmatpush1.msra.mxu0 0.0
    %3118 = vmatprep.subr.mxu0 0.0
    %3119 = vmatpush1.msra.mxu0 0.0
    %3120 = vmatprep.subr.mxu0 0.0
    %3121 = vmatpush1.msra.mxu0 0.0
    %3122 = vmatprep.subr.mxu0 0.0
    %3123 = vmatpush1.msra.mxu0 0.0
    %3124 = vmatprep.subr.mxu0 0.0
    %3125 = vmatpush1.msra.mxu0 0.0
    %3126 = vmatprep.subr.mxu0 0.0
    %3127 = vmatpush1.msra.mxu0 %v2560
    %3128 = vmatprep.subr.mxu0 0.0
    %3129 = vmatpush1.msra.mxu0 %v2559
    %3130 = vmatprep.subr.mxu0 0.0
    %3131 = vmatpush2.msra.mxu0 0.0
    %3132 = vmatprep.subr.mxu0 0.0
    %3133 = vmatpush2.msra.mxu0 0.0
    %3134 = vmatprep.subr.mxu0 0.0
    %3135 = vmatpush2.msra.mxu0 0.0
    %3136 = vmatprep.subr.mxu0 0.0
    %3137 = vmatpush2.msra.mxu0 0.0
    %3138 = vmatprep.subr.mxu0 0.0
    %3139 = vmatpush2.msra.mxu0 0.0
    %3140 = vmatprep.subr.mxu0 0.0
    %3141 = vmatpush2.msra.mxu0 0.0
    %3142 = vmatprep.subr.mxu0 0.0
    %3143 = vmatpush2.msra.mxu0 0.0
    %3144 = vmatprep.subr.mxu0 0.0
    %3145 = vmatpush2.msra.mxu0 0.0
    %3146 = vmatprep.subr.mxu0 0.0
    %3147 = vmatpush2.msra.mxu0 0.0
    %3148 = vmatprep.subr.mxu0 0.0
    %3149 = vmatpush2.msra.mxu0 0.0
    %3150 = vmatprep.subr.mxu0 0.0
    %3151 = vmatpush2.msra.mxu0 0.0
    %3152 = vmatprep.subr.mxu0 0.0
    %3153 = vmatpush2.msra.mxu0 0.0
    %3154 = vmatprep.subr.mxu0 0.0
    %3155 = vmatpush2.msra.mxu0 0.0
    %3156 = vmatprep.subr.mxu0 0.0
    %3157 = vmatpush2.msra.mxu0 0.0
    %3158 = vmatprep.subr.mxu0 0.0
    %3159 = vmatpush2.msra.mxu0 0.0
    %3160 = vmatprep.subr.mxu0 0.0
    %3161 = vmatpush2.msra.mxu0 0.0
    %3162 = vmatprep.mubr.f32.mxu0 0.0
    %3163 = vmatmul.mubr.f32.gmra.mxu0 %v2640
    %v3164 = vpop.f32.mrf.mxu0
    %v3165 = vadd.f32 0.0, %v3164
    %v3166 = vpop.f32.mrf.mxu0
    %3167 = vdwg.mxu0
    %v3169 = vsel %vm2013, %v3165, 0
    %3171 = vmatprep.subr.mxu0 0.0
    %3172 = vmatpush1.msra.mxu0 0.0
    %3173 = vmatprep.subr.mxu0 0.0
    %3174 = vmatpush1.msra.mxu0 0.0
    %3175 = vmatprep.subr.mxu0 0.0
    %3176 = vmatpush1.msra.mxu0 0.0
    %3177 = vmatprep.subr.mxu0 0.0
    %3178 = vmatpush1.msra.mxu0 0.0
    %3179 = vmatprep.subr.mxu0 0.0
    %3180 = vmatpush1.msra.mxu0 0.0
    %3181 = vmatprep.subr.mxu0 0.0
    %3182 = vmatpush1.msra.mxu0 0.0
    %3183 = vmatprep.subr.mxu0 0.0
    %3184 = vmatpush1.msra.mxu0 0.0
    %3185 = vmatprep.subr.mxu0 0.0
    %3186 = vmatpush1.msra.mxu0 0.0
    %3187 = vmatprep.subr.mxu0 0.0
    %3188 = vmatpush1.msra.mxu0 0.0
    %3189 = vmatprep.subr.mxu0 0.0
    %3190 = vmatpush1.msra.mxu0 0.0
    %3191 = vmatprep.subr.mxu0 0.0
    %3192 = vmatpush1.msra.mxu0 0.0
    %3193 = vmatprep.subr.mxu0 0.0
    %3194 = vmatpush1.msra.mxu0 0.0
    %3195 = vmatprep.subr.mxu0 0.0
    %3196 = vmatpush1.msra.mxu0 0.0
    %3197 = vmatprep.subr.mxu0 0.0
    %3198 = vmatpush1.msra.mxu0 0.0
    %3199 = vmatprep.subr.mxu0 0.0
    %3200 = vmatpush1.msra.mxu0 %v2714
    %3201 = vmatprep.subr.mxu0 0.0
    %3202 = vmatpush1.msra.mxu0 %v2713
    %3203 = vmatprep.subr.mxu0 0.0
    %3204 = vmatpush2.msra.mxu0 0.0
    %3205 = vmatprep.subr.mxu0 0.0
    %3206 = vmatpush2.msra.mxu0 0.0
    %3207 = vmatprep.subr.mxu0 0.0
    %3208 = vmatpush2.msra.mxu0 0.0
    %3209 = vmatprep.subr.mxu0 0.0
    %3210 = vmatpush2.msra.mxu0 0.0
    %3211 = vmatprep.subr.mxu0 0.0
    %3212 = vmatpush2.msra.mxu0 0.0
    %3213 = vmatprep.subr.mxu0 0.0
    %3214 = vmatpush2.msra.mxu0 0.0
    %3215 = vmatprep.subr.mxu0 0.0
    %3216 = vmatpush2.msra.mxu0 0.0
    %3217 = vmatprep.subr.mxu0 0.0
    %3218 = vmatpush2.msra.mxu0 0.0
    %3219 = vmatprep.subr.mxu0 0.0
    %3220 = vmatpush2.msra.mxu0 0.0
    %3221 = vmatprep.subr.mxu0 0.0
    %3222 = vmatpush2.msra.mxu0 0.0
    %3223 = vmatprep.subr.mxu0 0.0
    %3224 = vmatpush2.msra.mxu0 0.0
    %3225 = vmatprep.subr.mxu0 0.0
    %3226 = vmatpush2.msra.mxu0 0.0
    %3227 = vmatprep.subr.mxu0 0.0
    %3228 = vmatpush2.msra.mxu0 0.0
    %3229 = vmatprep.subr.mxu0 0.0
    %3230 = vmatpush2.msra.mxu0 0.0
    %3231 = vmatprep.subr.mxu0 0.0
    %3232 = vmatpush2.msra.mxu0 0.0
    %3233 = vmatprep.subr.mxu0 0.0
    %3234 = vmatpush2.msra.mxu0 0.0
    %3235 = vmatprep.mubr.f32.mxu0 0.0
    %3236 = vmatmul.mubr.f32.gmra.mxu0 %v3169
    %v3237 = vpop.f32.mrf.mxu0
    %v3238 = vadd.f32 0.0, %v3237
    %v3239 = vpop.f32.mrf.mxu0
    %3240 = vdwg.mxu0
    %v3242 = vsel %vm2013, %v3095, 0
    %3244 = vmatprep.subr.mxu0 0.0
    %3245 = vmatpush1.msra.mxu0 0.0
    %3246 = vmatprep.subr.mxu0 0.0
    %3247 = vmatpush1.msra.mxu0 0.0
    %3248 = vmatprep.subr.mxu0 0.0
    %3249 = vmatpush1.msra.mxu0 0.0
    %3250 = vmatprep.subr.mxu0 0.0
    %3251 = vmatpush1.msra.mxu0 0.0
    %3252 = vmatprep.subr.mxu0 0.0
    %3253 = vmatpush1.msra.mxu0 0.0
    %3254 = vmatprep.subr.mxu0 0.0
    %3255 = vmatpush1.msra.mxu0 0.0
    %3256 = vmatprep.subr.mxu0 0.0
    %3257 = vmatpush1.msra.mxu0 0.0
    %3258 = vmatprep.subr.mxu0 0.0
    %3259 = vmatpush1.msra.mxu0 0.0
    %3260 = vmatprep.subr.mxu0 0.0
    %3261 = vmatpush1.msra.mxu0 0.0
    %3262 = vmatprep.subr.mxu0 0.0
    %3263 = vmatpush1.msra.mxu0 0.0
    %3264 = vmatprep.subr.mxu0 0.0
    %3265 = vmatpush1.msra.mxu0 0.0
    %3266 = vmatprep.subr.mxu0 0.0
    %3267 = vmatpush1.msra.mxu0 0.0
    %3268 = vmatprep.subr.mxu0 0.0
    %3269 = vmatpush1.msra.mxu0 0.0
    %3270 = vmatprep.subr.mxu0 0.0
    %3271 = vmatpush1.msra.mxu0 0.0
    %3272 = vmatprep.subr.mxu0 0.0
    %3273 = vmatpush1.msra.mxu0 %v2636
    %3274 = vmatprep.subr.mxu0 0.0
    %3275 = vmatpush1.msra.mxu0 %v2635
    %3276 = vmatprep.subr.mxu0 0.0
    %3277 = vmatpush2.msra.mxu0 0.0
    %3278 = vmatprep.subr.mxu0 0.0
    %3279 = vmatpush2.msra.mxu0 0.0
    %3280 = vmatprep.subr.mxu0 0.0
    %3281 = vmatpush2.msra.mxu0 0.0
    %3282 = vmatprep.subr.mxu0 0.0
    %3283 = vmatpush2.msra.mxu0 0.0
    %3284 = vmatprep.subr.mxu0 0.0
    %3285 = vmatpush2.msra.mxu0 0.0
    %3286 = vmatprep.subr.mxu0 0.0
    %3287 = vmatpush2.msra.mxu0 0.0
    %3288 = vmatprep.subr.mxu0 0.0
    %3289 = vmatpush2.msra.mxu0 0.0
    %3290 = vmatprep.subr.mxu0 0.0
    %3291 = vmatpush2.msra.mxu0 0.0
    %3292 = vmatprep.subr.mxu0 0.0
    %3293 = vmatpush2.msra.mxu0 0.0
    %3294 = vmatprep.subr.mxu0 0.0
    %3295 = vmatpush2.msra.mxu0 0.0
    %3296 = vmatprep.subr.mxu0 0.0
    %3297 = vmatpush2.msra.mxu0 0.0
    %3298 = vmatprep.subr.mxu0 0.0
    %3299 = vmatpush2.msra.mxu0 0.0
    %3300 = vmatprep.subr.mxu0 0.0
    %3301 = vmatpush2.msra.mxu0 0.0
    %3302 = vmatprep.subr.mxu0 0.0
    %3303 = vmatpush2.msra.mxu0 0.0
    %3304 = vmatprep.subr.mxu0 0.0
    %3305 = vmatpush2.msra.mxu0 0.0
    %3306 = vmatprep.subr.mxu0 0.0
    %3307 = vmatpush2.msra.mxu0 0.0
    %3308 = vmatprep.mubr.f32.mxu0 0.0
    %3309 = vmatmul.mubr.f32.gmra.mxu0 %v3242
    %v3310 = vpop.f32.mrf.mxu0
    %v3311 = vadd.f32 %v3238, %v3310
    %v3312 = vpop.f32.mrf.mxu0
    %3313 = vdwg.mxu0
    %3314 = vmatprep.subr.mxu0 0.0
    %3315 = vmatpush1.msra.mxu0 0.0
    %3316 = vmatprep.subr.mxu0 0.0
    %3317 = vmatpush1.msra.mxu0 0.0
    %3318 = vmatprep.subr.mxu0 0.0
    %3319 = vmatpush1.msra.mxu0 0.0
    %3320 = vmatprep.subr.mxu0 0.0
    %3321 = vmatpush1.msra.mxu0 0.0
    %3322 = vmatprep.subr.mxu0 0.0
    %3323 = vmatpush1.msra.mxu0 0.0
    %3324 = vmatprep.subr.mxu0 0.0
    %3325 = vmatpush1.msra.mxu0 0.0
    %3326 = vmatprep.subr.mxu0 0.0
    %3327 = vmatpush1.msra.mxu0 0.0
    %3328 = vmatprep.subr.mxu0 0.0
    %3329 = vmatpush1.msra.mxu0 0.0
    %3330 = vmatprep.subr.mxu0 0.0
    %3331 = vmatpush1.msra.mxu0 0.0
    %3332 = vmatprep.subr.mxu0 0.0
    %3333 = vmatpush1.msra.mxu0 0.0
    %3334 = vmatprep.subr.mxu0 0.0
    %3335 = vmatpush1.msra.mxu0 0.0
    %3336 = vmatprep.subr.mxu0 0.0
    %3337 = vmatpush1.msra.mxu0 0.0
    %3338 = vmatprep.subr.mxu0 0.0
    %3339 = vmatpush1.msra.mxu0 0.0
    %3340 = vmatprep.subr.mxu0 0.0
    %3341 = vmatpush1.msra.mxu0 0.0
    %3342 = vmatprep.subr.mxu0 0.0
    %3343 = vmatpush1.msra.mxu0 %v2560
    %3344 = vmatprep.subr.mxu0 0.0
    %3345 = vmatpush1.msra.mxu0 %v2559
    %3346 = vmatprep.subr.mxu0 0.0
    %3347 = vmatpush2.msra.mxu0 0.0
    %3348 = vmatprep.subr.mxu0 0.0
    %3349 = vmatpush2.msra.mxu0 0.0
    %3350 = vmatprep.subr.mxu0 0.0
    %3351 = vmatpush2.msra.mxu0 0.0
    %3352 = vmatprep.subr.mxu0 0.0
    %3353 = vmatpush2.msra.mxu0 0.0
    %3354 = vmatprep.subr.mxu0 0.0
    %3355 = vmatpush2.msra.mxu0 0.0
    %3356 = vmatprep.subr.mxu0 0.0
    %3357 = vmatpush2.msra.mxu0 0.0
    %3358 = vmatprep.subr.mxu0 0.0
    %3359 = vmatpush2.msra.mxu0 0.0
    %3360 = vmatprep.subr.mxu0 0.0
    %3361 = vmatpush2.msra.mxu0 0.0
    %3362 = vmatprep.subr.mxu0 0.0
    %3363 = vmatpush2.msra.mxu0 0.0
    %3364 = vmatprep.subr.mxu0 0.0
    %3365 = vmatpush2.msra.mxu0 0.0
    %3366 = vmatprep.subr.mxu0 0.0
    %3367 = vmatpush2.msra.mxu0 0.0
    %3368 = vmatprep.subr.mxu0 0.0
    %3369 = vmatpush2.msra.mxu0 0.0
    %3370 = vmatprep.subr.mxu0 0.0
    %3371 = vmatpush2.msra.mxu0 0.0
    %3372 = vmatprep.subr.mxu0 0.0
    %3373 = vmatpush2.msra.mxu0 0.0
    %3374 = vmatprep.subr.mxu0 0.0
    %3375 = vmatpush2.msra.mxu0 0.0
    %3376 = vmatprep.subr.mxu0 0.0
    %3377 = vmatpush2.msra.mxu0 0.0
    %3378 = vmatprep.mubr.f32.mxu0 0.0
    %3379 = vmatmul.mubr.f32.gmra.mxu0 %v2864
    %v3380 = vpop.f32.mrf.mxu0
    %v3381 = vadd.f32 0.0, %v3380
    %v3382 = vpop.f32.mrf.mxu0
    %3383 = vdwg.mxu0
    %v3385 = vsel %vm2013, %v3381, 0
    %3387 = vmatprep.subr.mxu0 0.0
    %3388 = vmatpush1.msra.mxu0 0.0
    %3389 = vmatprep.subr.mxu0 0.0
    %3390 = vmatpush1.msra.mxu0 0.0
    %3391 = vmatprep.subr.mxu0 0.0
    %3392 = vmatpush1.msra.mxu0 0.0
    %3393 = vmatprep.subr.mxu0 0.0
    %3394 = vmatpush1.msra.mxu0 0.0
    %3395 = vmatprep.subr.mxu0 0.0
    %3396 = vmatpush1.msra.mxu0 0.0
    %3397 = vmatprep.subr.mxu0 0.0
    %3398 = vmatpush1.msra.mxu0 0.0
    %3399 = vmatprep.subr.mxu0 0.0
    %3400 = vmatpush1.msra.mxu0 0.0
    %3401 = vmatprep.subr.mxu0 0.0
    %3402 = vmatpush1.msra.mxu0 0.0
    %3403 = vmatprep.subr.mxu0 0.0
    %3404 = vmatpush1.msra.mxu0 0.0
    %3405 = vmatprep.subr.mxu0 0.0
    %3406 = vmatpush1.msra.mxu0 0.0
    %3407 = vmatprep.subr.mxu0 0.0
    %3408 = vmatpush1.msra.mxu0 0.0
    %3409 = vmatprep.subr.mxu0 0.0
    %3410 = vmatpush1.msra.mxu0 0.0
    %3411 = vmatprep.subr.mxu0 0.0
    %3412 = vmatpush1.msra.mxu0 0.0
    %3413 = vmatprep.subr.mxu0 0.0
    %3414 = vmatpush1.msra.mxu0 0.0
    %3415 = vmatprep.subr.mxu0 0.0
    %3416 = vmatpush1.msra.mxu0 %v2938
    %3417 = vmatprep.subr.mxu0 0.0
    %3418 = vmatpush1.msra.mxu0 %v2937
    %3419 = vmatprep.subr.mxu0 0.0
    %3420 = vmatpush2.msra.mxu0 0.0
    %3421 = vmatprep.subr.mxu0 0.0
    %3422 = vmatpush2.msra.mxu0 0.0
    %3423 = vmatprep.subr.mxu0 0.0
    %3424 = vmatpush2.msra.mxu0 0.0
    %3425 = vmatprep.subr.mxu0 0.0
    %3426 = vmatpush2.msra.mxu0 0.0
    %3427 = vmatprep.subr.mxu0 0.0
    %3428 = vmatpush2.msra.mxu0 0.0
    %3429 = vmatprep.subr.mxu0 0.0
    %3430 = vmatpush2.msra.mxu0 0.0
    %3431 = vmatprep.subr.mxu0 0.0
    %3432 = vmatpush2.msra.mxu0 0.0
    %3433 = vmatprep.subr.mxu0 0.0
    %3434 = vmatpush2.msra.mxu0 0.0
    %3435 = vmatprep.subr.mxu0 0.0
    %3436 = vmatpush2.msra.mxu0 0.0
    %3437 = vmatprep.subr.mxu0 0.0
    %3438 = vmatpush2.msra.mxu0 0.0
    %3439 = vmatprep.subr.mxu0 0.0
    %3440 = vmatpush2.msra.mxu0 0.0
    %3441 = vmatprep.subr.mxu0 0.0
    %3442 = vmatpush2.msra.mxu0 0.0
    %3443 = vmatprep.subr.mxu0 0.0
    %3444 = vmatpush2.msra.mxu0 0.0
    %3445 = vmatprep.subr.mxu0 0.0
    %3446 = vmatpush2.msra.mxu0 0.0
    %3447 = vmatprep.subr.mxu0 0.0
    %3448 = vmatpush2.msra.mxu0 0.0
    %3449 = vmatprep.subr.mxu0 0.0
    %3450 = vmatpush2.msra.mxu0 0.0
    %3451 = vmatprep.mubr.f32.mxu0 0.0
    %3452 = vmatmul.mubr.f32.gmra.mxu0 %v3385
    %v3453 = vpop.f32.mrf.mxu0
    %v3454 = vadd.f32 0.0, %v3453
    %v3455 = vpop.f32.mrf.mxu0
    %3456 = vdwg.mxu0
    %v3457 = vadd.f32 %v3311, %v3454
    %v3458 = vsel %vm2013, %v3457, 0.0
    %v3459 = vrot.slane %v3458, 4
    %v3460 = vadd.f32 %v3458, %v3459
    %v3461 = vrot.slane %v3460, 2
    %v3462 = vadd.f32 %v3460, %v3461
    %v3463 = vrot.slane %v3462, 1
    %v3464 = vadd.f32 %v3462, %v3463
    %v3465 = vmul.f32 %v3457, %v3457
    %v3466 = vsel %vm2013, %v3465, 0.0
    %v3467 = vrot.slane %v3466, 4
    %v3468 = vadd.f32 %v3466, %v3467
    %v3469 = vrot.slane %v3468, 2
    %v3470 = vadd.f32 %v3468, %v3469
    %v3471 = vrot.slane %v3470, 1
    %v3472 = vadd.f32 %v3470, %v3471
    %v3473 = vadd.f32 %v3019, %v3464
    %v3474 = vadd.f32 %v3027, %v3472
    %v3475 = vmul.f32 %v3473, 0.0625
    %v3476 = vmul.f32 %v3474, 0.0625
    %v3477 = vmul.f32 %v3475, %v3475
    %v3478 = vsub.f32 %v3476, %v3477
    %v3479 = vld [vmem:[#allocation16] sm:$0x1]
    %v3480 = vadd.f32 %v3478, 1e-05
    %v3481 = vrsqrt.pop %v3480
    %v3482 = vmul.f32 %v3479, %v3481
    %v3483 = vld [vmem:[%s12] sm:$0x1]
    %v3484 = vmul.f32 %v3475, %v3482
    %v3485 = vsub.f32 %v3483, %v3484
    %v3487 = vlaneseq
    %v3488 = vshrl.u32 %v3487, 7
    %v3489 = vsub.s32 0, %v3488
    %v3490 = vrot.slane %v3482, %v3489
    %v3492 = vmul.f32 %v3012, %v3490
    %v3494 = vlaneseq
    %v3495 = vshrl.u32 %v3494, 7
    %v3496 = vsub.s32 0, %v3495
    %v3497 = vrot.slane %v3485, %v3496
    %v3499 = vadd.f32 %v3492, %v3497
    %v3500 = vmax.f32 %v3499, 0.0
    %v3501 = vmul.f32 %v3457, %v3490
    %v3502 = vadd.f32 %v3501, %v3497
    %v3503 = vmax.f32 %v3502, 0.0
    %v3504 = vld [vmem:[%s13] sm:$0xf]
    %v3506 = vsel %vm851, %v3504, 0
    %3508 = vmatprep.subr.mxu0 0.0
    %3509 = vmatpush1.msra.mxu0 0.0
    %3510 = vmatprep.subr.mxu0 0.0
    %3511 = vmatpush1.msra.mxu0 0.0
    %3512 = vmatprep.subr.mxu0 0.0
    %3513 = vmatpush1.msra.mxu0 0.0
    %3514 = vmatprep.subr.mxu0 0.0
    %3515 = vmatpush1.msra.mxu0 0.0
    %3516 = vmatprep.subr.mxu0 0.0
    %3517 = vmatpush1.msra.mxu0 0.0
    %3518 = vmatprep.subr.mxu0 0.0
    %3519 = vmatpush1.msra.mxu0 0.0
    %3520 = vmatprep.subr.mxu0 0.0
    %3521 = vmatpush1.msra.mxu0 0.0
    %3522 = vmatprep.subr.mxu0 0.0
    %3523 = vmatpush1.msra.mxu0 0.0
    %3524 = vmatprep.subr.mxu0 0.0
    %3525 = vmatpush1.msra.mxu0 0.0
    %3526 = vmatprep.subr.mxu0 0.0
    %3527 = vmatpush1.msra.mxu0 0.0
    %3528 = vmatprep.subr.mxu0 0.0
    %3529 = vmatpush1.msra.mxu0 0.0
    %3530 = vmatprep.subr.mxu0 0.0
    %3531 = vmatpush1.msra.mxu0 0.0
    %3532 = vmatprep.subr.mxu0 0.0
    %3533 = vmatpush1.msra.mxu0 0.0
    %3534 = vmatprep.subr.mxu0 0.0
    %3535 = vmatpush1.msra.mxu0 0.0
    %3536 = vmatprep.subr.mxu0 0.0
    %3537 = vmatpush1.msra.mxu0 0.0
    %3538 = vmatprep.subr.mxu0 0.0
    %3539 = vmatpush1.msra.mxu0 %v3500
    %3540 = vmatprep.subr.mxu0 0.0
    %3541 = vmatpush2.msra.mxu0 0.0
    %3542 = vmatprep.subr.mxu0 0.0
    %3543 = vmatpush2.msra.mxu0 0.0
    %3544 = vmatprep.subr.mxu0 0.0
    %3545 = vmatpush2.msra.mxu0 0.0
    %3546 = vmatprep.subr.mxu0 0.0
    %3547 = vmatpush2.msra.mxu0 0.0
    %3548 = vmatprep.subr.mxu0 0.0
    %3549 = vmatpush2.msra.mxu0 0.0
    %3550 = vmatprep.subr.mxu0 0.0
    %3551 = vmatpush2.msra.mxu0 0.0
    %3552 = vmatprep.subr.mxu0 0.0
    %3553 = vmatpush2.msra.mxu0 0.0
    %3554 = vmatprep.subr.mxu0 0.0
    %3555 = vmatpush2.msra.mxu0 0.0
    %3556 = vmatprep.subr.mxu0 0.0
    %3557 = vmatpush2.msra.mxu0 0.0
    %3558 = vmatprep.subr.mxu0 0.0
    %3559 = vmatpush2.msra.mxu0 0.0
    %3560 = vmatprep.subr.mxu0 0.0
    %3561 = vmatpush2.msra.mxu0 0.0
    %3562 = vmatprep.subr.mxu0 0.0
    %3563 = vmatpush2.msra.mxu0 0.0
    %3564 = vmatprep.subr.mxu0 0.0
    %3565 = vmatpush2.msra.mxu0 0.0
    %3566 = vmatprep.subr.mxu0 0.0
    %3567 = vmatpush2.msra.mxu0 0.0
    %3568 = vmatprep.subr.mxu0 0.0
    %3569 = vmatpush2.msra.mxu0 0.0
    %3570 = vmatprep.subr.mxu0 0.0
    %3571 = vmatpush2.msra.mxu0 0.0
    %3572 = vmatprep.mubr.f32.mxu0 0.0
    %3573 = vmatmul.mubr.f32.gmra.mxu0 %v3506
    %v3574 = vpop.f32.mrf.mxu0
    %v3575 = vadd.f32 0.0, %v3574
    %v3576 = vpop.f32.mrf.mxu0
    %3577 = vdwg.mxu0
    %v3578 = vld [vmem:[#allocation17] sm:$0xff]
    %v3579 = vld [vmem:[#allocation17 + $0x8] sm:$0xff]
    %s3580 = scalar_lea.vmem %s13, 4
    %v3581 = vld [vmem:[%s3580] sm:$0xf]
    %v3583 = vsel %vm851, %v3581, 0
    %3585 = vmatprep.subr.mxu0 0.0
    %3586 = vmatpush1.msra.mxu0 0.0
    %3587 = vmatprep.subr.mxu0 0.0
    %3588 = vmatpush1.msra.mxu0 0.0
    %3589 = vmatprep.subr.mxu0 0.0
    %3590 = vmatpush1.msra.mxu0 0.0
    %3591 = vmatprep.subr.mxu0 0.0
    %3592 = vmatpush1.msra.mxu0 0.0
    %3593 = vmatprep.subr.mxu0 0.0
    %3594 = vmatpush1.msra.mxu0 0.0
    %3595 = vmatprep.subr.mxu0 0.0
    %3596 = vmatpush1.msra.mxu0 0.0
    %3597 = vmatprep.subr.mxu0 0.0
    %3598 = vmatpush1.msra.mxu0 0.0
    %3599 = vmatprep.subr.mxu0 0.0
    %3600 = vmatpush1.msra.mxu0 0.0
    %3601 = vmatprep.subr.mxu0 0.0
    %3602 = vmatpush1.msra.mxu0 0.0
    %3603 = vmatprep.subr.mxu0 0.0
    %3604 = vmatpush1.msra.mxu0 0.0
    %3605 = vmatprep.subr.mxu0 0.0
    %3606 = vmatpush1.msra.mxu0 0.0
    %3607 = vmatprep.subr.mxu0 0.0
    %3608 = vmatpush1.msra.mxu0 0.0
    %3609 = vmatprep.subr.mxu0 0.0
    %3610 = vmatpush1.msra.mxu0 0.0
    %3611 = vmatprep.subr.mxu0 0.0
    %3612 = vmatpush1.msra.mxu0 0.0
    %3613 = vmatprep.subr.mxu0 0.0
    %3614 = vmatpush1.msra.mxu0 0.0
    %3615 = vmatprep.subr.mxu0 0.0
    %3616 = vmatpush1.msra.mxu0 %v3500
    %3617 = vmatprep.subr.mxu0 0.0
    %3618 = vmatpush2.msra.mxu0 0.0
    %3619 = vmatprep.subr.mxu0 0.0
    %3620 = vmatpush2.msra.mxu0 0.0
    %3621 = vmatprep.subr.mxu0 0.0
    %3622 = vmatpush2.msra.mxu0 0.0
    %3623 = vmatprep.subr.mxu0 0.0
    %3624 = vmatpush2.msra.mxu0 0.0
    %3625 = vmatprep.subr.mxu0 0.0
    %3626 = vmatpush2.msra.mxu0 0.0
    %3627 = vmatprep.subr.mxu0 0.0
    %3628 = vmatpush2.msra.mxu0 0.0
    %3629 = vmatprep.subr.mxu0 0.0
    %3630 = vmatpush2.msra.mxu0 0.0
    %3631 = vmatprep.subr.mxu0 0.0
    %3632 = vmatpush2.msra.mxu0 0.0
    %3633 = vmatprep.subr.mxu0 0.0
    %3634 = vmatpush2.msra.mxu0 0.0
    %3635 = vmatprep.subr.mxu0 0.0
    %3636 = vmatpush2.msra.mxu0 0.0
    %3637 = vmatprep.subr.mxu0 0.0
    %3638 = vmatpush2.msra.mxu0 0.0
    %3639 = vmatprep.subr.mxu0 0.0
    %3640 = vmatpush2.msra.mxu0 0.0
    %3641 = vmatprep.subr.mxu0 0.0
    %3642 = vmatpush2.msra.mxu0 0.0
    %3643 = vmatprep.subr.mxu0 0.0
    %3644 = vmatpush2.msra.mxu0 0.0
    %3645 = vmatprep.subr.mxu0 0.0
    %3646 = vmatpush2.msra.mxu0 0.0
    %3647 = vmatprep.subr.mxu0 0.0
    %3648 = vmatpush2.msra.mxu0 0.0
    %3649 = vmatprep.mubr.f32.mxu0 0.0
    %3650 = vmatmul.mubr.f32.gmra.mxu0 %v3583
    %v3651 = vpop.f32.mrf.mxu0
    %v3652 = vadd.f32 0.0, %v3651
    %v3653 = vpop.f32.mrf.mxu0
    %3654 = vdwg.mxu0
    %s3655 = scalar_lea.vmem [#allocation17], 16
    %v3656 = vld [vmem:[%s3655] sm:$0xff]
    %v3657 = vld [vmem:[%s3655 + $0x8] sm:$0xff]
    %v3659 = vsel %vm2013, %v3652, 0
    %3661 = vmatprep.subr.mxu0 0.0
    %3662 = vmatpush1.msra.mxu0 0.0
    %3663 = vmatprep.subr.mxu0 0.0
    %3664 = vmatpush1.msra.mxu0 0.0
    %3665 = vmatprep.subr.mxu0 0.0
    %3666 = vmatpush1.msra.mxu0 0.0
    %3667 = vmatprep.subr.mxu0 0.0
    %3668 = vmatpush1.msra.mxu0 0.0
    %3669 = vmatprep.subr.mxu0 0.0
    %3670 = vmatpush1.msra.mxu0 0.0
    %3671 = vmatprep.subr.mxu0 0.0
    %3672 = vmatpush1.msra.mxu0 0.0
    %3673 = vmatprep.subr.mxu0 0.0
    %3674 = vmatpush1.msra.mxu0 0.0
    %3675 = vmatprep.subr.mxu0 0.0
    %3676 = vmatpush1.msra.mxu0 0.0
    %3677 = vmatprep.subr.mxu0 0.0
    %3678 = vmatpush1.msra.mxu0 0.0
    %3679 = vmatprep.subr.mxu0 0.0
    %3680 = vmatpush1.msra.mxu0 0.0
    %3681 = vmatprep.subr.mxu0 0.0
    %3682 = vmatpush1.msra.mxu0 0.0
    %3683 = vmatprep.subr.mxu0 0.0
    %3684 = vmatpush1.msra.mxu0 0.0
    %3685 = vmatprep.subr.mxu0 0.0
    %3686 = vmatpush1.msra.mxu0 0.0
    %3687 = vmatprep.subr.mxu0 0.0
    %3688 = vmatpush1.msra.mxu0 0.0
    %3689 = vmatprep.subr.mxu0 0.0
    %3690 = vmatpush1.msra.mxu0 %v3657
    %3691 = vmatprep.subr.mxu0 0.0
    %3692 = vmatpush1.msra.mxu0 %v3656
    %3693 = vmatprep.subr.mxu0 0.0
    %3694 = vmatpush2.msra.mxu0 0.0
    %3695 = vmatprep.subr.mxu0 0.0
    %3696 = vmatpush2.msra.mxu0 0.0
    %3697 = vmatprep.subr.mxu0 0.0
    %3698 = vmatpush2.msra.mxu0 0.0
    %3699 = vmatprep.subr.mxu0 0.0
    %3700 = vmatpush2.msra.mxu0 0.0
    %3701 = vmatprep.subr.mxu0 0.0
    %3702 = vmatpush2.msra.mxu0 0.0
    %3703 = vmatprep.subr.mxu0 0.0
    %3704 = vmatpush2.msra.mxu0 0.0
    %3705 = vmatprep.subr.mxu0 0.0
    %3706 = vmatpush2.msra.mxu0 0.0
    %3707 = vmatprep.subr.mxu0 0.0
    %3708 = vmatpush2.msra.mxu0 0.0
    %3709 = vmatprep.subr.mxu0 0.0
    %3710 = vmatpush2.msra.mxu0 0.0
    %3711 = vmatprep.subr.mxu0 0.0
    %3712 = vmatpush2.msra.mxu0 0.0
    %3713 = vmatprep.subr.mxu0 0.0
    %3714 = vmatpush2.msra.mxu0 0.0
    %3715 = vmatprep.subr.mxu0 0.0
    %3716 = vmatpush2.msra.mxu0 0.0
    %3717 = vmatprep.subr.mxu0 0.0
    %3718 = vmatpush2.msra.mxu0 0.0
    %3719 = vmatprep.subr.mxu0 0.0
    %3720 = vmatpush2.msra.mxu0 0.0
    %3721 = vmatprep.subr.mxu0 0.0
    %3722 = vmatpush2.msra.mxu0 0.0
    %3723 = vmatprep.subr.mxu0 0.0
    %3724 = vmatpush2.msra.mxu0 0.0
    %3725 = vmatprep.mubr.f32.mxu0 0.0
    %3726 = vmatmul.mubr.f32.gmra.mxu0 %v3659
    %v3727 = vpop.f32.mrf.mxu0
    %v3728 = vadd.f32 0.0, %v3727
    %v3729 = vpop.f32.mrf.mxu0
    %3730 = vdwg.mxu0
    %v3732 = vsel %vm2013, %v3575, 0
    %3734 = vmatprep.subr.mxu0 0.0
    %3735 = vmatpush1.msra.mxu0 0.0
    %3736 = vmatprep.subr.mxu0 0.0
    %3737 = vmatpush1.msra.mxu0 0.0
    %3738 = vmatprep.subr.mxu0 0.0
    %3739 = vmatpush1.msra.mxu0 0.0
    %3740 = vmatprep.subr.mxu0 0.0
    %3741 = vmatpush1.msra.mxu0 0.0
    %3742 = vmatprep.subr.mxu0 0.0
    %3743 = vmatpush1.msra.mxu0 0.0
    %3744 = vmatprep.subr.mxu0 0.0
    %3745 = vmatpush1.msra.mxu0 0.0
    %3746 = vmatprep.subr.mxu0 0.0
    %3747 = vmatpush1.msra.mxu0 0.0
    %3748 = vmatprep.subr.mxu0 0.0
    %3749 = vmatpush1.msra.mxu0 0.0
    %3750 = vmatprep.subr.mxu0 0.0
    %3751 = vmatpush1.msra.mxu0 0.0
    %3752 = vmatprep.subr.mxu0 0.0
    %3753 = vmatpush1.msra.mxu0 0.0
    %3754 = vmatprep.subr.mxu0 0.0
    %3755 = vmatpush1.msra.mxu0 0.0
    %3756 = vmatprep.subr.mxu0 0.0
    %3757 = vmatpush1.msra.mxu0 0.0
    %3758 = vmatprep.subr.mxu0 0.0
    %3759 = vmatpush1.msra.mxu0 0.0
    %3760 = vmatprep.subr.mxu0 0.0
    %3761 = vmatpush1.msra.mxu0 0.0
    %3762 = vmatprep.subr.mxu0 0.0
    %3763 = vmatpush1.msra.mxu0 %v3579
    %3764 = vmatprep.subr.mxu0 0.0
    %3765 = vmatpush1.msra.mxu0 %v3578
    %3766 = vmatprep.subr.mxu0 0.0
    %3767 = vmatpush2.msra.mxu0 0.0
    %3768 = vmatprep.subr.mxu0 0.0
    %3769 = vmatpush2.msra.mxu0 0.0
    %3770 = vmatprep.subr.mxu0 0.0
    %3771 = vmatpush2.msra.mxu0 0.0
    %3772 = vmatprep.subr.mxu0 0.0
    %3773 = vmatpush2.msra.mxu0 0.0
    %3774 = vmatprep.subr.mxu0 0.0
    %3775 = vmatpush2.msra.mxu0 0.0
    %3776 = vmatprep.subr.mxu0 0.0
    %3777 = vmatpush2.msra.mxu0 0.0
    %3778 = vmatprep.subr.mxu0 0.0
    %3779 = vmatpush2.msra.mxu0 0.0
    %3780 = vmatprep.subr.mxu0 0.0
    %3781 = vmatpush2.msra.mxu0 0.0
    %3782 = vmatprep.subr.mxu0 0.0
    %3783 = vmatpush2.msra.mxu0 0.0
    %3784 = vmatprep.subr.mxu0 0.0
    %3785 = vmatpush2.msra.mxu0 0.0
    %3786 = vmatprep.subr.mxu0 0.0
    %3787 = vmatpush2.msra.mxu0 0.0
    %3788 = vmatprep.subr.mxu0 0.0
    %3789 = vmatpush2.msra.mxu0 0.0
    %3790 = vmatprep.subr.mxu0 0.0
    %3791 = vmatpush2.msra.mxu0 0.0
    %3792 = vmatprep.subr.mxu0 0.0
    %3793 = vmatpush2.msra.mxu0 0.0
    %3794 = vmatprep.subr.mxu0 0.0
    %3795 = vmatpush2.msra.mxu0 0.0
    %3796 = vmatprep.subr.mxu0 0.0
    %3797 = vmatpush2.msra.mxu0 0.0
    %3798 = vmatprep.mubr.f32.mxu0 0.0
    %3799 = vmatmul.mubr.f32.gmra.mxu0 %v3732
    %v3800 = vpop.f32.mrf.mxu0
    %v3801 = vadd.f32 %v3728, %v3800
    %v3802 = vpop.f32.mrf.mxu0
    %3803 = vdwg.mxu0
    %s3804 = scalar_lea.vmem %s13, 8
    %v3805 = vld [vmem:[%s3804] sm:$0xf]
    %v3807 = vsel %vm851, %v3805, 0
    %3809 = vmatprep.subr.mxu0 0.0
    %3810 = vmatpush1.msra.mxu0 0.0
    %3811 = vmatprep.subr.mxu0 0.0
    %3812 = vmatpush1.msra.mxu0 0.0
    %3813 = vmatprep.subr.mxu0 0.0
    %3814 = vmatpush1.msra.mxu0 0.0
    %3815 = vmatprep.subr.mxu0 0.0
    %3816 = vmatpush1.msra.mxu0 0.0
    %3817 = vmatprep.subr.mxu0 0.0
    %3818 = vmatpush1.msra.mxu0 0.0
    %3819 = vmatprep.subr.mxu0 0.0
    %3820 = vmatpush1.msra.mxu0 0.0
    %3821 = vmatprep.subr.mxu0 0.0
    %3822 = vmatpush1.msra.mxu0 0.0
    %3823 = vmatprep.subr.mxu0 0.0
    %3824 = vmatpush1.msra.mxu0 0.0
    %3825 = vmatprep.subr.mxu0 0.0
    %3826 = vmatpush1.msra.mxu0 0.0
    %3827 = vmatprep.subr.mxu0 0.0
    %3828 = vmatpush1.msra.mxu0 0.0
    %3829 = vmatprep.subr.mxu0 0.0
    %3830 = vmatpush1.msra.mxu0 0.0
    %3831 = vmatprep.subr.mxu0 0.0
    %3832 = vmatpush1.msra.mxu0 0.0
    %3833 = vmatprep.subr.mxu0 0.0
    %3834 = vmatpush1.msra.mxu0 0.0
    %3835 = vmatprep.subr.mxu0 0.0
    %3836 = vmatpush1.msra.mxu0 0.0
    %3837 = vmatprep.subr.mxu0 0.0
    %3838 = vmatpush1.msra.mxu0 0.0
    %3839 = vmatprep.subr.mxu0 0.0
    %3840 = vmatpush1.msra.mxu0 %v3500
    %3841 = vmatprep.subr.mxu0 0.0
    %3842 = vmatpush2.msra.mxu0 0.0
    %3843 = vmatprep.subr.mxu0 0.0
    %3844 = vmatpush2.msra.mxu0 0.0
    %3845 = vmatprep.subr.mxu0 0.0
    %3846 = vmatpush2.msra.mxu0 0.0
    %3847 = vmatprep.subr.mxu0 0.0
    %3848 = vmatpush2.msra.mxu0 0.0
    %3849 = vmatprep.subr.mxu0 0.0
    %3850 = vmatpush2.msra.mxu0 0.0
    %3851 = vmatprep.subr.mxu0 0.0
    %3852 = vmatpush2.msra.mxu0 0.0
    %3853 = vmatprep.subr.mxu0 0.0
    %3854 = vmatpush2.msra.mxu0 0.0
    %3855 = vmatprep.subr.mxu0 0.0
    %3856 = vmatpush2.msra.mxu0 0.0
    %3857 = vmatprep.subr.mxu0 0.0
    %3858 = vmatpush2.msra.mxu0 0.0
    %3859 = vmatprep.subr.mxu0 0.0
    %3860 = vmatpush2.msra.mxu0 0.0
    %3861 = vmatprep.subr.mxu0 0.0
    %3862 = vmatpush2.msra.mxu0 0.0
    %3863 = vmatprep.subr.mxu0 0.0
    %3864 = vmatpush2.msra.mxu0 0.0
    %3865 = vmatprep.subr.mxu0 0.0
    %3866 = vmatpush2.msra.mxu0 0.0
    %3867 = vmatprep.subr.mxu0 0.0
    %3868 = vmatpush2.msra.mxu0 0.0
    %3869 = vmatprep.subr.mxu0 0.0
    %3870 = vmatpush2.msra.mxu0 0.0
    %3871 = vmatprep.subr.mxu0 0.0
    %3872 = vmatpush2.msra.mxu0 0.0
    %3873 = vmatprep.mubr.f32.mxu0 0.0
    %3874 = vmatmul.mubr.f32.gmra.mxu0 %v3807
    %v3875 = vpop.f32.mrf.mxu0
    %v3876 = vadd.f32 0.0, %v3875
    %v3877 = vpop.f32.mrf.mxu0
    %3878 = vdwg.mxu0
    %s3879 = scalar_lea.vmem [#allocation17], 32
    %v3880 = vld [vmem:[%s3879] sm:$0xff]
    %v3881 = vld [vmem:[%s3879 + $0x8] sm:$0xff]
    %v3883 = vsel %vm2013, %v3876, 0
    %3885 = vmatprep.subr.mxu0 0.0
    %3886 = vmatpush1.msra.mxu0 0.0
    %3887 = vmatprep.subr.mxu0 0.0
    %3888 = vmatpush1.msra.mxu0 0.0
    %3889 = vmatprep.subr.mxu0 0.0
    %3890 = vmatpush1.msra.mxu0 0.0
    %3891 = vmatprep.subr.mxu0 0.0
    %3892 = vmatpush1.msra.mxu0 0.0
    %3893 = vmatprep.subr.mxu0 0.0
    %3894 = vmatpush1.msra.mxu0 0.0
    %3895 = vmatprep.subr.mxu0 0.0
    %3896 = vmatpush1.msra.mxu0 0.0
    %3897 = vmatprep.subr.mxu0 0.0
    %3898 = vmatpush1.msra.mxu0 0.0
    %3899 = vmatprep.subr.mxu0 0.0
    %3900 = vmatpush1.msra.mxu0 0.0
    %3901 = vmatprep.subr.mxu0 0.0
    %3902 = vmatpush1.msra.mxu0 0.0
    %3903 = vmatprep.subr.mxu0 0.0
    %3904 = vmatpush1.msra.mxu0 0.0
    %3905 = vmatprep.subr.mxu0 0.0
    %3906 = vmatpush1.msra.mxu0 0.0
    %3907 = vmatprep.subr.mxu0 0.0
    %3908 = vmatpush1.msra.mxu0 0.0
    %3909 = vmatprep.subr.mxu0 0.0
    %3910 = vmatpush1.msra.mxu0 0.0
    %3911 = vmatprep.subr.mxu0 0.0
    %3912 = vmatpush1.msra.mxu0 0.0
    %3913 = vmatprep.subr.mxu0 0.0
    %3914 = vmatpush1.msra.mxu0 %v3881
    %3915 = vmatprep.subr.mxu0 0.0
    %3916 = vmatpush1.msra.mxu0 %v3880
    %3917 = vmatprep.subr.mxu0 0.0
    %3918 = vmatpush2.msra.mxu0 0.0
    %3919 = vmatprep.subr.mxu0 0.0
    %3920 = vmatpush2.msra.mxu0 0.0
    %3921 = vmatprep.subr.mxu0 0.0
    %3922 = vmatpush2.msra.mxu0 0.0
    %3923 = vmatprep.subr.mxu0 0.0
    %3924 = vmatpush2.msra.mxu0 0.0
    %3925 = vmatprep.subr.mxu0 0.0
    %3926 = vmatpush2.msra.mxu0 0.0
    %3927 = vmatprep.subr.mxu0 0.0
    %3928 = vmatpush2.msra.mxu0 0.0
    %3929 = vmatprep.subr.mxu0 0.0
    %3930 = vmatpush2.msra.mxu0 0.0
    %3931 = vmatprep.subr.mxu0 0.0
    %3932 = vmatpush2.msra.mxu0 0.0
    %3933 = vmatprep.subr.mxu0 0.0
    %3934 = vmatpush2.msra.mxu0 0.0
    %3935 = vmatprep.subr.mxu0 0.0
    %3936 = vmatpush2.msra.mxu0 0.0
    %3937 = vmatprep.subr.mxu0 0.0
    %3938 = vmatpush2.msra.mxu0 0.0
    %3939 = vmatprep.subr.mxu0 0.0
    %3940 = vmatpush2.msra.mxu0 0.0
    %3941 = vmatprep.subr.mxu0 0.0
    %3942 = vmatpush2.msra.mxu0 0.0
    %3943 = vmatprep.subr.mxu0 0.0
    %3944 = vmatpush2.msra.mxu0 0.0
    %3945 = vmatprep.subr.mxu0 0.0
    %3946 = vmatpush2.msra.mxu0 0.0
    %3947 = vmatprep.subr.mxu0 0.0
    %3948 = vmatpush2.msra.mxu0 0.0
    %3949 = vmatprep.mubr.f32.mxu0 0.0
    %3950 = vmatmul.mubr.f32.gmra.mxu0 %v3883
    %v3951 = vpop.f32.mrf.mxu0
    %v3952 = vadd.f32 0.0, %v3951
    %v3953 = vpop.f32.mrf.mxu0
    %3954 = vdwg.mxu0
    %v3955 = vadd.f32 %v3801, %v3952
    %vm3956 = vcmask 257024
    %v3957 = vsel %vm3956, %v3955, 0.0
    %v3958 = vrot.slane %v3957, 4
    %v3959 = vadd.f32 %v3957, %v3958
    %v3960 = vrot.slane %v3959, 2
    %v3961 = vadd.f32 %v3959, %v3960
    %v3962 = vrot.slane %v3961, 1
    %v3963 = vadd.f32 %v3961, %v3962
    %v3964 = vmul.f32 %v3955, %v3955
    %v3965 = vsel %vm3956, %v3964, 0.0
    %v3966 = vrot.slane %v3965, 4
    %v3967 = vadd.f32 %v3965, %v3966
    %v3968 = vrot.slane %v3967, 2
    %v3969 = vadd.f32 %v3967, %v3968
    %v3970 = vrot.slane %v3969, 1
    %v3971 = vadd.f32 %v3969, %v3970
    %3972 = vmatprep.subr.mxu0 0.0
    %3973 = vmatpush1.msra.mxu0 0.0
    %3974 = vmatprep.subr.mxu0 0.0
    %3975 = vmatpush1.msra.mxu0 0.0
    %3976 = vmatprep.subr.mxu0 0.0
    %3977 = vmatpush1.msra.mxu0 0.0
    %3978 = vmatprep.subr.mxu0 0.0
    %3979 = vmatpush1.msra.mxu0 0.0
    %3980 = vmatprep.subr.mxu0 0.0
    %3981 = vmatpush1.msra.mxu0 0.0
    %3982 = vmatprep.subr.mxu0 0.0
    %3983 = vmatpush1.msra.mxu0 0.0
    %3984 = vmatprep.subr.mxu0 0.0
    %3985 = vmatpush1.msra.mxu0 0.0
    %3986 = vmatprep.subr.mxu0 0.0
    %3987 = vmatpush1.msra.mxu0 0.0
    %3988 = vmatprep.subr.mxu0 0.0
    %3989 = vmatpush1.msra.mxu0 0.0
    %3990 = vmatprep.subr.mxu0 0.0
    %3991 = vmatpush1.msra.mxu0 0.0
    %3992 = vmatprep.subr.mxu0 0.0
    %3993 = vmatpush1.msra.mxu0 0.0
    %3994 = vmatprep.subr.mxu0 0.0
    %3995 = vmatpush1.msra.mxu0 0.0
    %3996 = vmatprep.subr.mxu0 0.0
    %3997 = vmatpush1.msra.mxu0 0.0
    %3998 = vmatprep.subr.mxu0 0.0
    %3999 = vmatpush1.msra.mxu0 0.0
    %4000 = vmatprep.subr.mxu0 0.0
    %4001 = vmatpush1.msra.mxu0 0.0
    %4002 = vmatprep.subr.mxu0 0.0
    %4003 = vmatpush1.msra.mxu0 %v3503
    %4004 = vmatprep.subr.mxu0 0.0
    %4005 = vmatpush2.msra.mxu0 0.0
    %4006 = vmatprep.subr.mxu0 0.0
    %4007 = vmatpush2.msra.mxu0 0.0
    %4008 = vmatprep.subr.mxu0 0.0
    %4009 = vmatpush2.msra.mxu0 0.0
    %4010 = vmatprep.subr.mxu0 0.0
    %4011 = vmatpush2.msra.mxu0 0.0
    %4012 = vmatprep.subr.mxu0 0.0
    %4013 = vmatpush2.msra.mxu0 0.0
    %4014 = vmatprep.subr.mxu0 0.0
    %4015 = vmatpush2.msra.mxu0 0.0
    %4016 = vmatprep.subr.mxu0 0.0
    %4017 = vmatpush2.msra.mxu0 0.0
    %4018 = vmatprep.subr.mxu0 0.0
    %4019 = vmatpush2.msra.mxu0 0.0
    %4020 = vmatprep.subr.mxu0 0.0
    %4021 = vmatpush2.msra.mxu0 0.0
    %4022 = vmatprep.subr.mxu0 0.0
    %4023 = vmatpush2.msra.mxu0 0.0
    %4024 = vmatprep.subr.mxu0 0.0
    %4025 = vmatpush2.msra.mxu0 0.0
    %4026 = vmatprep.subr.mxu0 0.0
    %4027 = vmatpush2.msra.mxu0 0.0
    %4028 = vmatprep.subr.mxu0 0.0
    %4029 = vmatpush2.msra.mxu0 0.0
    %4030 = vmatprep.subr.mxu0 0.0
    %4031 = vmatpush2.msra.mxu0 0.0
    %4032 = vmatprep.subr.mxu0 0.0
    %4033 = vmatpush2.msra.mxu0 0.0
    %4034 = vmatprep.subr.mxu0 0.0
    %4035 = vmatpush2.msra.mxu0 0.0
    %4036 = vmatprep.mubr.f32.mxu0 0.0
    %4037 = vmatmul.mubr.f32.gmra.mxu0 %v3506
    %v4038 = vpop.f32.mrf.mxu0
    %v4039 = vadd.f32 0.0, %v4038
    %v4040 = vpop.f32.mrf.mxu0
    %4041 = vdwg.mxu0
    %4042 = vmatprep.subr.mxu0 0.0
    %4043 = vmatpush1.msra.mxu0 0.0
    %4044 = vmatprep.subr.mxu0 0.0
    %4045 = vmatpush1.msra.mxu0 0.0
    %4046 = vmatprep.subr.mxu0 0.0
    %4047 = vmatpush1.msra.mxu0 0.0
    %4048 = vmatprep.subr.mxu0 0.0
    %4049 = vmatpush1.msra.mxu0 0.0
    %4050 = vmatprep.subr.mxu0 0.0
    %4051 = vmatpush1.msra.mxu0 0.0
    %4052 = vmatprep.subr.mxu0 0.0
    %4053 = vmatpush1.msra.mxu0 0.0
    %4054 = vmatprep.subr.mxu0 0.0
    %4055 = vmatpush1.msra.mxu0 0.0
    %4056 = vmatprep.subr.mxu0 0.0
    %4057 = vmatpush1.msra.mxu0 0.0
    %4058 = vmatprep.subr.mxu0 0.0
    %4059 = vmatpush1.msra.mxu0 0.0
    %4060 = vmatprep.subr.mxu0 0.0
    %4061 = vmatpush1.msra.mxu0 0.0
    %4062 = vmatprep.subr.mxu0 0.0
    %4063 = vmatpush1.msra.mxu0 0.0
    %4064 = vmatprep.subr.mxu0 0.0
    %4065 = vmatpush1.msra.mxu0 0.0
    %4066 = vmatprep.subr.mxu0 0.0
    %4067 = vmatpush1.msra.mxu0 0.0
    %4068 = vmatprep.subr.mxu0 0.0
    %4069 = vmatpush1.msra.mxu0 0.0
    %4070 = vmatprep.subr.mxu0 0.0
    %4071 = vmatpush1.msra.mxu0 0.0
    %4072 = vmatprep.subr.mxu0 0.0
    %4073 = vmatpush1.msra.mxu0 %v3503
    %4074 = vmatprep.subr.mxu0 0.0
    %4075 = vmatpush2.msra.mxu0 0.0
    %4076 = vmatprep.subr.mxu0 0.0
    %4077 = vmatpush2.msra.mxu0 0.0
    %4078 = vmatprep.subr.mxu0 0.0
    %4079 = vmatpush2.msra.mxu0 0.0
    %4080 = vmatprep.subr.mxu0 0.0
    %4081 = vmatpush2.msra.mxu0 0.0
    %4082 = vmatprep.subr.mxu0 0.0
    %4083 = vmatpush2.msra.mxu0 0.0
    %4084 = vmatprep.subr.mxu0 0.0
    %4085 = vmatpush2.msra.mxu0 0.0
    %4086 = vmatprep.subr.mxu0 0.0
    %4087 = vmatpush2.msra.mxu0 0.0
    %4088 = vmatprep.subr.mxu0 0.0
    %4089 = vmatpush2.msra.mxu0 0.0
    %4090 = vmatprep.subr.mxu0 0.0
    %4091 = vmatpush2.msra.mxu0 0.0
    %4092 = vmatprep.subr.mxu0 0.0
    %4093 = vmatpush2.msra.mxu0 0.0
    %4094 = vmatprep.subr.mxu0 0.0
    %4095 = vmatpush2.msra.mxu0 0.0
    %4096 = vmatprep.subr.mxu0 0.0
    %4097 = vmatpush2.msra.mxu0 0.0
    %4098 = vmatprep.subr.mxu0 0.0
    %4099 = vmatpush2.msra.mxu0 0.0
    %4100 = vmatprep.subr.mxu0 0.0
    %4101 = vmatpush2.msra.mxu0 0.0
    %4102 = vmatprep.subr.mxu0 0.0
    %4103 = vmatpush2.msra.mxu0 0.0
    %4104 = vmatprep.subr.mxu0 0.0
    %4105 = vmatpush2.msra.mxu0 0.0
    %4106 = vmatprep.mubr.f32.mxu0 0.0
    %4107 = vmatmul.mubr.f32.gmra.mxu0 %v3583
    %v4108 = vpop.f32.mrf.mxu0
    %v4109 = vadd.f32 0.0, %v4108
    %v4110 = vpop.f32.mrf.mxu0
    %4111 = vdwg.mxu0
    %v4113 = vsel %vm2013, %v4109, 0
    %4115 = vmatprep.subr.mxu0 0.0
    %4116 = vmatpush1.msra.mxu0 0.0
    %4117 = vmatprep.subr.mxu0 0.0
    %4118 = vmatpush1.msra.mxu0 0.0
    %4119 = vmatprep.subr.mxu0 0.0
    %4120 = vmatpush1.msra.mxu0 0.0
    %4121 = vmatprep.subr.mxu0 0.0
    %4122 = vmatpush1.msra.mxu0 0.0
    %4123 = vmatprep.subr.mxu0 0.0
    %4124 = vmatpush1.msra.mxu0 0.0
    %4125 = vmatprep.subr.mxu0 0.0
    %4126 = vmatpush1.msra.mxu0 0.0
    %4127 = vmatprep.subr.mxu0 0.0
    %4128 = vmatpush1.msra.mxu0 0.0
    %4129 = vmatprep.subr.mxu0 0.0
    %4130 = vmatpush1.msra.mxu0 0.0
    %4131 = vmatprep.subr.mxu0 0.0
    %4132 = vmatpush1.msra.mxu0 0.0
    %4133 = vmatprep.subr.mxu0 0.0
    %4134 = vmatpush1.msra.mxu0 0.0
    %4135 = vmatprep.subr.mxu0 0.0
    %4136 = vmatpush1.msra.mxu0 0.0
    %4137 = vmatprep.subr.mxu0 0.0
    %4138 = vmatpush1.msra.mxu0 0.0
    %4139 = vmatprep.subr.mxu0 0.0
    %4140 = vmatpush1.msra.mxu0 0.0
    %4141 = vmatprep.subr.mxu0 0.0
    %4142 = vmatpush1.msra.mxu0 0.0
    %4143 = vmatprep.subr.mxu0 0.0
    %4144 = vmatpush1.msra.mxu0 %v3657
    %4145 = vmatprep.subr.mxu0 0.0
    %4146 = vmatpush1.msra.mxu0 %v3656
    %4147 = vmatprep.subr.mxu0 0.0
    %4148 = vmatpush2.msra.mxu0 0.0
    %4149 = vmatprep.subr.mxu0 0.0
    %4150 = vmatpush2.msra.mxu0 0.0
    %4151 = vmatprep.subr.mxu0 0.0
    %4152 = vmatpush2.msra.mxu0 0.0
    %4153 = vmatprep.subr.mxu0 0.0
    %4154 = vmatpush2.msra.mxu0 0.0
    %4155 = vmatprep.subr.mxu0 0.0
    %4156 = vmatpush2.msra.mxu0 0.0
    %4157 = vmatprep.subr.mxu0 0.0
    %4158 = vmatpush2.msra.mxu0 0.0
    %4159 = vmatprep.subr.mxu0 0.0
    %4160 = vmatpush2.msra.mxu0 0.0
    %4161 = vmatprep.subr.mxu0 0.0
    %4162 = vmatpush2.msra.mxu0 0.0
    %4163 = vmatprep.subr.mxu0 0.0
    %4164 = vmatpush2.msra.mxu0 0.0
    %4165 = vmatprep.subr.mxu0 0.0
    %4166 = vmatpush2.msra.mxu0 0.0
    %4167 = vmatprep.subr.mxu0 0.0
    %4168 = vmatpush2.msra.mxu0 0.0
    %4169 = vmatprep.subr.mxu0 0.0
    %4170 = vmatpush2.msra.mxu0 0.0
    %4171 = vmatprep.subr.mxu0 0.0
    %4172 = vmatpush2.msra.mxu0 0.0
    %4173 = vmatprep.subr.mxu0 0.0
    %4174 = vmatpush2.msra.mxu0 0.0
    %4175 = vmatprep.subr.mxu0 0.0
    %4176 = vmatpush2.msra.mxu0 0.0
    %4177 = vmatprep.subr.mxu0 0.0
    %4178 = vmatpush2.msra.mxu0 0.0
    %4179 = vmatprep.mubr.f32.mxu0 0.0
    %4180 = vmatmul.mubr.f32.gmra.mxu0 %v4113
    %v4181 = vpop.f32.mrf.mxu0
    %v4182 = vadd.f32 0.0, %v4181
    %v4183 = vpop.f32.mrf.mxu0
    %4184 = vdwg.mxu0
    %v4186 = vsel %vm2013, %v4039, 0
    %4188 = vmatprep.subr.mxu0 0.0
    %4189 = vmatpush1.msra.mxu0 0.0
    %4190 = vmatprep.subr.mxu0 0.0
    %4191 = vmatpush1.msra.mxu0 0.0
    %4192 = vmatprep.subr.mxu0 0.0
    %4193 = vmatpush1.msra.mxu0 0.0
    %4194 = vmatprep.subr.mxu0 0.0
    %4195 = vmatpush1.msra.mxu0 0.0
    %4196 = vmatprep.subr.mxu0 0.0
    %4197 = vmatpush1.msra.mxu0 0.0
    %4198 = vmatprep.subr.mxu0 0.0
    %4199 = vmatpush1.msra.mxu0 0.0
    %4200 = vmatprep.subr.mxu0 0.0
    %4201 = vmatpush1.msra.mxu0 0.0
    %4202 = vmatprep.subr.mxu0 0.0
    %4203 = vmatpush1.msra.mxu0 0.0
    %4204 = vmatprep.subr.mxu0 0.0
    %4205 = vmatpush1.msra.mxu0 0.0
    %4206 = vmatprep.subr.mxu0 0.0
    %4207 = vmatpush1.msra.mxu0 0.0
    %4208 = vmatprep.subr.mxu0 0.0
    %4209 = vmatpush1.msra.mxu0 0.0
    %4210 = vmatprep.subr.mxu0 0.0
    %4211 = vmatpush1.msra.mxu0 0.0
    %4212 = vmatprep.subr.mxu0 0.0
    %4213 = vmatpush1.msra.mxu0 0.0
    %4214 = vmatprep.subr.mxu0 0.0
    %4215 = vmatpush1.msra.mxu0 0.0
    %4216 = vmatprep.subr.mxu0 0.0
    %4217 = vmatpush1.msra.mxu0 %v3579
    %4218 = vmatprep.subr.mxu0 0.0
    %4219 = vmatpush1.msra.mxu0 %v3578
    %4220 = vmatprep.subr.mxu0 0.0
    %4221 = vmatpush2.msra.mxu0 0.0
    %4222 = vmatprep.subr.mxu0 0.0
    %4223 = vmatpush2.msra.mxu0 0.0
    %4224 = vmatprep.subr.mxu0 0.0
    %4225 = vmatpush2.msra.mxu0 0.0
    %4226 = vmatprep.subr.mxu0 0.0
    %4227 = vmatpush2.msra.mxu0 0.0
    %4228 = vmatprep.subr.mxu0 0.0
    %4229 = vmatpush2.msra.mxu0 0.0
    %4230 = vmatprep.subr.mxu0 0.0
    %4231 = vmatpush2.msra.mxu0 0.0
    %4232 = vmatprep.subr.mxu0 0.0
    %4233 = vmatpush2.msra.mxu0 0.0
    %4234 = vmatprep.subr.mxu0 0.0
    %4235 = vmatpush2.msra.mxu0 0.0
    %4236 = vmatprep.subr.mxu0 0.0
    %4237 = vmatpush2.msra.mxu0 0.0
    %4238 = vmatprep.subr.mxu0 0.0
    %4239 = vmatpush2.msra.mxu0 0.0
    %4240 = vmatprep.subr.mxu0 0.0
    %4241 = vmatpush2.msra.mxu0 0.0
    %4242 = vmatprep.subr.mxu0 0.0
    %4243 = vmatpush2.msra.mxu0 0.0
    %4244 = vmatprep.subr.mxu0 0.0
    %4245 = vmatpush2.msra.mxu0 0.0
    %4246 = vmatprep.subr.mxu0 0.0
    %4247 = vmatpush2.msra.mxu0 0.0
    %4248 = vmatprep.subr.mxu0 0.0
    %4249 = vmatpush2.msra.mxu0 0.0
    %4250 = vmatprep.subr.mxu0 0.0
    %4251 = vmatpush2.msra.mxu0 0.0
    %4252 = vmatprep.mubr.f32.mxu0 0.0
    %4253 = vmatmul.mubr.f32.gmra.mxu0 %v4186
    %v4254 = vpop.f32.mrf.mxu0
    %v4255 = vadd.f32 %v4182, %v4254
    %v4256 = vpop.f32.mrf.mxu0
    %4257 = vdwg.mxu0
    %4258 = vmatprep.subr.mxu0 0.0
    %4259 = vmatpush1.msra.mxu0 0.0
    %4260 = vmatprep.subr.mxu0 0.0
    %4261 = vmatpush1.msra.mxu0 0.0
    %4262 = vmatprep.subr.mxu0 0.0
    %4263 = vmatpush1.msra.mxu0 0.0
    %4264 = vmatprep.subr.mxu0 0.0
    %4265 = vmatpush1.msra.mxu0 0.0
    %4266 = vmatprep.subr.mxu0 0.0
    %4267 = vmatpush1.msra.mxu0 0.0
    %4268 = vmatprep.subr.mxu0 0.0
    %4269 = vmatpush1.msra.mxu0 0.0
    %4270 = vmatprep.subr.mxu0 0.0
    %4271 = vmatpush1.msra.mxu0 0.0
    %4272 = vmatprep.subr.mxu0 0.0
    %4273 = vmatpush1.msra.mxu0 0.0
    %4274 = vmatprep.subr.mxu0 0.0
    %4275 = vmatpush1.msra.mxu0 0.0
    %4276 = vmatprep.subr.mxu0 0.0
    %4277 = vmatpush1.msra.mxu0 0.0
    %4278 = vmatprep.subr.mxu0 0.0
    %4279 = vmatpush1.msra.mxu0 0.0
    %4280 = vmatprep.subr.mxu0 0.0
    %4281 = vmatpush1.msra.mxu0 0.0
    %4282 = vmatprep.subr.mxu0 0.0
    %4283 = vmatpush1.msra.mxu0 0.0
    %4284 = vmatprep.subr.mxu0 0.0
    %4285 = vmatpush1.msra.mxu0 0.0
    %4286 = vmatprep.subr.mxu0 0.0
    %4287 = vmatpush1.msra.mxu0 0.0
    %4288 = vmatprep.subr.mxu0 0.0
    %4289 = vmatpush1.msra.mxu0 %v3503
    %4290 = vmatprep.subr.mxu0 0.0
    %4291 = vmatpush2.msra.mxu0 0.0
    %4292 = vmatprep.subr.mxu0 0.0
    %4293 = vmatpush2.msra.mxu0 0.0
    %4294 = vmatprep.subr.mxu0 0.0
    %4295 = vmatpush2.msra.mxu0 0.0
    %4296 = vmatprep.subr.mxu0 0.0
    %4297 = vmatpush2.msra.mxu0 0.0
    %4298 = vmatprep.subr.mxu0 0.0
    %4299 = vmatpush2.msra.mxu0 0.0
    %4300 = vmatprep.subr.mxu0 0.0
    %4301 = vmatpush2.msra.mxu0 0.0
    %4302 = vmatprep.subr.mxu0 0.0
    %4303 = vmatpush2.msra.mxu0 0.0
    %4304 = vmatprep.subr.mxu0 0.0
    %4305 = vmatpush2.msra.mxu0 0.0
    %4306 = vmatprep.subr.mxu0 0.0
    %4307 = vmatpush2.msra.mxu0 0.0
    %4308 = vmatprep.subr.mxu0 0.0
    %4309 = vmatpush2.msra.mxu0 0.0
    %4310 = vmatprep.subr.mxu0 0.0
    %4311 = vmatpush2.msra.mxu0 0.0
    %4312 = vmatprep.subr.mxu0 0.0
    %4313 = vmatpush2.msra.mxu0 0.0
    %4314 = vmatprep.subr.mxu0 0.0
    %4315 = vmatpush2.msra.mxu0 0.0
    %4316 = vmatprep.subr.mxu0 0.0
    %4317 = vmatpush2.msra.mxu0 0.0
    %4318 = vmatprep.subr.mxu0 0.0
    %4319 = vmatpush2.msra.mxu0 0.0
    %4320 = vmatprep.subr.mxu0 0.0
    %4321 = vmatpush2.msra.mxu0 0.0
    %4322 = vmatprep.mubr.f32.mxu0 0.0
    %4323 = vmatmul.mubr.f32.gmra.mxu0 %v3807
    %v4324 = vpop.f32.mrf.mxu0
    %v4325 = vadd.f32 0.0, %v4324
    %v4326 = vpop.f32.mrf.mxu0
    %4327 = vdwg.mxu0
    %v4329 = vsel %vm2013, %v4325, 0
    %4331 = vmatprep.subr.mxu0 0.0
    %4332 = vmatpush1.msra.mxu0 0.0
    %4333 = vmatprep.subr.mxu0 0.0
    %4334 = vmatpush1.msra.mxu0 0.0
    %4335 = vmatprep.subr.mxu0 0.0
    %4336 = vmatpush1.msra.mxu0 0.0
    %4337 = vmatprep.subr.mxu0 0.0
    %4338 = vmatpush1.msra.mxu0 0.0
    %4339 = vmatprep.subr.mxu0 0.0
    %4340 = vmatpush1.msra.mxu0 0.0
    %4341 = vmatprep.subr.mxu0 0.0
    %4342 = vmatpush1.msra.mxu0 0.0
    %4343 = vmatprep.subr.mxu0 0.0
    %4344 = vmatpush1.msra.mxu0 0.0
    %4345 = vmatprep.subr.mxu0 0.0
    %4346 = vmatpush1.msra.mxu0 0.0
    %4347 = vmatprep.subr.mxu0 0.0
    %4348 = vmatpush1.msra.mxu0 0.0
    %4349 = vmatprep.subr.mxu0 0.0
    %4350 = vmatpush1.msra.mxu0 0.0
    %4351 = vmatprep.subr.mxu0 0.0
    %4352 = vmatpush1.msra.mxu0 0.0
    %4353 = vmatprep.subr.mxu0 0.0
    %4354 = vmatpush1.msra.mxu0 0.0
    %4355 = vmatprep.subr.mxu0 0.0
    %4356 = vmatpush1.msra.mxu0 0.0
    %4357 = vmatprep.subr.mxu0 0.0
    %4358 = vmatpush1.msra.mxu0 0.0
    %4359 = vmatprep.subr.mxu0 0.0
    %4360 = vmatpush1.msra.mxu0 %v3881
    %4361 = vmatprep.subr.mxu0 0.0
    %4362 = vmatpush1.msra.mxu0 %v3880
    %4363 = vmatprep.subr.mxu0 0.0
    %4364 = vmatpush2.msra.mxu0 0.0
    %4365 = vmatprep.subr.mxu0 0.0
    %4366 = vmatpush2.msra.mxu0 0.0
    %4367 = vmatprep.subr.mxu0 0.0
    %4368 = vmatpush2.msra.mxu0 0.0
    %4369 = vmatprep.subr.mxu0 0.0
    %4370 = vmatpush2.msra.mxu0 0.0
    %4371 = vmatprep.subr.mxu0 0.0
    %4372 = vmatpush2.msra.mxu0 0.0
    %4373 = vmatprep.subr.mxu0 0.0
    %4374 = vmatpush2.msra.mxu0 0.0
    %4375 = vmatprep.subr.mxu0 0.0
    %4376 = vmatpush2.msra.mxu0 0.0
    %4377 = vmatprep.subr.mxu0 0.0
    %4378 = vmatpush2.msra.mxu0 0.0
    %4379 = vmatprep.subr.mxu0 0.0
    %4380 = vmatpush2.msra.mxu0 0.0
    %4381 = vmatprep.subr.mxu0 0.0
    %4382 = vmatpush2.msra.mxu0 0.0
    %4383 = vmatprep.subr.mxu0 0.0
    %4384 = vmatpush2.msra.mxu0 0.0
    %4385 = vmatprep.subr.mxu0 0.0
    %4386 = vmatpush2.msra.mxu0 0.0
    %4387 = vmatprep.subr.mxu0 0.0
    %4388 = vmatpush2.msra.mxu0 0.0
    %4389 = vmatprep.subr.mxu0 0.0
    %4390 = vmatpush2.msra.mxu0 0.0
    %4391 = vmatprep.subr.mxu0 0.0
    %4392 = vmatpush2.msra.mxu0 0.0
    %4393 = vmatprep.subr.mxu0 0.0
    %4394 = vmatpush2.msra.mxu0 0.0
    %4395 = vmatprep.mubr.f32.mxu0 0.0
    %4396 = vmatmul.mubr.f32.gmra.mxu0 %v4329
    %v4397 = vpop.f32.mrf.mxu0
    %v4398 = vadd.f32 0.0, %v4397
    %v4399 = vpop.f32.mrf.mxu0
    %4400 = vdwg.mxu0
    %v4401 = vadd.f32 %v4255, %v4398
    %v4402 = vsel %vm3956, %v4401, 0.0
    %v4403 = vrot.slane %v4402, 4
    %v4404 = vadd.f32 %v4402, %v4403
    %v4405 = vrot.slane %v4404, 2
    %v4406 = vadd.f32 %v4404, %v4405
    %v4407 = vrot.slane %v4406, 1
    %v4408 = vadd.f32 %v4406, %v4407
    %v4409 = vmul.f32 %v4401, %v4401
    %v4410 = vsel %vm3956, %v4409, 0.0
    %v4411 = vrot.slane %v4410, 4
    %v4412 = vadd.f32 %v4410, %v4411
    %v4413 = vrot.slane %v4412, 2
    %v4414 = vadd.f32 %v4412, %v4413
    %v4415 = vrot.slane %v4414, 1
    %v4416 = vadd.f32 %v4414, %v4415
    %v4417 = vadd.f32 %v3963, %v4408
    %v4418 = vadd.f32 %v3971, %v4416
    %v4419 = vmul.f32 %v4417, 0.125
    %v4420 = vmul.f32 %v4418, 0.125
    %v4421 = vmul.f32 %v4419, %v4419
    %v4422 = vsub.f32 %v4420, %v4421
    %v4423 = vld [vmem:[#allocation19] sm:$0x1]
    %v4424 = vadd.f32 %v4422, 1e-05
    %v4425 = vrsqrt.pop %v4424
    %v4426 = vmul.f32 %v4423, %v4425
    %v4427 = vld [vmem:[%s16] sm:$0x1]
    %v4428 = vmul.f32 %v4419, %v4426
    %v4429 = vsub.f32 %v4427, %v4428
    %v4431 = vlaneseq
    %v4432 = vshrl.u32 %v4431, 7
    %v4433 = vsub.s32 0, %v4432
    %v4434 = vrot.slane %v4426, %v4433
    %v4436 = vmul.f32 %v3955, %v4434
    %v4438 = vlaneseq
    %v4439 = vshrl.u32 %v4438, 7
    %v4440 = vsub.s32 0, %v4439
    %v4441 = vrot.slane %v4429, %v4440
    %v4443 = vadd.f32 %v4436, %v4441
    %v4444 = vmax.f32 %v4443, 0.0
    %v4445 = vmul.f32 %v4401, %v4434
    %v4446 = vadd.f32 %v4445, %v4441
    %v4447 = vmax.f32 %v4446, 0.0
    %v4448 = vld [vmem:[%s19] sm:$0x1]
    %v4449 = vld [vmem:[%s17] sm:$0x3]
    %v4451 = vsel %vm441, %v4449, 0
    %v4454 = vsel %vm454, %v4444, 0
    %4456 = vmatprep.subr.mxu0 0.0
    %4457 = vmatpush1.msra.mxu0 0.0
    %4458 = vmatprep.subr.mxu0 0.0
    %4459 = vmatpush1.msra.mxu0 0.0
    %4460 = vmatprep.subr.mxu0 0.0
    %4461 = vmatpush1.msra.mxu0 0.0
    %4462 = vmatprep.subr.mxu0 0.0
    %4463 = vmatpush1.msra.mxu0 0.0
    %4464 = vmatprep.subr.mxu0 0.0
    %4465 = vmatpush1.msra.mxu0 0.0
    %4466 = vmatprep.subr.mxu0 0.0
    %4467 = vmatpush1.msra.mxu0 0.0
    %4468 = vmatprep.subr.mxu0 0.0
    %4469 = vmatpush1.msra.mxu0 0.0
    %4470 = vmatprep.subr.mxu0 0.0
    %4471 = vmatpush1.msra.mxu0 0.0
    %4472 = vmatprep.subr.mxu0 0.0
    %4473 = vmatpush1.msra.mxu0 0.0
    %4474 = vmatprep.subr.mxu0 0.0
    %4475 = vmatpush1.msra.mxu0 0.0
    %4476 = vmatprep.subr.mxu0 0.0
    %4477 = vmatpush1.msra.mxu0 0.0
    %4478 = vmatprep.subr.mxu0 0.0
    %4479 = vmatpush1.msra.mxu0 0.0
    %4480 = vmatprep.subr.mxu0 0.0
    %4481 = vmatpush1.msra.mxu0 0.0
    %4482 = vmatprep.subr.mxu0 0.0
    %4483 = vmatpush1.msra.mxu0 0.0
    %4484 = vmatprep.subr.mxu0 0.0
    %4485 = vmatpush1.msra.mxu0 0.0
    %4486 = vmatprep.subr.mxu0 0.0
    %4487 = vmatpush1.msra.mxu0 %v4454
    %4488 = vmatprep.subr.mxu0 0.0
    %4489 = vmatpush2.msra.mxu0 0.0
    %4490 = vmatprep.subr.mxu0 0.0
    %4491 = vmatpush2.msra.mxu0 0.0
    %4492 = vmatprep.subr.mxu0 0.0
    %4493 = vmatpush2.msra.mxu0 0.0
    %4494 = vmatprep.subr.mxu0 0.0
    %4495 = vmatpush2.msra.mxu0 0.0
    %4496 = vmatprep.subr.mxu0 0.0
    %4497 = vmatpush2.msra.mxu0 0.0
    %4498 = vmatprep.subr.mxu0 0.0
    %4499 = vmatpush2.msra.mxu0 0.0
    %4500 = vmatprep.subr.mxu0 0.0
    %4501 = vmatpush2.msra.mxu0 0.0
    %4502 = vmatprep.subr.mxu0 0.0
    %4503 = vmatpush2.msra.mxu0 0.0
    %4504 = vmatprep.subr.mxu0 0.0
    %4505 = vmatpush2.msra.mxu0 0.0
    %4506 = vmatprep.subr.mxu0 0.0
    %4507 = vmatpush2.msra.mxu0 0.0
    %4508 = vmatprep.subr.mxu0 0.0
    %4509 = vmatpush2.msra.mxu0 0.0
    %4510 = vmatprep.subr.mxu0 0.0
    %4511 = vmatpush2.msra.mxu0 0.0
    %4512 = vmatprep.subr.mxu0 0.0
    %4513 = vmatpush2.msra.mxu0 0.0
    %4514 = vmatprep.subr.mxu0 0.0
    %4515 = vmatpush2.msra.mxu0 0.0
    %4516 = vmatprep.subr.mxu0 0.0
    %4517 = vmatpush2.msra.mxu0 0.0
    %4518 = vmatprep.subr.mxu0 0.0
    %4519 = vmatpush2.msra.mxu0 0.0
    %4520 = vmatprep.mubr.f32.mxu0 0.0
    %4521 = vmatmul.mubr.f32.gmra.mxu0 %v4451
    %v4522 = vpop.f32.mrf.mxu0
    %v4523 = vadd.f32 0.0, %v4522
    %v4524 = vpop.f32.mrf.mxu0
    %4525 = vdwg.mxu0
    %v4526 = vld [vmem:[#allocation20] sm:$0xff]
    %v4527 = vld [vmem:[#allocation20 + $0x8] sm:$0xff]
    %v4528 = vld [vmem:[#allocation20 + $0x10] sm:$0xff]
    %v4529 = vld [vmem:[#allocation20 + $0x18] sm:$0xff]
    %s4530 = scalar_lea.vmem %s17, 2
    %v4531 = vld [vmem:[%s4530] sm:$0x3]
    %v4533 = vsel %vm441, %v4531, 0
    %4535 = vmatprep.subr.mxu0 0.0
    %4536 = vmatpush1.msra.mxu0 0.0
    %4537 = vmatprep.subr.mxu0 0.0
    %4538 = vmatpush1.msra.mxu0 0.0
    %4539 = vmatprep.subr.mxu0 0.0
    %4540 = vmatpush1.msra.mxu0 0.0
    %4541 = vmatprep.subr.mxu0 0.0
    %4542 = vmatpush1.msra.mxu0 0.0
    %4543 = vmatprep.subr.mxu0 0.0
    %4544 = vmatpush1.msra.mxu0 0.0
    %4545 = vmatprep.subr.mxu0 0.0
    %4546 = vmatpush1.msra.mxu0 0.0
    %4547 = vmatprep.subr.mxu0 0.0
    %4548 = vmatpush1.msra.mxu0 0.0
    %4549 = vmatprep.subr.mxu0 0.0
    %4550 = vmatpush1.msra.mxu0 0.0
    %4551 = vmatprep.subr.mxu0 0.0
    %4552 = vmatpush1.msra.mxu0 0.0
    %4553 = vmatprep.subr.mxu0 0.0
    %4554 = vmatpush1.msra.mxu0 0.0
    %4555 = vmatprep.subr.mxu0 0.0
    %4556 = vmatpush1.msra.mxu0 0.0
    %4557 = vmatprep.subr.mxu0 0.0
    %4558 = vmatpush1.msra.mxu0 0.0
    %4559 = vmatprep.subr.mxu0 0.0
    %4560 = vmatpush1.msra.mxu0 0.0
    %4561 = vmatprep.subr.mxu0 0.0
    %4562 = vmatpush1.msra.mxu0 0.0
    %4563 = vmatprep.subr.mxu0 0.0
    %4564 = vmatpush1.msra.mxu0 0.0
    %4565 = vmatprep.subr.mxu0 0.0
    %4566 = vmatpush1.msra.mxu0 %v4454
    %4567 = vmatprep.subr.mxu0 0.0
    %4568 = vmatpush2.msra.mxu0 0.0
    %4569 = vmatprep.subr.mxu0 0.0
    %4570 = vmatpush2.msra.mxu0 0.0
    %4571 = vmatprep.subr.mxu0 0.0
    %4572 = vmatpush2.msra.mxu0 0.0
    %4573 = vmatprep.subr.mxu0 0.0
    %4574 = vmatpush2.msra.mxu0 0.0
    %4575 = vmatprep.subr.mxu0 0.0
    %4576 = vmatpush2.msra.mxu0 0.0
    %4577 = vmatprep.subr.mxu0 0.0
    %4578 = vmatpush2.msra.mxu0 0.0
    %4579 = vmatprep.subr.mxu0 0.0
    %4580 = vmatpush2.msra.mxu0 0.0
    %4581 = vmatprep.subr.mxu0 0.0
    %4582 = vmatpush2.msra.mxu0 0.0
    %4583 = vmatprep.subr.mxu0 0.0
    %4584 = vmatpush2.msra.mxu0 0.0
    %4585 = vmatprep.subr.mxu0 0.0
    %4586 = vmatpush2.msra.mxu0 0.0
    %4587 = vmatprep.subr.mxu0 0.0
    %4588 = vmatpush2.msra.mxu0 0.0
    %4589 = vmatprep.subr.mxu0 0.0
    %4590 = vmatpush2.msra.mxu0 0.0
    %4591 = vmatprep.subr.mxu0 0.0
    %4592 = vmatpush2.msra.mxu0 0.0
    %4593 = vmatprep.subr.mxu0 0.0
    %4594 = vmatpush2.msra.mxu0 0.0
    %4595 = vmatprep.subr.mxu0 0.0
    %4596 = vmatpush2.msra.mxu0 0.0
    %4597 = vmatprep.subr.mxu0 0.0
    %4598 = vmatpush2.msra.mxu0 0.0
    %4599 = vmatprep.mubr.f32.mxu0 0.0
    %4600 = vmatmul.mubr.f32.gmra.mxu0 %v4533
    %v4601 = vpop.f32.mrf.mxu0
    %v4602 = vadd.f32 0.0, %v4601
    %v4603 = vpop.f32.mrf.mxu0
    %4604 = vdwg.mxu0
    %s4605 = scalar_lea.vmem [#allocation20], 32
    %v4606 = vld [vmem:[%s4605] sm:$0xff]
    %v4607 = vld [vmem:[%s4605 + $0x8] sm:$0xff]
    %v4608 = vld [vmem:[%s4605 + $0x10] sm:$0xff]
    %v4609 = vld [vmem:[%s4605 + $0x18] sm:$0xff]
    %v4611 = vsel %vm1513, %v4602, 0
    %4613 = vmatprep.subr.mxu0 0.0
    %4614 = vmatpush1.msra.mxu0 0.0
    %4615 = vmatprep.subr.mxu0 0.0
    %4616 = vmatpush1.msra.mxu0 0.0
    %4617 = vmatprep.subr.mxu0 0.0
    %4618 = vmatpush1.msra.mxu0 0.0
    %4619 = vmatprep.subr.mxu0 0.0
    %4620 = vmatpush1.msra.mxu0 0.0
    %4621 = vmatprep.subr.mxu0 0.0
    %4622 = vmatpush1.msra.mxu0 0.0
    %4623 = vmatprep.subr.mxu0 0.0
    %4624 = vmatpush1.msra.mxu0 0.0
    %4625 = vmatprep.subr.mxu0 0.0
    %4626 = vmatpush1.msra.mxu0 0.0
    %4627 = vmatprep.subr.mxu0 0.0
    %4628 = vmatpush1.msra.mxu0 0.0
    %4629 = vmatprep.subr.mxu0 0.0
    %4630 = vmatpush1.msra.mxu0 0.0
    %4631 = vmatprep.subr.mxu0 0.0
    %4632 = vmatpush1.msra.mxu0 0.0
    %4633 = vmatprep.subr.mxu0 0.0
    %4634 = vmatpush1.msra.mxu0 0.0
    %4635 = vmatprep.subr.mxu0 0.0
    %4636 = vmatpush1.msra.mxu0 0.0
    %4637 = vmatprep.subr.mxu0 0.0
    %4638 = vmatpush1.msra.mxu0 %v4609
    %4639 = vmatprep.subr.mxu0 0.0
    %4640 = vmatpush1.msra.mxu0 %v4608
    %4641 = vmatprep.subr.mxu0 0.0
    %4642 = vmatpush1.msra.mxu0 %v4607
    %4643 = vmatprep.subr.mxu0 0.0
    %4644 = vmatpush1.msra.mxu0 %v4606
    %4645 = vmatprep.subr.mxu0 0.0
    %4646 = vmatpush2.msra.mxu0 0.0
    %4647 = vmatprep.subr.mxu0 0.0
    %4648 = vmatpush2.msra.mxu0 0.0
    %4649 = vmatprep.subr.mxu0 0.0
    %4650 = vmatpush2.msra.mxu0 0.0
    %4651 = vmatprep.subr.mxu0 0.0
    %4652 = vmatpush2.msra.mxu0 0.0
    %4653 = vmatprep.subr.mxu0 0.0
    %4654 = vmatpush2.msra.mxu0 0.0
    %4655 = vmatprep.subr.mxu0 0.0
    %4656 = vmatpush2.msra.mxu0 0.0
    %4657 = vmatprep.subr.mxu0 0.0
    %4658 = vmatpush2.msra.mxu0 0.0
    %4659 = vmatprep.subr.mxu0 0.0
    %4660 = vmatpush2.msra.mxu0 0.0
    %4661 = vmatprep.subr.mxu0 0.0
    %4662 = vmatpush2.msra.mxu0 0.0
    %4663 = vmatprep.subr.mxu0 0.0
    %4664 = vmatpush2.msra.mxu0 0.0
    %4665 = vmatprep.subr.mxu0 0.0
    %4666 = vmatpush2.msra.mxu0 0.0
    %4667 = vmatprep.subr.mxu0 0.0
    %4668 = vmatpush2.msra.mxu0 0.0
    %4669 = vmatprep.subr.mxu0 0.0
    %4670 = vmatpush2.msra.mxu0 0.0
    %4671 = vmatprep.subr.mxu0 0.0
    %4672 = vmatpush2.msra.mxu0 0.0
    %4673 = vmatprep.subr.mxu0 0.0
    %4674 = vmatpush2.msra.mxu0 0.0
    %4675 = vmatprep.subr.mxu0 0.0
    %4676 = vmatpush2.msra.mxu0 0.0
    %4677 = vmatprep.mubr.f32.mxu0 0.0
    %4678 = vmatmul.mubr.f32.gmra.mxu0 %v4611
    %v4679 = vpop.f32.mrf.mxu0
    %v4680 = vadd.f32 0.0, %v4679
    %v4681 = vpop.f32.mrf.mxu0
    %4682 = vdwg.mxu0
    %v4684 = vsel %vm1513, %v4523, 0
    %4686 = vmatprep.subr.mxu0 0.0
    %4687 = vmatpush1.msra.mxu0 0.0
    %4688 = vmatprep.subr.mxu0 0.0
    %4689 = vmatpush1.msra.mxu0 0.0
    %4690 = vmatprep.subr.mxu0 0.0
    %4691 = vmatpush1.msra.mxu0 0.0
    %4692 = vmatprep.subr.mxu0 0.0
    %4693 = vmatpush1.msra.mxu0 0.0
    %4694 = vmatprep.subr.mxu0 0.0
    %4695 = vmatpush1.msra.mxu0 0.0
    %4696 = vmatprep.subr.mxu0 0.0
    %4697 = vmatpush1.msra.mxu0 0.0
    %4698 = vmatprep.subr.mxu0 0.0
    %4699 = vmatpush1.msra.mxu0 0.0
    %4700 = vmatprep.subr.mxu0 0.0
    %4701 = vmatpush1.msra.mxu0 0.0
    %4702 = vmatprep.subr.mxu0 0.0
    %4703 = vmatpush1.msra.mxu0 0.0
    %4704 = vmatprep.subr.mxu0 0.0
    %4705 = vmatpush1.msra.mxu0 0.0
    %4706 = vmatprep.subr.mxu0 0.0
    %4707 = vmatpush1.msra.mxu0 0.0
    %4708 = vmatprep.subr.mxu0 0.0
    %4709 = vmatpush1.msra.mxu0 0.0
    %4710 = vmatprep.subr.mxu0 0.0
    %4711 = vmatpush1.msra.mxu0 %v4529
    %4712 = vmatprep.subr.mxu0 0.0
    %4713 = vmatpush1.msra.mxu0 %v4528
    %4714 = vmatprep.subr.mxu0 0.0
    %4715 = vmatpush1.msra.mxu0 %v4527
    %4716 = vmatprep.subr.mxu0 0.0
    %4717 = vmatpush1.msra.mxu0 %v4526
    %4718 = vmatprep.subr.mxu0 0.0
    %4719 = vmatpush2.msra.mxu0 0.0
    %4720 = vmatprep.subr.mxu0 0.0
    %4721 = vmatpush2.msra.mxu0 0.0
    %4722 = vmatprep.subr.mxu0 0.0
    %4723 = vmatpush2.msra.mxu0 0.0
    %4724 = vmatprep.subr.mxu0 0.0
    %4725 = vmatpush2.msra.mxu0 0.0
    %4726 = vmatprep.subr.mxu0 0.0
    %4727 = vmatpush2.msra.mxu0 0.0
    %4728 = vmatprep.subr.mxu0 0.0
    %4729 = vmatpush2.msra.mxu0 0.0
    %4730 = vmatprep.subr.mxu0 0.0
    %4731 = vmatpush2.msra.mxu0 0.0
    %4732 = vmatprep.subr.mxu0 0.0
    %4733 = vmatpush2.msra.mxu0 0.0
    %4734 = vmatprep.subr.mxu0 0.0
    %4735 = vmatpush2.msra.mxu0 0.0
    %4736 = vmatprep.subr.mxu0 0.0
    %4737 = vmatpush2.msra.mxu0 0.0
    %4738 = vmatprep.subr.mxu0 0.0
    %4739 = vmatpush2.msra.mxu0 0.0
    %4740 = vmatprep.subr.mxu0 0.0
    %4741 = vmatpush2.msra.mxu0 0.0
    %4742 = vmatprep.subr.mxu0 0.0
    %4743 = vmatpush2.msra.mxu0 0.0
    %4744 = vmatprep.subr.mxu0 0.0
    %4745 = vmatpush2.msra.mxu0 0.0
    %4746 = vmatprep.subr.mxu0 0.0
    %4747 = vmatpush2.msra.mxu0 0.0
    %4748 = vmatprep.subr.mxu0 0.0
    %4749 = vmatpush2.msra.mxu0 0.0
    %4750 = vmatprep.mubr.f32.mxu0 0.0
    %4751 = vmatmul.mubr.f32.gmra.mxu0 %v4684
    %v4752 = vpop.f32.mrf.mxu0
    %v4753 = vadd.f32 %v4680, %v4752
    %v4754 = vpop.f32.mrf.mxu0
    %4755 = vdwg.mxu0
    %s4756 = scalar_lea.vmem %s17, 4
    %v4757 = vld [vmem:[%s4756] sm:$0x3]
    %v4759 = vsel %vm441, %v4757, 0
    %4761 = vmatprep.subr.mxu0 0.0
    %4762 = vmatpush1.msra.mxu0 0.0
    %4763 = vmatprep.subr.mxu0 0.0
    %4764 = vmatpush1.msra.mxu0 0.0
    %4765 = vmatprep.subr.mxu0 0.0
    %4766 = vmatpush1.msra.mxu0 0.0
    %4767 = vmatprep.subr.mxu0 0.0
    %4768 = vmatpush1.msra.mxu0 0.0
    %4769 = vmatprep.subr.mxu0 0.0
    %4770 = vmatpush1.msra.mxu0 0.0
    %4771 = vmatprep.subr.mxu0 0.0
    %4772 = vmatpush1.msra.mxu0 0.0
    %4773 = vmatprep.subr.mxu0 0.0
    %4774 = vmatpush1.msra.mxu0 0.0
    %4775 = vmatprep.subr.mxu0 0.0
    %4776 = vmatpush1.msra.mxu0 0.0
    %4777 = vmatprep.subr.mxu0 0.0
    %4778 = vmatpush1.msra.mxu0 0.0
    %4779 = vmatprep.subr.mxu0 0.0
    %4780 = vmatpush1.msra.mxu0 0.0
    %4781 = vmatprep.subr.mxu0 0.0
    %4782 = vmatpush1.msra.mxu0 0.0
    %4783 = vmatprep.subr.mxu0 0.0
    %4784 = vmatpush1.msra.mxu0 0.0
    %4785 = vmatprep.subr.mxu0 0.0
    %4786 = vmatpush1.msra.mxu0 0.0
    %4787 = vmatprep.subr.mxu0 0.0
    %4788 = vmatpush1.msra.mxu0 0.0
    %4789 = vmatprep.subr.mxu0 0.0
    %4790 = vmatpush1.msra.mxu0 0.0
    %4791 = vmatprep.subr.mxu0 0.0
    %4792 = vmatpush1.msra.mxu0 %v4454
    %4793 = vmatprep.subr.mxu0 0.0
    %4794 = vmatpush2.msra.mxu0 0.0
    %4795 = vmatprep.subr.mxu0 0.0
    %4796 = vmatpush2.msra.mxu0 0.0
    %4797 = vmatprep.subr.mxu0 0.0
    %4798 = vmatpush2.msra.mxu0 0.0
    %4799 = vmatprep.subr.mxu0 0.0
    %4800 = vmatpush2.msra.mxu0 0.0
    %4801 = vmatprep.subr.mxu0 0.0
    %4802 = vmatpush2.msra.mxu0 0.0
    %4803 = vmatprep.subr.mxu0 0.0
    %4804 = vmatpush2.msra.mxu0 0.0
    %4805 = vmatprep.subr.mxu0 0.0
    %4806 = vmatpush2.msra.mxu0 0.0
    %4807 = vmatprep.subr.mxu0 0.0
    %4808 = vmatpush2.msra.mxu0 0.0
    %4809 = vmatprep.subr.mxu0 0.0
    %4810 = vmatpush2.msra.mxu0 0.0
    %4811 = vmatprep.subr.mxu0 0.0
    %4812 = vmatpush2.msra.mxu0 0.0
    %4813 = vmatprep.subr.mxu0 0.0
    %4814 = vmatpush2.msra.mxu0 0.0
    %4815 = vmatprep.subr.mxu0 0.0
    %4816 = vmatpush2.msra.mxu0 0.0
    %4817 = vmatprep.subr.mxu0 0.0
    %4818 = vmatpush2.msra.mxu0 0.0
    %4819 = vmatprep.subr.mxu0 0.0
    %4820 = vmatpush2.msra.mxu0 0.0
    %4821 = vmatprep.subr.mxu0 0.0
    %4822 = vmatpush2.msra.mxu0 0.0
    %4823 = vmatprep.subr.mxu0 0.0
    %4824 = vmatpush2.msra.mxu0 0.0
    %4825 = vmatprep.mubr.f32.mxu0 0.0
    %4826 = vmatmul.mubr.f32.gmra.mxu0 %v4759
    %v4827 = vpop.f32.mrf.mxu0
    %v4828 = vadd.f32 0.0, %v4827
    %v4829 = vpop.f32.mrf.mxu0
    %4830 = vdwg.mxu0
    %s4831 = scalar_lea.vmem [#allocation20], 64
    %v4832 = vld [vmem:[%s4831] sm:$0xff]
    %v4833 = vld [vmem:[%s4831 + $0x8] sm:$0xff]
    %v4834 = vld [vmem:[%s4831 + $0x10] sm:$0xff]
    %v4835 = vld [vmem:[%s4831 + $0x18] sm:$0xff]
    %v4837 = vsel %vm1513, %v4828, 0
    %4839 = vmatprep.subr.mxu0 0.0
    %4840 = vmatpush1.msra.mxu0 0.0
    %4841 = vmatprep.subr.mxu0 0.0
    %4842 = vmatpush1.msra.mxu0 0.0
    %4843 = vmatprep.subr.mxu0 0.0
    %4844 = vmatpush1.msra.mxu0 0.0
    %4845 = vmatprep.subr.mxu0 0.0
    %4846 = vmatpush1.msra.mxu0 0.0
    %4847 = vmatprep.subr.mxu0 0.0
    %4848 = vmatpush1.msra.mxu0 0.0
    %4849 = vmatprep.subr.mxu0 0.0
    %4850 = vmatpush1.msra.mxu0 0.0
    %4851 = vmatprep.subr.mxu0 0.0
    %4852 = vmatpush1.msra.mxu0 0.0
    %4853 = vmatprep.subr.mxu0 0.0
    %4854 = vmatpush1.msra.mxu0 0.0
    %4855 = vmatprep.subr.mxu0 0.0
    %4856 = vmatpush1.msra.mxu0 0.0
    %4857 = vmatprep.subr.mxu0 0.0
    %4858 = vmatpush1.msra.mxu0 0.0
    %4859 = vmatprep.subr.mxu0 0.0
    %4860 = vmatpush1.msra.mxu0 0.0
    %4861 = vmatprep.subr.mxu0 0.0
    %4862 = vmatpush1.msra.mxu0 0.0
    %4863 = vmatprep.subr.mxu0 0.0
    %4864 = vmatpush1.msra.mxu0 %v4835
    %4865 = vmatprep.subr.mxu0 0.0
    %4866 = vmatpush1.msra.mxu0 %v4834
    %4867 = vmatprep.subr.mxu0 0.0
    %4868 = vmatpush1.msra.mxu0 %v4833
    %4869 = vmatprep.subr.mxu0 0.0
    %4870 = vmatpush1.msra.mxu0 %v4832
    %4871 = vmatprep.subr.mxu0 0.0
    %4872 = vmatpush2.msra.mxu0 0.0
    %4873 = vmatprep.subr.mxu0 0.0
    %4874 = vmatpush2.msra.mxu0 0.0
    %4875 = vmatprep.subr.mxu0 0.0
    %4876 = vmatpush2.msra.mxu0 0.0
    %4877 = vmatprep.subr.mxu0 0.0
    %4878 = vmatpush2.msra.mxu0 0.0
    %4879 = vmatprep.subr.mxu0 0.0
    %4880 = vmatpush2.msra.mxu0 0.0
    %4881 = vmatprep.subr.mxu0 0.0
    %4882 = vmatpush2.msra.mxu0 0.0
    %4883 = vmatprep.subr.mxu0 0.0
    %4884 = vmatpush2.msra.mxu0 0.0
    %4885 = vmatprep.subr.mxu0 0.0
    %4886 = vmatpush2.msra.mxu0 0.0
    %4887 = vmatprep.subr.mxu0 0.0
    %4888 = vmatpush2.msra.mxu0 0.0
    %4889 = vmatprep.subr.mxu0 0.0
    %4890 = vmatpush2.msra.mxu0 0.0
    %4891 = vmatprep.subr.mxu0 0.0
    %4892 = vmatpush2.msra.mxu0 0.0
    %4893 = vmatprep.subr.mxu0 0.0
    %4894 = vmatpush2.msra.mxu0 0.0
    %4895 = vmatprep.subr.mxu0 0.0
    %4896 = vmatpush2.msra.mxu0 0.0
    %4897 = vmatprep.subr.mxu0 0.0
    %4898 = vmatpush2.msra.mxu0 0.0
    %4899 = vmatprep.subr.mxu0 0.0
    %4900 = vmatpush2.msra.mxu0 0.0
    %4901 = vmatprep.subr.mxu0 0.0
    %4902 = vmatpush2.msra.mxu0 0.0
    %4903 = vmatprep.mubr.f32.mxu0 0.0
    %4904 = vmatmul.mubr.f32.gmra.mxu0 %v4837
    %v4905 = vpop.f32.mrf.mxu0
    %v4906 = vadd.f32 0.0, %v4905
    %v4907 = vpop.f32.mrf.mxu0
    %4908 = vdwg.mxu0
    %v4909 = vadd.f32 %v4753, %v4906
    %vm4910 = vcmask 254976
    %v4911 = vsel %vm4910, %v4909, 0.0
    %v4912 = vrot.slane %v4911, 4
    %v4913 = vadd.f32 %v4911, %v4912
    %v4914 = vrot.slane %v4913, 2
    %v4915 = vadd.f32 %v4913, %v4914
    %v4916 = vrot.slane %v4915, 1
    %v4917 = vadd.f32 %v4915, %v4916
    %v4918 = vrcp.pop 2.0
    %v4919 = vmul.f32 %v4917, %v4918
    %v4920 = vadd.f32 %v4919, %v4448
    %vm4921 = vcmask 253952
    %4922 = vst.msk [vmem:[#allocation22] sm:$0x1] %vm4921, %v4920
    %v4923 = vld [vmem:[%s17] sm:$0x3]
    %v4925 = vsel %vm441, %v4923, 0
    %v4928 = vsel %vm454, %v4447, 0
    %4930 = vmatprep.subr.mxu0 0.0
    %4931 = vmatpush1.msra.mxu0 0.0
    %4932 = vmatprep.subr.mxu0 0.0
    %4933 = vmatpush1.msra.mxu0 0.0
    %4934 = vmatprep.subr.mxu0 0.0
    %4935 = vmatpush1.msra.mxu0 0.0
    %4936 = vmatprep.subr.mxu0 0.0
    %4937 = vmatpush1.msra.mxu0 0.0
    %4938 = vmatprep.subr.mxu0 0.0
    %4939 = vmatpush1.msra.mxu0 0.0
    %4940 = vmatprep.subr.mxu0 0.0
    %4941 = vmatpush1.msra.mxu0 0.0
    %4942 = vmatprep.subr.mxu0 0.0
    %4943 = vmatpush1.msra.mxu0 0.0
    %4944 = vmatprep.subr.mxu0 0.0
    %4945 = vmatpush1.msra.mxu0 0.0
    %4946 = vmatprep.subr.mxu0 0.0
    %4947 = vmatpush1.msra.mxu0 0.0
    %4948 = vmatprep.subr.mxu0 0.0
    %4949 = vmatpush1.msra.mxu0 0.0
    %4950 = vmatprep.subr.mxu0 0.0
    %4951 = vmatpush1.msra.mxu0 0.0
    %4952 = vmatprep.subr.mxu0 0.0
    %4953 = vmatpush1.msra.mxu0 0.0
    %4954 = vmatprep.subr.mxu0 0.0
    %4955 = vmatpush1.msra.mxu0 0.0
    %4956 = vmatprep.subr.mxu0 0.0
    %4957 = vmatpush1.msra.mxu0 0.0
    %4958 = vmatprep.subr.mxu0 0.0
    %4959 = vmatpush1.msra.mxu0 0.0
    %4960 = vmatprep.subr.mxu0 0.0
    %4961 = vmatpush1.msra.mxu0 %v4928
    %4962 = vmatprep.subr.mxu0 0.0
    %4963 = vmatpush2.msra.mxu0 0.0
    %4964 = vmatprep.subr.mxu0 0.0
    %4965 = vmatpush2.msra.mxu0 0.0
    %4966 = vmatprep.subr.mxu0 0.0
    %4967 = vmatpush2.msra.mxu0 0.0
    %4968 = vmatprep.subr.mxu0 0.0
    %4969 = vmatpush2.msra.mxu0 0.0
    %4970 = vmatprep.subr.mxu0 0.0
    %4971 = vmatpush2.msra.mxu0 0.0
    %4972 = vmatprep.subr.mxu0 0.0
    %4973 = vmatpush2.msra.mxu0 0.0
    %4974 = vmatprep.subr.mxu0 0.0
    %4975 = vmatpush2.msra.mxu0 0.0
    %4976 = vmatprep.subr.mxu0 0.0
    %4977 = vmatpush2.msra.mxu0 0.0
    %4978 = vmatprep.subr.mxu0 0.0
    %4979 = vmatpush2.msra.mxu0 0.0
    %4980 = vmatprep.subr.mxu0 0.0
    %4981 = vmatpush2.msra.mxu0 0.0
    %4982 = vmatprep.subr.mxu0 0.0
    %4983 = vmatpush2.msra.mxu0 0.0
    %4984 = vmatprep.subr.mxu0 0.0
    %4985 = vmatpush2.msra.mxu0 0.0
    %4986 = vmatprep.subr.mxu0 0.0
    %4987 = vmatpush2.msra.mxu0 0.0
    %4988 = vmatprep.subr.mxu0 0.0
    %4989 = vmatpush2.msra.mxu0 0.0
    %4990 = vmatprep.subr.mxu0 0.0
    %4991 = vmatpush2.msra.mxu0 0.0
    %4992 = vmatprep.subr.mxu0 0.0
    %4993 = vmatpush2.msra.mxu0 0.0
    %4994 = vmatprep.mubr.f32.mxu0 0.0
    %4995 = vmatmul.mubr.f32.gmra.mxu0 %v4925
    %v4996 = vpop.f32.mrf.mxu0
    %v4997 = vadd.f32 0.0, %v4996
    %v4998 = vpop.f32.mrf.mxu0
    %4999 = vdwg.mxu0
    %v5000 = vld [vmem:[#allocation20] sm:$0xff]
    %v5001 = vld [vmem:[#allocation20 + $0x8] sm:$0xff]
    %v5002 = vld [vmem:[#allocation20 + $0x10] sm:$0xff]
    %v5003 = vld [vmem:[#allocation20 + $0x18] sm:$0xff]
    %v5004 = vld [vmem:[%s4530] sm:$0x3]
    %v5006 = vsel %vm441, %v5004, 0
    %5008 = vmatprep.subr.mxu0 0.0
    %5009 = vmatpush1.msra.mxu0 0.0
    %5010 = vmatprep.subr.mxu0 0.0
    %5011 = vmatpush1.msra.mxu0 0.0
    %5012 = vmatprep.subr.mxu0 0.0
    %5013 = vmatpush1.msra.mxu0 0.0
    %5014 = vmatprep.subr.mxu0 0.0
    %5015 = vmatpush1.msra.mxu0 0.0
    %5016 = vmatprep.subr.mxu0 0.0
    %5017 = vmatpush1.msra.mxu0 0.0
    %5018 = vmatprep.subr.mxu0 0.0
    %5019 = vmatpush1.msra.mxu0 0.0
    %5020 = vmatprep.subr.mxu0 0.0
    %5021 = vmatpush1.msra.mxu0 0.0
    %5022 = vmatprep.subr.mxu0 0.0
    %5023 = vmatpush1.msra.mxu0 0.0
    %5024 = vmatprep.subr.mxu0 0.0
    %5025 = vmatpush1.msra.mxu0 0.0
    %5026 = vmatprep.subr.mxu0 0.0
    %5027 = vmatpush1.msra.mxu0 0.0
    %5028 = vmatprep.subr.mxu0 0.0
    %5029 = vmatpush1.msra.mxu0 0.0
    %5030 = vmatprep.subr.mxu0 0.0
    %5031 = vmatpush1.msra.mxu0 0.0
    %5032 = vmatprep.subr.mxu0 0.0
    %5033 = vmatpush1.msra.mxu0 0.0
    %5034 = vmatprep.subr.mxu0 0.0
    %5035 = vmatpush1.msra.mxu0 0.0
    %5036 = vmatprep.subr.mxu0 0.0
    %5037 = vmatpush1.msra.mxu0 0.0
    %5038 = vmatprep.subr.mxu0 0.0
    %5039 = vmatpush1.msra.mxu0 %v4928
    %5040 = vmatprep.subr.mxu0 0.0
    %5041 = vmatpush2.msra.mxu0 0.0
    %5042 = vmatprep.subr.mxu0 0.0
    %5043 = vmatpush2.msra.mxu0 0.0
    %5044 = vmatprep.subr.mxu0 0.0
    %5045 = vmatpush2.msra.mxu0 0.0
    %5046 = vmatprep.subr.mxu0 0.0
    %5047 = vmatpush2.msra.mxu0 0.0
    %5048 = vmatprep.subr.mxu0 0.0
    %5049 = vmatpush2.msra.mxu0 0.0
    %5050 = vmatprep.subr.mxu0 0.0
    %5051 = vmatpush2.msra.mxu0 0.0
    %5052 = vmatprep.subr.mxu0 0.0
    %5053 = vmatpush2.msra.mxu0 0.0
    %5054 = vmatprep.subr.mxu0 0.0
    %5055 = vmatpush2.msra.mxu0 0.0
    %5056 = vmatprep.subr.mxu0 0.0
    %5057 = vmatpush2.msra.mxu0 0.0
    %5058 = vmatprep.subr.mxu0 0.0
    %5059 = vmatpush2.msra.mxu0 0.0
    %5060 = vmatprep.subr.mxu0 0.0
    %5061 = vmatpush2.msra.mxu0 0.0
    %5062 = vmatprep.subr.mxu0 0.0
    %5063 = vmatpush2.msra.mxu0 0.0
    %5064 = vmatprep.subr.mxu0 0.0
    %5065 = vmatpush2.msra.mxu0 0.0
    %5066 = vmatprep.subr.mxu0 0.0
    %5067 = vmatpush2.msra.mxu0 0.0
    %5068 = vmatprep.subr.mxu0 0.0
    %5069 = vmatpush2.msra.mxu0 0.0
    %5070 = vmatprep.subr.mxu0 0.0
    %5071 = vmatpush2.msra.mxu0 0.0
    %5072 = vmatprep.mubr.f32.mxu0 0.0
    %5073 = vmatmul.mubr.f32.gmra.mxu0 %v5006
    %v5074 = vpop.f32.mrf.mxu0
    %v5075 = vadd.f32 0.0, %v5074
    %v5076 = vpop.f32.mrf.mxu0
    %5077 = vdwg.mxu0
    %v5078 = vld [vmem:[%s4605] sm:$0xff]
    %v5079 = vld [vmem:[%s4605 + $0x8] sm:$0xff]
    %v5080 = vld [vmem:[%s4605 + $0x10] sm:$0xff]
    %v5081 = vld [vmem:[%s4605 + $0x18] sm:$0xff]
    %v5083 = vsel %vm1513, %v5075, 0
    %5085 = vmatprep.subr.mxu0 0.0
    %5086 = vmatpush1.msra.mxu0 0.0
    %5087 = vmatprep.subr.mxu0 0.0
    %5088 = vmatpush1.msra.mxu0 0.0
    %5089 = vmatprep.subr.mxu0 0.0
    %5090 = vmatpush1.msra.mxu0 0.0
    %5091 = vmatprep.subr.mxu0 0.0
    %5092 = vmatpush1.msra.mxu0 0.0
    %5093 = vmatprep.subr.mxu0 0.0
    %5094 = vmatpush1.msra.mxu0 0.0
    %5095 = vmatprep.subr.mxu0 0.0
    %5096 = vmatpush1.msra.mxu0 0.0
    %5097 = vmatprep.subr.mxu0 0.0
    %5098 = vmatpush1.msra.mxu0 0.0
    %5099 = vmatprep.subr.mxu0 0.0
    %5100 = vmatpush1.msra.mxu0 0.0
    %5101 = vmatprep.subr.mxu0 0.0
    %5102 = vmatpush1.msra.mxu0 0.0
    %5103 = vmatprep.subr.mxu0 0.0
    %5104 = vmatpush1.msra.mxu0 0.0
    %5105 = vmatprep.subr.mxu0 0.0
    %5106 = vmatpush1.msra.mxu0 0.0
    %5107 = vmatprep.subr.mxu0 0.0
    %5108 = vmatpush1.msra.mxu0 0.0
    %5109 = vmatprep.subr.mxu0 0.0
    %5110 = vmatpush1.msra.mxu0 %v5081
    %5111 = vmatprep.subr.mxu0 0.0
    %5112 = vmatpush1.msra.mxu0 %v5080
    %5113 = vmatprep.subr.mxu0 0.0
    %5114 = vmatpush1.msra.mxu0 %v5079
    %5115 = vmatprep.subr.mxu0 0.0
    %5116 = vmatpush1.msra.mxu0 %v5078
    %5117 = vmatprep.subr.mxu0 0.0
    %5118 = vmatpush2.msra.mxu0 0.0
    %5119 = vmatprep.subr.mxu0 0.0
    %5120 = vmatpush2.msra.mxu0 0.0
    %5121 = vmatprep.subr.mxu0 0.0
    %5122 = vmatpush2.msra.mxu0 0.0
    %5123 = vmatprep.subr.mxu0 0.0
    %5124 = vmatpush2.msra.mxu0 0.0
    %5125 = vmatprep.subr.mxu0 0.0
    %5126 = vmatpush2.msra.mxu0 0.0
    %5127 = vmatprep.subr.mxu0 0.0
    %5128 = vmatpush2.msra.mxu0 0.0
    %5129 = vmatprep.subr.mxu0 0.0
    %5130 = vmatpush2.msra.mxu0 0.0
    %5131 = vmatprep.subr.mxu0 0.0
    %5132 = vmatpush2.msra.mxu0 0.0
    %5133 = vmatprep.subr.mxu0 0.0
    %5134 = vmatpush2.msra.mxu0 0.0
    %5135 = vmatprep.subr.mxu0 0.0
    %5136 = vmatpush2.msra.mxu0 0.0
    %5137 = vmatprep.subr.mxu0 0.0
    %5138 = vmatpush2.msra.mxu0 0.0
    %5139 = vmatprep.subr.mxu0 0.0
    %5140 = vmatpush2.msra.mxu0 0.0
    %5141 = vmatprep.subr.mxu0 0.0
    %5142 = vmatpush2.msra.mxu0 0.0
    %5143 = vmatprep.subr.mxu0 0.0
    %5144 = vmatpush2.msra.mxu0 0.0
    %5145 = vmatprep.subr.mxu0 0.0
    %5146 = vmatpush2.msra.mxu0 0.0
    %5147 = vmatprep.subr.mxu0 0.0
    %5148 = vmatpush2.msra.mxu0 0.0
    %5149 = vmatprep.mubr.f32.mxu0 0.0
    %5150 = vmatmul.mubr.f32.gmra.mxu0 %v5083
    %v5151 = vpop.f32.mrf.mxu0
    %v5152 = vadd.f32 0.0, %v5151
    %v5153 = vpop.f32.mrf.mxu0
    %5154 = vdwg.mxu0
    %v5156 = vsel %vm1513, %v4997, 0
    %5158 = vmatprep.subr.mxu0 0.0
    %5159 = vmatpush1.msra.mxu0 0.0
    %5160 = vmatprep.subr.mxu0 0.0
    %5161 = vmatpush1.msra.mxu0 0.0
    %5162 = vmatprep.subr.mxu0 0.0
    %5163 = vmatpush1.msra.mxu0 0.0
    %5164 = vmatprep.subr.mxu0 0.0
    %5165 = vmatpush1.msra.mxu0 0.0
    %5166 = vmatprep.subr.mxu0 0.0
    %5167 = vmatpush1.msra.mxu0 0.0
    %5168 = vmatprep.subr.mxu0 0.0
    %5169 = vmatpush1.msra.mxu0 0.0
    %5170 = vmatprep.subr.mxu0 0.0
    %5171 = vmatpush1.msra.mxu0 0.0
    %5172 = vmatprep.subr.mxu0 0.0
    %5173 = vmatpush1.msra.mxu0 0.0
    %5174 = vmatprep.subr.mxu0 0.0
    %5175 = vmatpush1.msra.mxu0 0.0
    %5176 = vmatprep.subr.mxu0 0.0
    %5177 = vmatpush1.msra.mxu0 0.0
    %5178 = vmatprep.subr.mxu0 0.0
    %5179 = vmatpush1.msra.mxu0 0.0
    %5180 = vmatprep.subr.mxu0 0.0
    %5181 = vmatpush1.msra.mxu0 0.0
    %5182 = vmatprep.subr.mxu0 0.0
    %5183 = vmatpush1.msra.mxu0 %v5003
    %5184 = vmatprep.subr.mxu0 0.0
    %5185 = vmatpush1.msra.mxu0 %v5002
    %5186 = vmatprep.subr.mxu0 0.0
    %5187 = vmatpush1.msra.mxu0 %v5001
    %5188 = vmatprep.subr.mxu0 0.0
    %5189 = vmatpush1.msra.mxu0 %v5000
    %5190 = vmatprep.subr.mxu0 0.0
    %5191 = vmatpush2.msra.mxu0 0.0
    %5192 = vmatprep.subr.mxu0 0.0
    %5193 = vmatpush2.msra.mxu0 0.0
    %5194 = vmatprep.subr.mxu0 0.0
    %5195 = vmatpush2.msra.mxu0 0.0
    %5196 = vmatprep.subr.mxu0 0.0
    %5197 = vmatpush2.msra.mxu0 0.0
    %5198 = vmatprep.subr.mxu0 0.0
    %5199 = vmatpush2.msra.mxu0 0.0
    %5200 = vmatprep.subr.mxu0 0.0
    %5201 = vmatpush2.msra.mxu0 0.0
    %5202 = vmatprep.subr.mxu0 0.0
    %5203 = vmatpush2.msra.mxu0 0.0
    %5204 = vmatprep.subr.mxu0 0.0
    %5205 = vmatpush2.msra.mxu0 0.0
    %5206 = vmatprep.subr.mxu0 0.0
    %5207 = vmatpush2.msra.mxu0 0.0
    %5208 = vmatprep.subr.mxu0 0.0
    %5209 = vmatpush2.msra.mxu0 0.0
    %5210 = vmatprep.subr.mxu0 0.0
    %5211 = vmatpush2.msra.mxu0 0.0
    %5212 = vmatprep.subr.mxu0 0.0
    %5213 = vmatpush2.msra.mxu0 0.0
    %5214 = vmatprep.subr.mxu0 0.0
    %5215 = vmatpush2.msra.mxu0 0.0
    %5216 = vmatprep.subr.mxu0 0.0
    %5217 = vmatpush2.msra.mxu0 0.0
    %5218 = vmatprep.subr.mxu0 0.0
    %5219 = vmatpush2.msra.mxu0 0.0
    %5220 = vmatprep.subr.mxu0 0.0
    %5221 = vmatpush2.msra.mxu0 0.0
    %5222 = vmatprep.mubr.f32.mxu0 0.0
    %5223 = vmatmul.mubr.f32.gmra.mxu0 %v5156
    %v5224 = vpop.f32.mrf.mxu0
    %v5225 = vadd.f32 %v5152, %v5224
    %v5226 = vpop.f32.mrf.mxu0
    %5227 = vdwg.mxu0
    %v5228 = vld [vmem:[%s4756] sm:$0x3]
    %v5230 = vsel %vm441, %v5228, 0
    %5232 = vmatprep.subr.mxu0 0.0
    %5233 = vmatpush1.msra.mxu0 0.0
    %5234 = vmatprep.subr.mxu0 0.0
    %5235 = vmatpush1.msra.mxu0 0.0
    %5236 = vmatprep.subr.mxu0 0.0
    %5237 = vmatpush1.msra.mxu0 0.0
    %5238 = vmatprep.subr.mxu0 0.0
    %5239 = vmatpush1.msra.mxu0 0.0
    %5240 = vmatprep.subr.mxu0 0.0
    %5241 = vmatpush1.msra.mxu0 0.0
    %5242 = vmatprep.subr.mxu0 0.0
    %5243 = vmatpush1.msra.mxu0 0.0
    %5244 = vmatprep.subr.mxu0 0.0
    %5245 = vmatpush1.msra.mxu0 0.0
    %5246 = vmatprep.subr.mxu0 0.0
    %5247 = vmatpush1.msra.mxu0 0.0
    %5248 = vmatprep.subr.mxu0 0.0
    %5249 = vmatpush1.msra.mxu0 0.0
    %5250 = vmatprep.subr.mxu0 0.0
    %5251 = vmatpush1.msra.mxu0 0.0
    %5252 = vmatprep.subr.mxu0 0.0
    %5253 = vmatpush1.msra.mxu0 0.0
    %5254 = vmatprep.subr.mxu0 0.0
    %5255 = vmatpush1.msra.mxu0 0.0
    %5256 = vmatprep.subr.mxu0 0.0
    %5257 = vmatpush1.msra.mxu0 0.0
    %5258 = vmatprep.subr.mxu0 0.0
    %5259 = vmatpush1.msra.mxu0 0.0
    %5260 = vmatprep.subr.mxu0 0.0
    %5261 = vmatpush1.msra.mxu0 0.0
    %5262 = vmatprep.subr.mxu0 0.0
    %5263 = vmatpush1.msra.mxu0 %v4928
    %5264 = vmatprep.subr.mxu0 0.0
    %5265 = vmatpush2.msra.mxu0 0.0
    %5266 = vmatprep.subr.mxu0 0.0
    %5267 = vmatpush2.msra.mxu0 0.0
    %5268 = vmatprep.subr.mxu0 0.0
    %5269 = vmatpush2.msra.mxu0 0.0
    %5270 = vmatprep.subr.mxu0 0.0
    %5271 = vmatpush2.msra.mxu0 0.0
    %5272 = vmatprep.subr.mxu0 0.0
    %5273 = vmatpush2.msra.mxu0 0.0
    %5274 = vmatprep.subr.mxu0 0.0
    %5275 = vmatpush2.msra.mxu0 0.0
    %5276 = vmatprep.subr.mxu0 0.0
    %5277 = vmatpush2.msra.mxu0 0.0
    %5278 = vmatprep.subr.mxu0 0.0
    %5279 = vmatpush2.msra.mxu0 0.0
    %5280 = vmatprep.subr.mxu0 0.0
    %5281 = vmatpush2.msra.mxu0 0.0
    %5282 = vmatprep.subr.mxu0 0.0
    %5283 = vmatpush2.msra.mxu0 0.0
    %5284 = vmatprep.subr.mxu0 0.0
    %5285 = vmatpush2.msra.mxu0 0.0
    %5286 = vmatprep.subr.mxu0 0.0
    %5287 = vmatpush2.msra.mxu0 0.0
    %5288 = vmatprep.subr.mxu0 0.0
    %5289 = vmatpush2.msra.mxu0 0.0
    %5290 = vmatprep.subr.mxu0 0.0
    %5291 = vmatpush2.msra.mxu0 0.0
    %5292 = vmatprep.subr.mxu0 0.0
    %5293 = vmatpush2.msra.mxu0 0.0
    %5294 = vmatprep.subr.mxu0 0.0
    %5295 = vmatpush2.msra.mxu0 0.0
    %5296 = vmatprep.mubr.f32.mxu0 0.0
    %5297 = vmatmul.mubr.f32.gmra.mxu0 %v5230
    %v5298 = vpop.f32.mrf.mxu0
    %v5299 = vadd.f32 0.0, %v5298
    %v5300 = vpop.f32.mrf.mxu0
    %5301 = vdwg.mxu0
    %v5302 = vld [vmem:[%s4831] sm:$0xff]
    %v5303 = vld [vmem:[%s4831 + $0x8] sm:$0xff]
    %v5304 = vld [vmem:[%s4831 + $0x10] sm:$0xff]
    %v5305 = vld [vmem:[%s4831 + $0x18] sm:$0xff]
    %v5307 = vsel %vm1513, %v5299, 0
    %5309 = vmatprep.subr.mxu0 0.0
    %5310 = vmatpush1.msra.mxu0 0.0
    %5311 = vmatprep.subr.mxu0 0.0
    %5312 = vmatpush1.msra.mxu0 0.0
    %5313 = vmatprep.subr.mxu0 0.0
    %5314 = vmatpush1.msra.mxu0 0.0
    %5315 = vmatprep.subr.mxu0 0.0
    %5316 = vmatpush1.msra.mxu0 0.0
    %5317 = vmatprep.subr.mxu0 0.0
    %5318 = vmatpush1.msra.mxu0 0.0
    %5319 = vmatprep.subr.mxu0 0.0
    %5320 = vmatpush1.msra.mxu0 0.0
    %5321 = vmatprep.subr.mxu0 0.0
    %5322 = vmatpush1.msra.mxu0 0.0
    %5323 = vmatprep.subr.mxu0 0.0
    %5324 = vmatpush1.msra.mxu0 0.0
    %5325 = vmatprep.subr.mxu0 0.0
    %5326 = vmatpush1.msra.mxu0 0.0
    %5327 = vmatprep.subr.mxu0 0.0
    %5328 = vmatpush1.msra.mxu0 0.0
    %5329 = vmatprep.subr.mxu0 0.0
    %5330 = vmatpush1.msra.mxu0 0.0
    %5331 = vmatprep.subr.mxu0 0.0
    %5332 = vmatpush1.msra.mxu0 0.0
    %5333 = vmatprep.subr.mxu0 0.0
    %5334 = vmatpush1.msra.mxu0 %v5305
    %5335 = vmatprep.subr.mxu0 0.0
    %5336 = vmatpush1.msra.mxu0 %v5304
    %5337 = vmatprep.subr.mxu0 0.0
    %5338 = vmatpush1.msra.mxu0 %v5303
    %5339 = vmatprep.subr.mxu0 0.0
    %5340 = vmatpush1.msra.mxu0 %v5302
    %5341 = vmatprep.subr.mxu0 0.0
    %5342 = vmatpush2.msra.mxu0 0.0
    %5343 = vmatprep.subr.mxu0 0.0
    %5344 = vmatpush2.msra.mxu0 0.0
    %5345 = vmatprep.subr.mxu0 0.0
    %5346 = vmatpush2.msra.mxu0 0.0
    %5347 = vmatprep.subr.mxu0 0.0
    %5348 = vmatpush2.msra.mxu0 0.0
    %5349 = vmatprep.subr.mxu0 0.0
    %5350 = vmatpush2.msra.mxu0 0.0
    %5351 = vmatprep.subr.mxu0 0.0
    %5352 = vmatpush2.msra.mxu0 0.0
    %5353 = vmatprep.subr.mxu0 0.0
    %5354 = vmatpush2.msra.mxu0 0.0
    %5355 = vmatprep.subr.mxu0 0.0
    %5356 = vmatpush2.msra.mxu0 0.0
    %5357 = vmatprep.subr.mxu0 0.0
    %5358 = vmatpush2.msra.mxu0 0.0
    %5359 = vmatprep.subr.mxu0 0.0
    %5360 = vmatpush2.msra.mxu0 0.0
    %5361 = vmatprep.subr.mxu0 0.0
    %5362 = vmatpush2.msra.mxu0 0.0
    %5363 = vmatprep.subr.mxu0 0.0
    %5364 = vmatpush2.msra.mxu0 0.0
    %5365 = vmatprep.subr.mxu0 0.0
    %5366 = vmatpush2.msra.mxu0 0.0
    %5367 = vmatprep.subr.mxu0 0.0
    %5368 = vmatpush2.msra.mxu0 0.0
    %5369 = vmatprep.subr.mxu0 0.0
    %5370 = vmatpush2.msra.mxu0 0.0
    %5371 = vmatprep.subr.mxu0 0.0
    %5372 = vmatpush2.msra.mxu0 0.0
    %5373 = vmatprep.mubr.f32.mxu0 0.0
    %5374 = vmatmul.mubr.f32.gmra.mxu0 %v5307
    %v5375 = vpop.f32.mrf.mxu0
    %v5376 = vadd.f32 0.0, %v5375
    %v5377 = vpop.f32.mrf.mxu0
    %5378 = vdwg.mxu0
    %v5379 = vadd.f32 %v5225, %v5376
    %v5380 = vsel %vm4910, %v5379, 0.0
    %v5381 = vrot.slane %v5380, 4
    %v5382 = vadd.f32 %v5380, %v5381
    %v5383 = vrot.slane %v5382, 2
    %v5384 = vadd.f32 %v5382, %v5383
    %v5385 = vrot.slane %v5384, 1
    %v5386 = vadd.f32 %v5384, %v5385
    %v5387 = vmul.f32 %v5386, %v4918
    %v5388 = vadd.f32 %v5387, %v4448
    %5389 = vst.msk [vmem:[#allocation22 + $0x1] sm:$0x1] %vm4921, %v5388
    // Predicated region
    $region130: #{tpu_custom_call.1} parent=1 // pred_check
      _
    $region131: #{tpu_custom_call.1} parent=1 // pred_check_branch
      %5391 = sbr.rel (0) target = $region133
    $region132: #{tpu_custom_call.1} parent=1 // pred_region
      %s5393 = ssub.s32 32, 32
      %5394 = vsyncadd [#allocation4], %s5393
      %s5396 = sshll.u32 [#allocation22], 4
      %s5397 = int_to_ptr.vmem [resolvable:$true] %s5396
      %5399 = dma.vmem_to_hbm [thread:$0]  %s5397, 32, %s20, [#allocation4]
    $region133: #{tpu_custom_call.1} parent=1 // pred_fallthru
      _
    // Predicated region
    $region134: #{tpu_custom_call.1} parent=1 // pred_check
      _
    $region135: #{tpu_custom_call.1} parent=1 // pred_check_branch
      %5401 = sbr.rel (0) target = $region137
    $region136: #{tpu_custom_call.1} parent=1 // pred_region
      %5402 = dma.done [#allocation4], 32
    $region137: #{tpu_custom_call.1} parent=1 // pred_fallthru
      _
    %5403 = vsyncpa [#allocation3], 1
    %5404 = vsyncpa [#allocation6], 1
    %5405 = vsyncpa [#allocation9], 1
    %5406 = vsyncpa [#allocation12], 1
    %5407 = vsyncpa [#allocation15], 1
    %5408 = vsyncpa [#allocation18], 1
    %5409 = vsyncpa [#allocation21], 1
    %5410 = vsyncpa [#allocation4], 1

</llo_original>
